<compile_context>
chip_gen: v7x
topology: tpu7x:2x2x1
jax: 0.10.0
libtpu: 0.0.40
codegen_flags: <defaults>
</compile_context>

<pallas_src>
import math
import functools

import jax
import jax.numpy as jnp
from jax.experimental import pallas as pl
from jax.experimental.pallas import tpu as pltpu

# ----------------------------------------------------------------------------
# Model hyper-parameters (small, consistent with the PyTorch module)
# ----------------------------------------------------------------------------
NUM_ENC = 2
VOCAB_SIZE = 50
D_MODEL = 32
NUM_HEAD = 4
D_FF = 64
MAX_LEN = 64

BATCH = 2
SEQ = 8

STACKED_NAMES = ["wqkv", "bqkv", "wo", "bo",
                 "g1", "be1", "w1", "b1", "w2", "b2", "g2", "be2"]


# ----------------------------------------------------------------------------
# Fused Pallas kernel: all layers, all batch rows, ONE invocation (no grid).
# ----------------------------------------------------------------------------
def _make_encoder_kernel(num_layers, num_head, d_model, d_k):

    def kernel(x_ref, mask_ref,
               wqkv_ref, bqkv_ref, wo_ref, bo_ref,
               g1_ref, be1_ref, w1_ref, b1_ref, w2_ref, b2_ref,
               g2_ref, be2_ref,
               out_ref):
        x = x_ref[...]                  # (N, D) f32 activation, N = B*S
        mask_add = mask_ref[...]        # (N, N) additive mask (0 / -1e9)

        def layer_norm(z, g, b):
            mu = jnp.mean(z, axis=-1, keepdims=True)
            var = jnp.mean((z - mu) * (z - mu), axis=-1, keepdims=True)
            return (z - mu) * jax.lax.rsqrt(var + 1e-5) * g + b

        for l in range(num_layers):     # static unroll; weights are VMEM-resident
            # ---- multi-head self-attention ----------------------------------
            # Fused QKV projection on the bf16 MXU path; 1/sqrt(d_k) is
            # pre-folded into wq/bq in the wrapper. Accumulation is f32.
            qkv = jnp.dot(x.astype(jnp.bfloat16), wqkv_ref[l],
                          preferred_element_type=jnp.float32) + bqkv_ref[l]
            q = qkv[:, :d_model]                       # already scaled
            kT = qkv[:, d_model:2 * d_model].T         # single transpose/layer
            v = qkv[:, 2 * d_model:]

            wo = wo_ref[l]                             # (D, D) f32
            attn = jnp.zeros_like(x)
            for h in range(num_head):                  # static unroll (H = 4)
                cs = slice(h * d_k, (h + 1) * d_k)
                s = jnp.dot(q[:, cs], kT[cs, :],
                            preferred_element_type=jnp.float32) + mask_add
                m = jnp.max(s, axis=-1, keepdims=True)
                e = jnp.exp(s - m)
                p = e * pl.reciprocal(jnp.sum(e, axis=-1, keepdims=True),
                                      approx=True)
                ctx = jnp.dot(p, v[:, cs], preferred_element_type=jnp.float32)
                # Fold the per-head output projection -> no concat of heads.
                attn = attn + jnp.dot(ctx, wo[cs, :],
                                      preferred_element_type=jnp.float32)
            attn = attn + bo_ref[l]
            # TODO(synk): attention / residual / FFN dropout are identity (eval mode).

            # ---- addnorm1 ----------------------------------------------------
            x2 = layer_norm(x + attn, g1_ref[l], be1_ref[l])

            # ---- position-wise feed-forward (bf16 MXU operands, f32 acc) -----
            hidden = jnp.maximum(
                jnp.dot(x2.astype(jnp.bfloat16), w1_ref[l],
                        preferred_element_type=jnp.float32) + b1_ref[l], 0.0)
            ff = jnp.dot(hidden.astype(jnp.bfloat16), w2_ref[l],
                         preferred_element_type=jnp.float32) + b2_ref[l]

            # ---- addnorm2 -> carried activation for the next layer -----------
            x = layer_norm(x2 + ff, g2_ref[l], be2_ref[l])

        out_ref[...] = x                 # single HBM writeback

    return kernel


def _build_additive_mask(mask):
    """(B, S, S) 1=keep mask -> (B*S, B*S) additive bias, block-diagonal so the
    batch can be folded into the row axis without cross-batch attention."""
    B, S, _ = mask.shape
    neg = jnp.float32(-1e9)
    big = jnp.full((B * S, B * S), neg, jnp.float32)
    for b in range(B):
        blk = jnp.where(mask[b] > 0, 0.0, neg).astype(jnp.float32)
        big = big.at[b * S:(b + 1) * S, b * S:(b + 1) * S].set(blk)
    return big


@functools.partial(jax.jit, static_argnames=("num_head",))
def transformer_encoder_forward(tokens, mask, embed_table, pe, stacked, *,
                                num_head):
    B, S = tokens.shape
    D = embed_table.shape[1]
    L = stacked["wqkv"].shape[0]
    N = B * S

    # Embedding lookup + positional encoding (plain JAX: a gather).
    x = jnp.take(embed_table, tokens, axis=0) + pe[:S][None]
    x = x.reshape(N, D).astype(jnp.float32)
    mask_add = _build_additive_mask(mask)

    weights = [stacked[n] for n in STACKED_NAMES]
    kernel = _make_encoder_kernel(L, num_head, D, D // num_head)

    # No grid: every operand is a whole-array VMEM block, DMA'd exactly once.
    vmem = pl.BlockSpec(memory_space=pltpu.MemorySpace.VMEM)
    out = pl.pallas_call(
        kernel,
        out_shape=jax.ShapeDtypeStruct((N, D), jnp.float32),
        in_specs=[vmem] * (2 + len(weights)),
        out_specs=vmem,
    )(x, mask_add, *weights)

    return out.reshape(B, S, D)


# ----------------------------------------------------------------------------
# Parameters
# ----------------------------------------------------------------------------
def positional_encoding(max_len, d_model):
    pos = jnp.arange(max_len, dtype=jnp.float32)[:, None]
    i = jnp.arange(0, d_model, 2, dtype=jnp.float32)
    div = jnp.exp(-jnp.log(10000.0) * i / d_model)
    pe = jnp.zeros((max_len, d_model), jnp.float32)
    pe = pe.at[:, 0::2].set(jnp.sin(pos * div))
    pe = pe.at[:, 1::2].set(jnp.cos(pos * div))
    return pe


def init_layer_params(key, d_model, d_ff):
    ks = jax.random.split(key, 6)

    def lin(k, din, dout):
        return (jax.random.normal(k, (din, dout), jnp.float32) * 0.02,
                jnp.zeros((1, dout), jnp.float32))

    wq, bq = lin(ks[0], d_model, d_model)
    wk, bk = lin(ks[1], d_model, d_model)
    wv, bv = lin(ks[2], d_model, d_model)
    wo, bo = lin(ks[3], d_model, d_model)
    w1, b1 = lin(ks[4], d_model, d_ff)
    w2, b2 = lin(ks[5], d_ff, d_model)
    return dict(wq=wq, bq=bq, wk=wk, bk=bk, wv=wv, bv=bv, wo=wo, bo=bo,
                g1=jnp.ones((1, d_model), jnp.float32),
                be1=jnp.zeros((1, d_model), jnp.float32),
                g2=jnp.ones((1, d_model), jnp.float32),
                be2=jnp.zeros((1, d_model), jnp.float32),
                w1=w1, b1=b1, w2=w2, b2=b2)


def stack_layer_params(layer_params, d_model, num_head):
    """Stack per-layer weights along a leading layer axis; fuse Q/K/V, fold the
    1/sqrt(d_k) attention scale into the Q projection, and store the large
    matmul weights (QKV / FFN) in bf16 for the MXU fast path."""
    scale = 1.0 / math.sqrt(d_model // num_head)

    def st(fn, dtype=jnp.float32):
        return jnp.stack([fn(p) for p in layer_params], axis=0).astype(dtype)

    return {
        "wqkv": st(lambda p: jnp.concatenate(
            [p["wq"] * scale, p["wk"], p["wv"]], axis=-1), jnp.bfloat16),
        "bqkv": st(lambda p: jnp.concatenate(
            [p["bq"] * scale, p["bk"], p["bv"]], axis=-1)),
        "wo": st(lambda p: p["wo"]), "bo": st(lambda p: p["bo"]),
        "g1": st(lambda p: p["g1"]), "be1": st(lambda p: p["be1"]),
        "w1": st(lambda p: p["w1"], jnp.bfloat16), "b1": st(lambda p: p["b1"]),
        "w2": st(lambda p: p["w2"], jnp.bfloat16), "b2": st(lambda p: p["b2"]),
        "g2": st(lambda p: p["g2"]), "be2": st(lambda p: p["be2"]),
    }


if __name__ == "__main__":
    root = jax.random.PRNGKey(0)
    k_emb, k_tok, *k_layers = jax.random.split(root, 2 + NUM_ENC)

    embed_table = jax.random.normal(k_emb, (VOCAB_SIZE, D_MODEL),
                                    jnp.float32) * 0.02
    pe = positional_encoding(MAX_LEN, D_MODEL)
    layer_params = [init_layer_params(k, D_MODEL, D_FF) for k in k_layers]
    stacked = stack_layer_params(layer_params, D_MODEL, NUM_HEAD)

    tokens = jax.random.randint(k_tok, (BATCH, SEQ), 0, VOCAB_SIZE)
    # Padding-style key mask (1 = keep); second sequence has 2 padded positions.
    lengths = jnp.array([SEQ, SEQ - 2])
    key_valid = (jnp.arange(SEQ)[None, :] < lengths[:, None]).astype(jnp.float32)
    mask = jnp.broadcast_to(key_valid[:, None, :], (BATCH, SEQ, SEQ))

    out = transformer_encoder_forward(tokens, mask, embed_table, pe, stacked,
                                      num_head=NUM_HEAD)
    out = jax.block_until_ready(out)
    assert out.shape == (BATCH, SEQ, D_MODEL)
    assert bool(jnp.all(jnp.isfinite(out)))
    print("KERNEL_OK")
</pallas_src>

<mosaic_0001>
module attributes {stable_mosaic.version = 11 : i64} {
  func.func @kernel(%arg0: memref<16x32xf32, #tpu.memory_space<vmem>>, %arg1: memref<16x16xf32, #tpu.memory_space<vmem>>, %arg2: memref<2x32x96xbf16, #tpu.memory_space<vmem>>, %arg3: memref<2x1x96xf32, #tpu.memory_space<vmem>>, %arg4: memref<2x32x32xf32, #tpu.memory_space<vmem>>, %arg5: memref<2x1x32xf32, #tpu.memory_space<vmem>>, %arg6: memref<2x1x32xf32, #tpu.memory_space<vmem>>, %arg7: memref<2x1x32xf32, #tpu.memory_space<vmem>>, %arg8: memref<2x32x64xbf16, #tpu.memory_space<vmem>>, %arg9: memref<2x1x64xf32, #tpu.memory_space<vmem>>, %arg10: memref<2x64x32xbf16, #tpu.memory_space<vmem>>, %arg11: memref<2x1x32xf32, #tpu.memory_space<vmem>>, %arg12: memref<2x1x32xf32, #tpu.memory_space<vmem>>, %arg13: memref<2x1x32xf32, #tpu.memory_space<vmem>>, %arg14: memref<16x32xf32, #tpu.memory_space<vmem>>) attributes {dimension_semantics = [], scalar_prefetch = 0 : i64, scratch_operands = 0 : i64, tpu.core_type = #tpu.core_type<tc>} {
    %c0 = arith.constant 0 : index
    %c0_0 = arith.constant 0 : index
    %0 = vector.load %arg0[%c0, %c0_0] : memref<16x32xf32, #tpu.memory_space<vmem>>, vector<16x32xf32>
    %c0_1 = arith.constant 0 : index
    %c0_2 = arith.constant 0 : index
    %1 = vector.load %arg1[%c0_1, %c0_2] : memref<16x16xf32, #tpu.memory_space<vmem>>, vector<16x16xf32>
    %2 = arith.truncf %0 : vector<16x32xf32> to vector<16x32xbf16>
    %c0_3 = arith.constant 0 : index
    %c0_4 = arith.constant 0 : index
    %c0_5 = arith.constant 0 : index
    %3 = vector.load %arg2[%c0_3, %c0_4, %c0_5] : memref<2x32x96xbf16, #tpu.memory_space<vmem>>, vector<1x32x96xbf16>
    %4 = vector.shape_cast %3 : vector<1x32x96xbf16> to vector<32x96xbf16>
    %cst = arith.constant dense<0.000000e+00> : vector<16x96xf32>
    %5 = tpu.matmul %2, %4, %cst {dimension_numbers = #tpu.dot_dimension_numbers<[1], [0], [0], [1], [0, 0, 1, 1], [], []>} : vector<16x32xbf16>, vector<32x96xbf16>, vector<16x96xf32> -> vector<16x96xf32>
    %c0_6 = arith.constant 0 : index
    %c0_7 = arith.constant 0 : index
    %c0_8 = arith.constant 0 : index
    %6 = vector.load %arg3[%c0_6, %c0_7, %c0_8] : memref<2x1x96xf32, #tpu.memory_space<vmem>>, vector<1x1x96xf32>
    %7 = vector.shape_cast %6 : vector<1x1x96xf32> to vector<1x96xf32>
    %8 = vector.broadcast %7 : vector<1x96xf32> to vector<16x96xf32>
    %9 = arith.addf %5, %8 : vector<16x96xf32>
    %10 = vector.extract_strided_slice %9 {offsets = [0, 0], sizes = [16, 32], strides = [1, 1]} : vector<16x96xf32> to vector<16x32xf32>
    %11 = vector.extract_strided_slice %9 {offsets = [0, 32], sizes = [16, 32], strides = [1, 1]} : vector<16x96xf32> to vector<16x32xf32>
    %12 = tpu.transpose %11, [1, 0] : vector<16x32xf32> -> vector<32x16xf32>
    %13 = vector.extract_strided_slice %9 {offsets = [0, 64], sizes = [16, 32], strides = [1, 1]} : vector<16x96xf32> to vector<16x32xf32>
    %c0_9 = arith.constant 0 : index
    %c0_10 = arith.constant 0 : index
    %c0_11 = arith.constant 0 : index
    %14 = vector.load %arg4[%c0_9, %c0_10, %c0_11] : memref<2x32x32xf32, #tpu.memory_space<vmem>>, vector<1x32x32xf32>
    %15 = vector.shape_cast %14 : vector<1x32x32xf32> to vector<32x32xf32>
    %cst_12 = arith.constant 0.000000e+00 : f32
    %16 = vector.broadcast %cst_12 : f32 to vector<16x32xf32>
    %17 = vector.extract_strided_slice %10 {offsets = [0, 0], sizes = [16, 8], strides = [1, 1]} : vector<16x32xf32> to vector<16x8xf32>
    %18 = vector.extract_strided_slice %12 {offsets = [0, 0], sizes = [8, 16], strides = [1, 1]} : vector<32x16xf32> to vector<8x16xf32>
    %cst_13 = arith.constant dense<0.000000e+00> : vector<16x16xf32>
    %19 = tpu.matmul %17, %18, %cst_13 {dimension_numbers = #tpu.dot_dimension_numbers<[1], [0], [0], [1], [0, 0, 1, 1], [], []>} : vector<16x8xf32>, vector<8x16xf32>, vector<16x16xf32> -> vector<16x16xf32>
    %20 = arith.addf %19, %1 : vector<16x16xf32>
    %cst_14 = arith.constant dense<0xFF800000> : vector<16xf32>
    %21 = vector.multi_reduction <maximumf>, %20, %cst_14 [1] : vector<16x16xf32> to vector<16xf32>
    %22 = vector.shape_cast %21 : vector<16xf32> to vector<16x1xf32>
    %23 = vector.broadcast %22 : vector<16x1xf32> to vector<16x16xf32>
    %24 = arith.subf %20, %23 : vector<16x16xf32>
    %25 = math.exp %24 : vector<16x16xf32>
    %cst_15 = arith.constant dense<0.000000e+00> : vector<16xf32>
    %26 = vector.multi_reduction <add>, %25, %cst_15 [1] : vector<16x16xf32> to vector<16xf32>
    %27 = vector.shape_cast %26 : vector<16xf32> to vector<16x1xf32>
    %28 = tpu.reciprocal %27 {approx = true} : vector<16x1xf32> -> vector<16x1xf32>
    %29 = vector.broadcast %28 : vector<16x1xf32> to vector<16x16xf32>
    %30 = arith.mulf %25, %29 : vector<16x16xf32>
    %31 = vector.extract_strided_slice %13 {offsets = [0, 0], sizes = [16, 8], strides = [1, 1]} : vector<16x32xf32> to vector<16x8xf32>
    %cst_16 = arith.constant dense<0.000000e+00> : vector<16x8xf32>
    %32 = tpu.matmul %30, %31, %cst_16 {dimension_numbers = #tpu.dot_dimension_numbers<[1], [0], [0], [1], [0, 0, 1, 1], [], []>} : vector<16x16xf32>, vector<16x8xf32>, vector<16x8xf32> -> vector<16x8xf32>
    %33 = vector.extract_strided_slice %15 {offsets = [0, 0], sizes = [8, 32], strides = [1, 1]} : vector<32x32xf32> to vector<8x32xf32>
    %cst_17 = arith.constant dense<0.000000e+00> : vector<16x32xf32>
    %34 = tpu.matmul %32, %33, %cst_17 {dimension_numbers = #tpu.dot_dimension_numbers<[1], [0], [0], [1], [0, 0, 1, 1], [], []>} : vector<16x8xf32>, vector<8x32xf32>, vector<16x32xf32> -> vector<16x32xf32>
    %35 = arith.addf %16, %34 : vector<16x32xf32>
    %36 = vector.extract_strided_slice %10 {offsets = [0, 8], sizes = [16, 8], strides = [1, 1]} : vector<16x32xf32> to vector<16x8xf32>
    %37 = vector.extract_strided_slice %12 {offsets = [8, 0], sizes = [8, 16], strides = [1, 1]} : vector<32x16xf32> to vector<8x16xf32>
    %cst_18 = arith.constant dense<0.000000e+00> : vector<16x16xf32>
    %38 = tpu.matmul %36, %37, %cst_18 {dimension_numbers = #tpu.dot_dimension_numbers<[1], [0], [0], [1], [0, 0, 1, 1], [], []>} : vector<16x8xf32>, vector<8x16xf32>, vector<16x16xf32> -> vector<16x16xf32>
    %39 = arith.addf %38, %1 : vector<16x16xf32>
    %cst_19 = arith.constant dense<0xFF800000> : vector<16xf32>
    %40 = vector.multi_reduction <maximumf>, %39, %cst_19 [1] : vector<16x16xf32> to vector<16xf32>
    %41 = vector.shape_cast %40 : vector<16xf32> to vector<16x1xf32>
    %42 = vector.broadcast %41 : vector<16x1xf32> to vector<16x16xf32>
    %43 = arith.subf %39, %42 : vector<16x16xf32>
    %44 = math.exp %43 : vector<16x16xf32>
    %cst_20 = arith.constant dense<0.000000e+00> : vector<16xf32>
    %45 = vector.multi_reduction <add>, %44, %cst_20 [1] : vector<16x16xf32> to vector<16xf32>
    %46 = vector.shape_cast %45 : vector<16xf32> to vector<16x1xf32>
    %47 = tpu.reciprocal %46 {approx = true} : vector<16x1xf32> -> vector<16x1xf32>
    %48 = vector.broadcast %47 : vector<16x1xf32> to vector<16x16xf32>
    %49 = arith.mulf %44, %48 : vector<16x16xf32>
    %50 = vector.extract_strided_slice %13 {offsets = [0, 8], sizes = [16, 8], strides = [1, 1]} : vector<16x32xf32> to vector<16x8xf32>
    %cst_21 = arith.constant dense<0.000000e+00> : vector<16x8xf32>
    %51 = tpu.matmul %49, %50, %cst_21 {dimension_numbers = #tpu.dot_dimension_numbers<[1], [0], [0], [1], [0, 0, 1, 1], [], []>} : vector<16x16xf32>, vector<16x8xf32>, vector<16x8xf32> -> vector<16x8xf32>
    %52 = vector.extract_strided_slice %15 {offsets = [8, 0], sizes = [8, 32], strides = [1, 1]} : vector<32x32xf32> to vector<8x32xf32>
    %cst_22 = arith.constant dense<0.000000e+00> : vector<16x32xf32>
    %53 = tpu.matmul %51, %52, %cst_22 {dimension_numbers = #tpu.dot_dimension_numbers<[1], [0], [0], [1], [0, 0, 1, 1], [], []>} : vector<16x8xf32>, vector<8x32xf32>, vector<16x32xf32> -> vector<16x32xf32>
    %54 = arith.addf %35, %53 : vector<16x32xf32>
    %55 = vector.extract_strided_slice %10 {offsets = [0, 16], sizes = [16, 8], strides = [1, 1]} : vector<16x32xf32> to vector<16x8xf32>
    %56 = vector.extract_strided_slice %12 {offsets = [16, 0], sizes = [8, 16], strides = [1, 1]} : vector<32x16xf32> to vector<8x16xf32>
    %cst_23 = arith.constant dense<0.000000e+00> : vector<16x16xf32>
    %57 = tpu.matmul %55, %56, %cst_23 {dimension_numbers = #tpu.dot_dimension_numbers<[1], [0], [0], [1], [0, 0, 1, 1], [], []>} : vector<16x8xf32>, vector<8x16xf32>, vector<16x16xf32> -> vector<16x16xf32>
    %58 = arith.addf %57, %1 : vector<16x16xf32>
    %cst_24 = arith.constant dense<0xFF800000> : vector<16xf32>
    %59 = vector.multi_reduction <maximumf>, %58, %cst_24 [1] : vector<16x16xf32> to vector<16xf32>
    %60 = vector.shape_cast %59 : vector<16xf32> to vector<16x1xf32>
    %61 = vector.broadcast %60 : vector<16x1xf32> to vector<16x16xf32>
    %62 = arith.subf %58, %61 : vector<16x16xf32>
    %63 = math.exp %62 : vector<16x16xf32>
    %cst_25 = arith.constant dense<0.000000e+00> : vector<16xf32>
    %64 = vector.multi_reduction <add>, %63, %cst_25 [1] : vector<16x16xf32> to vector<16xf32>
    %65 = vector.shape_cast %64 : vector<16xf32> to vector<16x1xf32>
    %66 = tpu.reciprocal %65 {approx = true} : vector<16x1xf32> -> vector<16x1xf32>
    %67 = vector.broadcast %66 : vector<16x1xf32> to vector<16x16xf32>
    %68 = arith.mulf %63, %67 : vector<16x16xf32>
    %69 = vector.extract_strided_slice %13 {offsets = [0, 16], sizes = [16, 8], strides = [1, 1]} : vector<16x32xf32> to vector<16x8xf32>
    %cst_26 = arith.constant dense<0.000000e+00> : vector<16x8xf32>
    %70 = tpu.matmul %68, %69, %cst_26 {dimension_numbers = #tpu.dot_dimension_numbers<[1], [0], [0], [1], [0, 0, 1, 1], [], []>} : vector<16x16xf32>, vector<16x8xf32>, vector<16x8xf32> -> vector<16x8xf32>
    %71 = vector.extract_strided_slice %15 {offsets = [16, 0], sizes = [8, 32], strides = [1, 1]} : vector<32x32xf32> to vector<8x32xf32>
    %cst_27 = arith.constant dense<0.000000e+00> : vector<16x32xf32>
    %72 = tpu.matmul %70, %71, %cst_27 {dimension_numbers = #tpu.dot_dimension_numbers<[1], [0], [0], [1], [0, 0, 1, 1], [], []>} : vector<16x8xf32>, vector<8x32xf32>, vector<16x32xf32> -> vector<16x32xf32>
    %73 = arith.addf %54, %72 : vector<16x32xf32>
    %74 = vector.extract_strided_slice %10 {offsets = [0, 24], sizes = [16, 8], strides = [1, 1]} : vector<16x32xf32> to vector<16x8xf32>
    %75 = vector.extract_strided_slice %12 {offsets = [24, 0], sizes = [8, 16], strides = [1, 1]} : vector<32x16xf32> to vector<8x16xf32>
    %cst_28 = arith.constant dense<0.000000e+00> : vector<16x16xf32>
    %76 = tpu.matmul %74, %75, %cst_28 {dimension_numbers = #tpu.dot_dimension_numbers<[1], [0], [0], [1], [0, 0, 1, 1], [], []>} : vector<16x8xf32>, vector<8x16xf32>, vector<16x16xf32> -> vector<16x16xf32>
    %77 = arith.addf %76, %1 : vector<16x16xf32>
    %cst_29 = arith.constant dense<0xFF800000> : vector<16xf32>
    %78 = vector.multi_reduction <maximumf>, %77, %cst_29 [1] : vector<16x16xf32> to vector<16xf32>
    %79 = vector.shape_cast %78 : vector<16xf32> to vector<16x1xf32>
    %80 = vector.broadcast %79 : vector<16x1xf32> to vector<16x16xf32>
    %81 = arith.subf %77, %80 : vector<16x16xf32>
    %82 = math.exp %81 : vector<16x16xf32>
    %cst_30 = arith.constant dense<0.000000e+00> : vector<16xf32>
    %83 = vector.multi_reduction <add>, %82, %cst_30 [1] : vector<16x16xf32> to vector<16xf32>
    %84 = vector.shape_cast %83 : vector<16xf32> to vector<16x1xf32>
    %85 = tpu.reciprocal %84 {approx = true} : vector<16x1xf32> -> vector<16x1xf32>
    %86 = vector.broadcast %85 : vector<16x1xf32> to vector<16x16xf32>
    %87 = arith.mulf %82, %86 : vector<16x16xf32>
    %88 = vector.extract_strided_slice %13 {offsets = [0, 24], sizes = [16, 8], strides = [1, 1]} : vector<16x32xf32> to vector<16x8xf32>
    %cst_31 = arith.constant dense<0.000000e+00> : vector<16x8xf32>
    %89 = tpu.matmul %87, %88, %cst_31 {dimension_numbers = #tpu.dot_dimension_numbers<[1], [0], [0], [1], [0, 0, 1, 1], [], []>} : vector<16x16xf32>, vector<16x8xf32>, vector<16x8xf32> -> vector<16x8xf32>
    %90 = vector.extract_strided_slice %15 {offsets = [24, 0], sizes = [8, 32], strides = [1, 1]} : vector<32x32xf32> to vector<8x32xf32>
    %cst_32 = arith.constant dense<0.000000e+00> : vector<16x32xf32>
    %91 = tpu.matmul %89, %90, %cst_32 {dimension_numbers = #tpu.dot_dimension_numbers<[1], [0], [0], [1], [0, 0, 1, 1], [], []>} : vector<16x8xf32>, vector<8x32xf32>, vector<16x32xf32> -> vector<16x32xf32>
    %92 = arith.addf %73, %91 : vector<16x32xf32>
    %c0_33 = arith.constant 0 : index
    %c0_34 = arith.constant 0 : index
    %c0_35 = arith.constant 0 : index
    %93 = vector.load %arg5[%c0_33, %c0_34, %c0_35] : memref<2x1x32xf32, #tpu.memory_space<vmem>>, vector<1x1x32xf32>
    %94 = vector.shape_cast %93 : vector<1x1x32xf32> to vector<1x32xf32>
    %95 = vector.broadcast %94 : vector<1x32xf32> to vector<16x32xf32>
    %96 = arith.addf %92, %95 : vector<16x32xf32>
    %97 = arith.addf %0, %96 : vector<16x32xf32>
    %c0_36 = arith.constant 0 : index
    %c0_37 = arith.constant 0 : index
    %c0_38 = arith.constant 0 : index
    %98 = vector.load %arg6[%c0_36, %c0_37, %c0_38] : memref<2x1x32xf32, #tpu.memory_space<vmem>>, vector<1x1x32xf32>
    %99 = vector.shape_cast %98 : vector<1x1x32xf32> to vector<1x32xf32>
    %c0_39 = arith.constant 0 : index
    %c0_40 = arith.constant 0 : index
    %c0_41 = arith.constant 0 : index
    %100 = vector.load %arg7[%c0_39, %c0_40, %c0_41] : memref<2x1x32xf32, #tpu.memory_space<vmem>>, vector<1x1x32xf32>
    %101 = vector.shape_cast %100 : vector<1x1x32xf32> to vector<1x32xf32>
    %cst_42 = arith.constant dense<0.000000e+00> : vector<16xf32>
    %102 = vector.multi_reduction <add>, %97, %cst_42 [1] : vector<16x32xf32> to vector<16xf32>
    %103 = vector.shape_cast %102 : vector<16xf32> to vector<16x1xf32>
    %cst_43 = arith.constant 3.200000e+01 : f32
    %104 = vector.broadcast %cst_43 : f32 to vector<16x1xf32>
    %105 = arith.divf %103, %104 : vector<16x1xf32>
    %106 = vector.broadcast %105 : vector<16x1xf32> to vector<16x32xf32>
    %107 = arith.subf %97, %106 : vector<16x32xf32>
    %108 = vector.broadcast %105 : vector<16x1xf32> to vector<16x32xf32>
    %109 = arith.subf %97, %108 : vector<16x32xf32>
    %110 = arith.mulf %107, %109 : vector<16x32xf32>
    %cst_44 = arith.constant dense<0.000000e+00> : vector<16xf32>
    %111 = vector.multi_reduction <add>, %110, %cst_44 [1] : vector<16x32xf32> to vector<16xf32>
    %112 = vector.shape_cast %111 : vector<16xf32> to vector<16x1xf32>
    %cst_45 = arith.constant 3.200000e+01 : f32
    %113 = vector.broadcast %cst_45 : f32 to vector<16x1xf32>
    %114 = arith.divf %112, %113 : vector<16x1xf32>
    %115 = vector.broadcast %105 : vector<16x1xf32> to vector<16x32xf32>
    %116 = arith.subf %97, %115 : vector<16x32xf32>
    %cst_46 = arith.constant 9.99999974E-6 : f32
    %117 = vector.broadcast %cst_46 : f32 to vector<16x1xf32>
    %118 = arith.addf %114, %117 : vector<16x1xf32>
    %119 = math.rsqrt %118 : vector<16x1xf32>
    %120 = vector.broadcast %119 : vector<16x1xf32> to vector<16x32xf32>
    %121 = arith.mulf %116, %120 : vector<16x32xf32>
    %122 = vector.broadcast %99 : vector<1x32xf32> to vector<16x32xf32>
    %123 = arith.mulf %121, %122 : vector<16x32xf32>
    %124 = vector.broadcast %101 : vector<1x32xf32> to vector<16x32xf32>
    %125 = arith.addf %123, %124 : vector<16x32xf32>
    %126 = arith.truncf %125 : vector<16x32xf32> to vector<16x32xbf16>
    %c0_47 = arith.constant 0 : index
    %c0_48 = arith.constant 0 : index
    %c0_49 = arith.constant 0 : index
    %127 = vector.load %arg8[%c0_47, %c0_48, %c0_49] : memref<2x32x64xbf16, #tpu.memory_space<vmem>>, vector<1x32x64xbf16>
    %128 = vector.shape_cast %127 : vector<1x32x64xbf16> to vector<32x64xbf16>
    %cst_50 = arith.constant dense<0.000000e+00> : vector<16x64xf32>
    %129 = tpu.matmul %126, %128, %cst_50 {dimension_numbers = #tpu.dot_dimension_numbers<[1], [0], [0], [1], [0, 0, 1, 1], [], []>} : vector<16x32xbf16>, vector<32x64xbf16>, vector<16x64xf32> -> vector<16x64xf32>
    %c0_51 = arith.constant 0 : index
    %c0_52 = arith.constant 0 : index
    %c0_53 = arith.constant 0 : index
    %130 = vector.load %arg9[%c0_51, %c0_52, %c0_53] : memref<2x1x64xf32, #tpu.memory_space<vmem>>, vector<1x1x64xf32>
    %131 = vector.shape_cast %130 : vector<1x1x64xf32> to vector<1x64xf32>
    %132 = vector.broadcast %131 : vector<1x64xf32> to vector<16x64xf32>
    %133 = arith.addf %129, %132 : vector<16x64xf32>
    %cst_54 = arith.constant 0.000000e+00 : f32
    %134 = vector.broadcast %cst_54 : f32 to vector<16x64xf32>
    %135 = arith.maximumf %133, %134 : vector<16x64xf32>
    %136 = arith.truncf %135 : vector<16x64xf32> to vector<16x64xbf16>
    %c0_55 = arith.constant 0 : index
    %c0_56 = arith.constant 0 : index
    %c0_57 = arith.constant 0 : index
    %137 = vector.load %arg10[%c0_55, %c0_56, %c0_57] : memref<2x64x32xbf16, #tpu.memory_space<vmem>>, vector<1x64x32xbf16>
    %138 = vector.shape_cast %137 : vector<1x64x32xbf16> to vector<64x32xbf16>
    %cst_58 = arith.constant dense<0.000000e+00> : vector<16x32xf32>
    %139 = tpu.matmul %136, %138, %cst_58 {dimension_numbers = #tpu.dot_dimension_numbers<[1], [0], [0], [1], [0, 0, 1, 1], [], []>} : vector<16x64xbf16>, vector<64x32xbf16>, vector<16x32xf32> -> vector<16x32xf32>
    %c0_59 = arith.constant 0 : index
    %c0_60 = arith.constant 0 : index
    %c0_61 = arith.constant 0 : index
    %140 = vector.load %arg11[%c0_59, %c0_60, %c0_61] : memref<2x1x32xf32, #tpu.memory_space<vmem>>, vector<1x1x32xf32>
    %141 = vector.shape_cast %140 : vector<1x1x32xf32> to vector<1x32xf32>
    %142 = vector.broadcast %141 : vector<1x32xf32> to vector<16x32xf32>
    %143 = arith.addf %139, %142 : vector<16x32xf32>
    %144 = arith.addf %125, %143 : vector<16x32xf32>
    %c0_62 = arith.constant 0 : index
    %c0_63 = arith.constant 0 : index
    %c0_64 = arith.constant 0 : index
    %145 = vector.load %arg12[%c0_62, %c0_63, %c0_64] : memref<2x1x32xf32, #tpu.memory_space<vmem>>, vector<1x1x32xf32>
    %146 = vector.shape_cast %145 : vector<1x1x32xf32> to vector<1x32xf32>
    %c0_65 = arith.constant 0 : index
    %c0_66 = arith.constant 0 : index
    %c0_67 = arith.constant 0 : index
    %147 = vector.load %arg13[%c0_65, %c0_66, %c0_67] : memref<2x1x32xf32, #tpu.memory_space<vmem>>, vector<1x1x32xf32>
    %148 = vector.shape_cast %147 : vector<1x1x32xf32> to vector<1x32xf32>
    %cst_68 = arith.constant dense<0.000000e+00> : vector<16xf32>
    %149 = vector.multi_reduction <add>, %144, %cst_68 [1] : vector<16x32xf32> to vector<16xf32>
    %150 = vector.shape_cast %149 : vector<16xf32> to vector<16x1xf32>
    %cst_69 = arith.constant 3.200000e+01 : f32
    %151 = vector.broadcast %cst_69 : f32 to vector<16x1xf32>
    %152 = arith.divf %150, %151 : vector<16x1xf32>
    %153 = vector.broadcast %152 : vector<16x1xf32> to vector<16x32xf32>
    %154 = arith.subf %144, %153 : vector<16x32xf32>
    %155 = vector.broadcast %152 : vector<16x1xf32> to vector<16x32xf32>
    %156 = arith.subf %144, %155 : vector<16x32xf32>
    %157 = arith.mulf %154, %156 : vector<16x32xf32>
    %cst_70 = arith.constant dense<0.000000e+00> : vector<16xf32>
    %158 = vector.multi_reduction <add>, %157, %cst_70 [1] : vector<16x32xf32> to vector<16xf32>
    %159 = vector.shape_cast %158 : vector<16xf32> to vector<16x1xf32>
    %cst_71 = arith.constant 3.200000e+01 : f32
    %160 = vector.broadcast %cst_71 : f32 to vector<16x1xf32>
    %161 = arith.divf %159, %160 : vector<16x1xf32>
    %162 = vector.broadcast %152 : vector<16x1xf32> to vector<16x32xf32>
    %163 = arith.subf %144, %162 : vector<16x32xf32>
    %cst_72 = arith.constant 9.99999974E-6 : f32
    %164 = vector.broadcast %cst_72 : f32 to vector<16x1xf32>
    %165 = arith.addf %161, %164 : vector<16x1xf32>
    %166 = math.rsqrt %165 : vector<16x1xf32>
    %167 = vector.broadcast %166 : vector<16x1xf32> to vector<16x32xf32>
    %168 = arith.mulf %163, %167 : vector<16x32xf32>
    %169 = vector.broadcast %146 : vector<1x32xf32> to vector<16x32xf32>
    %170 = arith.mulf %168, %169 : vector<16x32xf32>
    %171 = vector.broadcast %148 : vector<1x32xf32> to vector<16x32xf32>
    %172 = arith.addf %170, %171 : vector<16x32xf32>
    %173 = arith.truncf %172 : vector<16x32xf32> to vector<16x32xbf16>
    %c1 = arith.constant 1 : index
    %c0_73 = arith.constant 0 : index
    %c0_74 = arith.constant 0 : index
    %174 = vector.load %arg2[%c1, %c0_73, %c0_74] : memref<2x32x96xbf16, #tpu.memory_space<vmem>>, vector<1x32x96xbf16>
    %175 = vector.shape_cast %174 : vector<1x32x96xbf16> to vector<32x96xbf16>
    %cst_75 = arith.constant dense<0.000000e+00> : vector<16x96xf32>
    %176 = tpu.matmul %173, %175, %cst_75 {dimension_numbers = #tpu.dot_dimension_numbers<[1], [0], [0], [1], [0, 0, 1, 1], [], []>} : vector<16x32xbf16>, vector<32x96xbf16>, vector<16x96xf32> -> vector<16x96xf32>
    %c1_76 = arith.constant 1 : index
    %c0_77 = arith.constant 0 : index
    %c0_78 = arith.constant 0 : index
    %177 = vector.load %arg3[%c1_76, %c0_77, %c0_78] : memref<2x1x96xf32, #tpu.memory_space<vmem>>, vector<1x1x96xf32>
    %178 = vector.shape_cast %177 : vector<1x1x96xf32> to vector<1x96xf32>
    %179 = vector.broadcast %178 : vector<1x96xf32> to vector<16x96xf32>
    %180 = arith.addf %176, %179 : vector<16x96xf32>
    %181 = vector.extract_strided_slice %180 {offsets = [0, 0], sizes = [16, 32], strides = [1, 1]} : vector<16x96xf32> to vector<16x32xf32>
    %182 = vector.extract_strided_slice %180 {offsets = [0, 32], sizes = [16, 32], strides = [1, 1]} : vector<16x96xf32> to vector<16x32xf32>
    %183 = tpu.transpose %182, [1, 0] : vector<16x32xf32> -> vector<32x16xf32>
    %184 = vector.extract_strided_slice %180 {offsets = [0, 64], sizes = [16, 32], strides = [1, 1]} : vector<16x96xf32> to vector<16x32xf32>
    %c1_79 = arith.constant 1 : index
    %c0_80 = arith.constant 0 : index
    %c0_81 = arith.constant 0 : index
    %185 = vector.load %arg4[%c1_79, %c0_80, %c0_81] : memref<2x32x32xf32, #tpu.memory_space<vmem>>, vector<1x32x32xf32>
    %186 = vector.shape_cast %185 : vector<1x32x32xf32> to vector<32x32xf32>
    %cst_82 = arith.constant 0.000000e+00 : f32
    %187 = vector.broadcast %cst_82 : f32 to vector<16x32xf32>
    %188 = vector.extract_strided_slice %181 {offsets = [0, 0], sizes = [16, 8], strides = [1, 1]} : vector<16x32xf32> to vector<16x8xf32>
    %189 = vector.extract_strided_slice %183 {offsets = [0, 0], sizes = [8, 16], strides = [1, 1]} : vector<32x16xf32> to vector<8x16xf32>
    %cst_83 = arith.constant dense<0.000000e+00> : vector<16x16xf32>
    %190 = tpu.matmul %188, %189, %cst_83 {dimension_numbers = #tpu.dot_dimension_numbers<[1], [0], [0], [1], [0, 0, 1, 1], [], []>} : vector<16x8xf32>, vector<8x16xf32>, vector<16x16xf32> -> vector<16x16xf32>
    %191 = arith.addf %190, %1 : vector<16x16xf32>
    %cst_84 = arith.constant dense<0xFF800000> : vector<16xf32>
    %192 = vector.multi_reduction <maximumf>, %191, %cst_84 [1] : vector<16x16xf32> to vector<16xf32>
    %193 = vector.shape_cast %192 : vector<16xf32> to vector<16x1xf32>
    %194 = vector.broadcast %193 : vector<16x1xf32> to vector<16x16xf32>
    %195 = arith.subf %191, %194 : vector<16x16xf32>
    %196 = math.exp %195 : vector<16x16xf32>
    %cst_85 = arith.constant dense<0.000000e+00> : vector<16xf32>
    %197 = vector.multi_reduction <add>, %196, %cst_85 [1] : vector<16x16xf32> to vector<16xf32>
    %198 = vector.shape_cast %197 : vector<16xf32> to vector<16x1xf32>
    %199 = tpu.reciprocal %198 {approx = true} : vector<16x1xf32> -> vector<16x1xf32>
    %200 = vector.broadcast %199 : vector<16x1xf32> to vector<16x16xf32>
    %201 = arith.mulf %196, %200 : vector<16x16xf32>
    %202 = vector.extract_strided_slice %184 {offsets = [0, 0], sizes = [16, 8], strides = [1, 1]} : vector<16x32xf32> to vector<16x8xf32>
    %cst_86 = arith.constant dense<0.000000e+00> : vector<16x8xf32>
    %203 = tpu.matmul %201, %202, %cst_86 {dimension_numbers = #tpu.dot_dimension_numbers<[1], [0], [0], [1], [0, 0, 1, 1], [], []>} : vector<16x16xf32>, vector<16x8xf32>, vector<16x8xf32> -> vector<16x8xf32>
    %204 = vector.extract_strided_slice %186 {offsets = [0, 0], sizes = [8, 32], strides = [1, 1]} : vector<32x32xf32> to vector<8x32xf32>
    %cst_87 = arith.constant dense<0.000000e+00> : vector<16x32xf32>
    %205 = tpu.matmul %203, %204, %cst_87 {dimension_numbers = #tpu.dot_dimension_numbers<[1], [0], [0], [1], [0, 0, 1, 1], [], []>} : vector<16x8xf32>, vector<8x32xf32>, vector<16x32xf32> -> vector<16x32xf32>
    %206 = arith.addf %187, %205 : vector<16x32xf32>
    %207 = vector.extract_strided_slice %181 {offsets = [0, 8], sizes = [16, 8], strides = [1, 1]} : vector<16x32xf32> to vector<16x8xf32>
    %208 = vector.extract_strided_slice %183 {offsets = [8, 0], sizes = [8, 16], strides = [1, 1]} : vector<32x16xf32> to vector<8x16xf32>
    %cst_88 = arith.constant dense<0.000000e+00> : vector<16x16xf32>
    %209 = tpu.matmul %207, %208, %cst_88 {dimension_numbers = #tpu.dot_dimension_numbers<[1], [0], [0], [1], [0, 0, 1, 1], [], []>} : vector<16x8xf32>, vector<8x16xf32>, vector<16x16xf32> -> vector<16x16xf32>
    %210 = arith.addf %209, %1 : vector<16x16xf32>
    %cst_89 = arith.constant dense<0xFF800000> : vector<16xf32>
    %211 = vector.multi_reduction <maximumf>, %210, %cst_89 [1] : vector<16x16xf32> to vector<16xf32>
    %212 = vector.shape_cast %211 : vector<16xf32> to vector<16x1xf32>
    %213 = vector.broadcast %212 : vector<16x1xf32> to vector<16x16xf32>
    %214 = arith.subf %210, %213 : vector<16x16xf32>
    %215 = math.exp %214 : vector<16x16xf32>
    %cst_90 = arith.constant dense<0.000000e+00> : vector<16xf32>
    %216 = vector.multi_reduction <add>, %215, %cst_90 [1] : vector<16x16xf32> to vector<16xf32>
    %217 = vector.shape_cast %216 : vector<16xf32> to vector<16x1xf32>
    %218 = tpu.reciprocal %217 {approx = true} : vector<16x1xf32> -> vector<16x1xf32>
    %219 = vector.broadcast %218 : vector<16x1xf32> to vector<16x16xf32>
    %220 = arith.mulf %215, %219 : vector<16x16xf32>
    %221 = vector.extract_strided_slice %184 {offsets = [0, 8], sizes = [16, 8], strides = [1, 1]} : vector<16x32xf32> to vector<16x8xf32>
    %cst_91 = arith.constant dense<0.000000e+00> : vector<16x8xf32>
    %222 = tpu.matmul %220, %221, %cst_91 {dimension_numbers = #tpu.dot_dimension_numbers<[1], [0], [0], [1], [0, 0, 1, 1], [], []>} : vector<16x16xf32>, vector<16x8xf32>, vector<16x8xf32> -> vector<16x8xf32>
    %223 = vector.extract_strided_slice %186 {offsets = [8, 0], sizes = [8, 32], strides = [1, 1]} : vector<32x32xf32> to vector<8x32xf32>
    %cst_92 = arith.constant dense<0.000000e+00> : vector<16x32xf32>
    %224 = tpu.matmul %222, %223, %cst_92 {dimension_numbers = #tpu.dot_dimension_numbers<[1], [0], [0], [1], [0, 0, 1, 1], [], []>} : vector<16x8xf32>, vector<8x32xf32>, vector<16x32xf32> -> vector<16x32xf32>
    %225 = arith.addf %206, %224 : vector<16x32xf32>
    %226 = vector.extract_strided_slice %181 {offsets = [0, 16], sizes = [16, 8], strides = [1, 1]} : vector<16x32xf32> to vector<16x8xf32>
    %227 = vector.extract_strided_slice %183 {offsets = [16, 0], sizes = [8, 16], strides = [1, 1]} : vector<32x16xf32> to vector<8x16xf32>
    %cst_93 = arith.constant dense<0.000000e+00> : vector<16x16xf32>
    %228 = tpu.matmul %226, %227, %cst_93 {dimension_numbers = #tpu.dot_dimension_numbers<[1], [0], [0], [1], [0, 0, 1, 1], [], []>} : vector<16x8xf32>, vector<8x16xf32>, vector<16x16xf32> -> vector<16x16xf32>
    %229 = arith.addf %228, %1 : vector<16x16xf32>
    %cst_94 = arith.constant dense<0xFF800000> : vector<16xf32>
    %230 = vector.multi_reduction <maximumf>, %229, %cst_94 [1] : vector<16x16xf32> to vector<16xf32>
    %231 = vector.shape_cast %230 : vector<16xf32> to vector<16x1xf32>
    %232 = vector.broadcast %231 : vector<16x1xf32> to vector<16x16xf32>
    %233 = arith.subf %229, %232 : vector<16x16xf32>
    %234 = math.exp %233 : vector<16x16xf32>
    %cst_95 = arith.constant dense<0.000000e+00> : vector<16xf32>
    %235 = vector.multi_reduction <add>, %234, %cst_95 [1] : vector<16x16xf32> to vector<16xf32>
    %236 = vector.shape_cast %235 : vector<16xf32> to vector<16x1xf32>
    %237 = tpu.reciprocal %236 {approx = true} : vector<16x1xf32> -> vector<16x1xf32>
    %238 = vector.broadcast %237 : vector<16x1xf32> to vector<16x16xf32>
    %239 = arith.mulf %234, %238 : vector<16x16xf32>
    %240 = vector.extract_strided_slice %184 {offsets = [0, 16], sizes = [16, 8], strides = [1, 1]} : vector<16x32xf32> to vector<16x8xf32>
    %cst_96 = arith.constant dense<0.000000e+00> : vector<16x8xf32>
    %241 = tpu.matmul %239, %240, %cst_96 {dimension_numbers = #tpu.dot_dimension_numbers<[1], [0], [0], [1], [0, 0, 1, 1], [], []>} : vector<16x16xf32>, vector<16x8xf32>, vector<16x8xf32> -> vector<16x8xf32>
    %242 = vector.extract_strided_slice %186 {offsets = [16, 0], sizes = [8, 32], strides = [1, 1]} : vector<32x32xf32> to vector<8x32xf32>
    %cst_97 = arith.constant dense<0.000000e+00> : vector<16x32xf32>
    %243 = tpu.matmul %241, %242, %cst_97 {dimension_numbers = #tpu.dot_dimension_numbers<[1], [0], [0], [1], [0, 0, 1, 1], [], []>} : vector<16x8xf32>, vector<8x32xf32>, vector<16x32xf32> -> vector<16x32xf32>
    %244 = arith.addf %225, %243 : vector<16x32xf32>
    %245 = vector.extract_strided_slice %181 {offsets = [0, 24], sizes = [16, 8], strides = [1, 1]} : vector<16x32xf32> to vector<16x8xf32>
    %246 = vector.extract_strided_slice %183 {offsets = [24, 0], sizes = [8, 16], strides = [1, 1]} : vector<32x16xf32> to vector<8x16xf32>
    %cst_98 = arith.constant dense<0.000000e+00> : vector<16x16xf32>
    %247 = tpu.matmul %245, %246, %cst_98 {dimension_numbers = #tpu.dot_dimension_numbers<[1], [0], [0], [1], [0, 0, 1, 1], [], []>} : vector<16x8xf32>, vector<8x16xf32>, vector<16x16xf32> -> vector<16x16xf32>
    %248 = arith.addf %247, %1 : vector<16x16xf32>
    %cst_99 = arith.constant dense<0xFF800000> : vector<16xf32>
    %249 = vector.multi_reduction <maximumf>, %248, %cst_99 [1] : vector<16x16xf32> to vector<16xf32>
    %250 = vector.shape_cast %249 : vector<16xf32> to vector<16x1xf32>
    %251 = vector.broadcast %250 : vector<16x1xf32> to vector<16x16xf32>
    %252 = arith.subf %248, %251 : vector<16x16xf32>
    %253 = math.exp %252 : vector<16x16xf32>
    %cst_100 = arith.constant dense<0.000000e+00> : vector<16xf32>
    %254 = vector.multi_reduction <add>, %253, %cst_100 [1] : vector<16x16xf32> to vector<16xf32>
    %255 = vector.shape_cast %254 : vector<16xf32> to vector<16x1xf32>
    %256 = tpu.reciprocal %255 {approx = true} : vector<16x1xf32> -> vector<16x1xf32>
    %257 = vector.broadcast %256 : vector<16x1xf32> to vector<16x16xf32>
    %258 = arith.mulf %253, %257 : vector<16x16xf32>
    %259 = vector.extract_strided_slice %184 {offsets = [0, 24], sizes = [16, 8], strides = [1, 1]} : vector<16x32xf32> to vector<16x8xf32>
    %cst_101 = arith.constant dense<0.000000e+00> : vector<16x8xf32>
    %260 = tpu.matmul %258, %259, %cst_101 {dimension_numbers = #tpu.dot_dimension_numbers<[1], [0], [0], [1], [0, 0, 1, 1], [], []>} : vector<16x16xf32>, vector<16x8xf32>, vector<16x8xf32> -> vector<16x8xf32>
    %261 = vector.extract_strided_slice %186 {offsets = [24, 0], sizes = [8, 32], strides = [1, 1]} : vector<32x32xf32> to vector<8x32xf32>
    %cst_102 = arith.constant dense<0.000000e+00> : vector<16x32xf32>
    %262 = tpu.matmul %260, %261, %cst_102 {dimension_numbers = #tpu.dot_dimension_numbers<[1], [0], [0], [1], [0, 0, 1, 1], [], []>} : vector<16x8xf32>, vector<8x32xf32>, vector<16x32xf32> -> vector<16x32xf32>
    %263 = arith.addf %244, %262 : vector<16x32xf32>
    %c1_103 = arith.constant 1 : index
    %c0_104 = arith.constant 0 : index
    %c0_105 = arith.constant 0 : index
    %264 = vector.load %arg5[%c1_103, %c0_104, %c0_105] : memref<2x1x32xf32, #tpu.memory_space<vmem>>, vector<1x1x32xf32>
    %265 = vector.shape_cast %264 : vector<1x1x32xf32> to vector<1x32xf32>
    %266 = vector.broadcast %265 : vector<1x32xf32> to vector<16x32xf32>
    %267 = arith.addf %263, %266 : vector<16x32xf32>
    %268 = arith.addf %172, %267 : vector<16x32xf32>
    %c1_106 = arith.constant 1 : index
    %c0_107 = arith.constant 0 : index
    %c0_108 = arith.constant 0 : index
    %269 = vector.load %arg6[%c1_106, %c0_107, %c0_108] : memref<2x1x32xf32, #tpu.memory_space<vmem>>, vector<1x1x32xf32>
    %270 = vector.shape_cast %269 : vector<1x1x32xf32> to vector<1x32xf32>
    %c1_109 = arith.constant 1 : index
    %c0_110 = arith.constant 0 : index
    %c0_111 = arith.constant 0 : index
    %271 = vector.load %arg7[%c1_109, %c0_110, %c0_111] : memref<2x1x32xf32, #tpu.memory_space<vmem>>, vector<1x1x32xf32>
    %272 = vector.shape_cast %271 : vector<1x1x32xf32> to vector<1x32xf32>
    %cst_112 = arith.constant dense<0.000000e+00> : vector<16xf32>
    %273 = vector.multi_reduction <add>, %268, %cst_112 [1] : vector<16x32xf32> to vector<16xf32>
    %274 = vector.shape_cast %273 : vector<16xf32> to vector<16x1xf32>
    %cst_113 = arith.constant 3.200000e+01 : f32
    %275 = vector.broadcast %cst_113 : f32 to vector<16x1xf32>
    %276 = arith.divf %274, %275 : vector<16x1xf32>
    %277 = vector.broadcast %276 : vector<16x1xf32> to vector<16x32xf32>
    %278 = arith.subf %268, %277 : vector<16x32xf32>
    %279 = vector.broadcast %276 : vector<16x1xf32> to vector<16x32xf32>
    %280 = arith.subf %268, %279 : vector<16x32xf32>
    %281 = arith.mulf %278, %280 : vector<16x32xf32>
    %cst_114 = arith.constant dense<0.000000e+00> : vector<16xf32>
    %282 = vector.multi_reduction <add>, %281, %cst_114 [1] : vector<16x32xf32> to vector<16xf32>
    %283 = vector.shape_cast %282 : vector<16xf32> to vector<16x1xf32>
    %cst_115 = arith.constant 3.200000e+01 : f32
    %284 = vector.broadcast %cst_115 : f32 to vector<16x1xf32>
    %285 = arith.divf %283, %284 : vector<16x1xf32>
    %286 = vector.broadcast %276 : vector<16x1xf32> to vector<16x32xf32>
    %287 = arith.subf %268, %286 : vector<16x32xf32>
    %cst_116 = arith.constant 9.99999974E-6 : f32
    %288 = vector.broadcast %cst_116 : f32 to vector<16x1xf32>
    %289 = arith.addf %285, %288 : vector<16x1xf32>
    %290 = math.rsqrt %289 : vector<16x1xf32>
    %291 = vector.broadcast %290 : vector<16x1xf32> to vector<16x32xf32>
    %292 = arith.mulf %287, %291 : vector<16x32xf32>
    %293 = vector.broadcast %270 : vector<1x32xf32> to vector<16x32xf32>
    %294 = arith.mulf %292, %293 : vector<16x32xf32>
    %295 = vector.broadcast %272 : vector<1x32xf32> to vector<16x32xf32>
    %296 = arith.addf %294, %295 : vector<16x32xf32>
    %297 = arith.truncf %296 : vector<16x32xf32> to vector<16x32xbf16>
    %c1_117 = arith.constant 1 : index
    %c0_118 = arith.constant 0 : index
    %c0_119 = arith.constant 0 : index
    %298 = vector.load %arg8[%c1_117, %c0_118, %c0_119] : memref<2x32x64xbf16, #tpu.memory_space<vmem>>, vector<1x32x64xbf16>
    %299 = vector.shape_cast %298 : vector<1x32x64xbf16> to vector<32x64xbf16>
    %cst_120 = arith.constant dense<0.000000e+00> : vector<16x64xf32>
    %300 = tpu.matmul %297, %299, %cst_120 {dimension_numbers = #tpu.dot_dimension_numbers<[1], [0], [0], [1], [0, 0, 1, 1], [], []>} : vector<16x32xbf16>, vector<32x64xbf16>, vector<16x64xf32> -> vector<16x64xf32>
    %c1_121 = arith.constant 1 : index
    %c0_122 = arith.constant 0 : index
    %c0_123 = arith.constant 0 : index
    %301 = vector.load %arg9[%c1_121, %c0_122, %c0_123] : memref<2x1x64xf32, #tpu.memory_space<vmem>>, vector<1x1x64xf32>
    %302 = vector.shape_cast %301 : vector<1x1x64xf32> to vector<1x64xf32>
    %303 = vector.broadcast %302 : vector<1x64xf32> to vector<16x64xf32>
    %304 = arith.addf %300, %303 : vector<16x64xf32>
    %cst_124 = arith.constant 0.000000e+00 : f32
    %305 = vector.broadcast %cst_124 : f32 to vector<16x64xf32>
    %306 = arith.maximumf %304, %305 : vector<16x64xf32>
    %307 = arith.truncf %306 : vector<16x64xf32> to vector<16x64xbf16>
    %c1_125 = arith.constant 1 : index
    %c0_126 = arith.constant 0 : index
    %c0_127 = arith.constant 0 : index
    %308 = vector.load %arg10[%c1_125, %c0_126, %c0_127] : memref<2x64x32xbf16, #tpu.memory_space<vmem>>, vector<1x64x32xbf16>
    %309 = vector.shape_cast %308 : vector<1x64x32xbf16> to vector<64x32xbf16>
    %cst_128 = arith.constant dense<0.000000e+00> : vector<16x32xf32>
    %310 = tpu.matmul %307, %309, %cst_128 {dimension_numbers = #tpu.dot_dimension_numbers<[1], [0], [0], [1], [0, 0, 1, 1], [], []>} : vector<16x64xbf16>, vector<64x32xbf16>, vector<16x32xf32> -> vector<16x32xf32>
    %c1_129 = arith.constant 1 : index
    %c0_130 = arith.constant 0 : index
    %c0_131 = arith.constant 0 : index
    %311 = vector.load %arg11[%c1_129, %c0_130, %c0_131] : memref<2x1x32xf32, #tpu.memory_space<vmem>>, vector<1x1x32xf32>
    %312 = vector.shape_cast %311 : vector<1x1x32xf32> to vector<1x32xf32>
    %313 = vector.broadcast %312 : vector<1x32xf32> to vector<16x32xf32>
    %314 = arith.addf %310, %313 : vector<16x32xf32>
    %315 = arith.addf %296, %314 : vector<16x32xf32>
    %c1_132 = arith.constant 1 : index
    %c0_133 = arith.constant 0 : index
    %c0_134 = arith.constant 0 : index
    %316 = vector.load %arg12[%c1_132, %c0_133, %c0_134] : memref<2x1x32xf32, #tpu.memory_space<vmem>>, vector<1x1x32xf32>
    %317 = vector.shape_cast %316 : vector<1x1x32xf32> to vector<1x32xf32>
    %c1_135 = arith.constant 1 : index
    %c0_136 = arith.constant 0 : index
    %c0_137 = arith.constant 0 : index
    %318 = vector.load %arg13[%c1_135, %c0_136, %c0_137] : memref<2x1x32xf32, #tpu.memory_space<vmem>>, vector<1x1x32xf32>
    %319 = vector.shape_cast %318 : vector<1x1x32xf32> to vector<1x32xf32>
    %cst_138 = arith.constant dense<0.000000e+00> : vector<16xf32>
    %320 = vector.multi_reduction <add>, %315, %cst_138 [1] : vector<16x32xf32> to vector<16xf32>
    %321 = vector.shape_cast %320 : vector<16xf32> to vector<16x1xf32>
    %cst_139 = arith.constant 3.200000e+01 : f32
    %322 = vector.broadcast %cst_139 : f32 to vector<16x1xf32>
    %323 = arith.divf %321, %322 : vector<16x1xf32>
    %324 = vector.broadcast %323 : vector<16x1xf32> to vector<16x32xf32>
    %325 = arith.subf %315, %324 : vector<16x32xf32>
    %326 = vector.broadcast %323 : vector<16x1xf32> to vector<16x32xf32>
    %327 = arith.subf %315, %326 : vector<16x32xf32>
    %328 = arith.mulf %325, %327 : vector<16x32xf32>
    %cst_140 = arith.constant dense<0.000000e+00> : vector<16xf32>
    %329 = vector.multi_reduction <add>, %328, %cst_140 [1] : vector<16x32xf32> to vector<16xf32>
    %330 = vector.shape_cast %329 : vector<16xf32> to vector<16x1xf32>
    %cst_141 = arith.constant 3.200000e+01 : f32
    %331 = vector.broadcast %cst_141 : f32 to vector<16x1xf32>
    %332 = arith.divf %330, %331 : vector<16x1xf32>
    %333 = vector.broadcast %323 : vector<16x1xf32> to vector<16x32xf32>
    %334 = arith.subf %315, %333 : vector<16x32xf32>
    %cst_142 = arith.constant 9.99999974E-6 : f32
    %335 = vector.broadcast %cst_142 : f32 to vector<16x1xf32>
    %336 = arith.addf %332, %335 : vector<16x1xf32>
    %337 = math.rsqrt %336 : vector<16x1xf32>
    %338 = vector.broadcast %337 : vector<16x1xf32> to vector<16x32xf32>
    %339 = arith.mulf %334, %338 : vector<16x32xf32>
    %340 = vector.broadcast %317 : vector<1x32xf32> to vector<16x32xf32>
    %341 = arith.mulf %339, %340 : vector<16x32xf32>
    %342 = vector.broadcast %319 : vector<1x32xf32> to vector<16x32xf32>
    %343 = arith.addf %341, %342 : vector<16x32xf32>
    %c0_143 = arith.constant 0 : index
    %c0_144 = arith.constant 0 : index
    %344 = vector.load %arg14[%c0_143, %c0_144] : memref<16x32xf32, #tpu.memory_space<vmem>>, vector<16x32xf32>
    tpu.vector_store %arg14[%c0_143, %c0_144], %343 {strides = array<i32>} : memref<16x32xf32, #tpu.memory_space<vmem>>, vector<16x32xf32>,
    return
  }
}

</mosaic_0001>

<llo_original>
// kernel: transformer_encoder_forward.1
$region0: #{transformer_encoder_forward.1}
  #allocation0 [shape = 'u32[]', space=smem, size = 0x4, offset = 0x4, fixed_abs, tag = 'smem constant byte address 0x4 - core index']
  #allocation1 [shape = 'u32[144,128]{1,0:T(1,128)}', space=vmem, size = 0x12000, scoped, tag = 'internal scratch']
  %s0 = inlined_call_operand.vmem [shape: f32[16,32], index: 0, kind: input, shape index: {}]
  %s1 = inlined_call_operand.vmem [shape: f32[16,16], index: 1, kind: input, shape index: {}]
  %s2 = inlined_call_operand.vmem [shape: bf16[2,32,96], index: 2, kind: input, shape index: {}]
  %s3 = inlined_call_operand.vmem [shape: f32[2,1,96], index: 3, kind: input, shape index: {}]
  %s4 = inlined_call_operand.vmem [shape: f32[2,32,32], index: 4, kind: input, shape index: {}]
  %s5 = inlined_call_operand.vmem [shape: f32[2,1,32], index: 5, kind: input, shape index: {}]
  %s6 = inlined_call_operand.vmem [shape: f32[2,1,32], index: 6, kind: input, shape index: {}]
  %s7 = inlined_call_operand.vmem [shape: f32[2,1,32], index: 7, kind: input, shape index: {}]
  %s8 = inlined_call_operand.vmem [shape: bf16[2,32,64], index: 8, kind: input, shape index: {}]
  %s9 = inlined_call_operand.vmem [shape: f32[2,1,64], index: 9, kind: input, shape index: {}]
  %s10 = inlined_call_operand.vmem [shape: bf16[2,64,32], index: 10, kind: input, shape index: {}]
  %s11 = inlined_call_operand.vmem [shape: f32[2,1,32], index: 11, kind: input, shape index: {}]
  %s12 = inlined_call_operand.vmem [shape: f32[2,1,32], index: 12, kind: input, shape index: {}]
  %s13 = inlined_call_operand.vmem [shape: f32[2,1,32], index: 13, kind: input, shape index: {}]
  %s14 = inlined_call_operand.hbm [shape: f32[16,32], index: 14, kind: output, shape index: {}]
  %s15 = sld [smem:[#allocation0]]
  $region66: #{transformer_encoder_forward.1} parent=0
    _
  %s17 = ssub.s32 1, %s15
  %s18 = scalar_select 0, %s17, %s15
  $region1: #{transformer_encoder_forward.1} parent=0
    #allocation2 [shape = 'u8[8192]{0}', space=vmem, size = 0x2000, scoped, tag = 'output window, operand 0, single buffered']
    #allocation3 [shape = 's32[1]{0}', space=sflag, size = 0x4, scoped, tag = 'scoped memory for transformer_encoder_forward.1']
    %19 = vsyncpa [#allocation3], 0
    // Predicated region
    $region2: #{transformer_encoder_forward.1} parent=1 // pred_check
      _
    $region3: #{transformer_encoder_forward.1} parent=1 // pred_check_branch
      %21 = sbr.rel (0) target = $region5
    $region4: #{transformer_encoder_forward.1} parent=1 // pred_region
      _
    $region5: #{transformer_encoder_forward.1} parent=1 // pred_fallthru
      _
    // Predicated region
    $region6: #{transformer_encoder_forward.1} parent=1 // pred_check
      _
    $region7: #{transformer_encoder_forward.1} parent=1 // pred_check_branch
      %23 = sbr.rel (0) target = $region9
    $region8: #{transformer_encoder_forward.1} parent=1 // pred_region
      _
    $region9: #{transformer_encoder_forward.1} parent=1 // pred_fallthru
      _
    // Predicated region
    $region10: #{transformer_encoder_forward.1} parent=1 // pred_check
      _
    $region11: #{transformer_encoder_forward.1} parent=1 // pred_check_branch
      %25 = sbr.rel (0) target = $region13
    $region12: #{transformer_encoder_forward.1} parent=1 // pred_region
      _
    $region13: #{transformer_encoder_forward.1} parent=1 // pred_fallthru
      _
    // Predicated region
    $region14: #{transformer_encoder_forward.1} parent=1 // pred_check
      _
    $region15: #{transformer_encoder_forward.1} parent=1 // pred_check_branch
      %27 = sbr.rel (0) target = $region17
    $region16: #{transformer_encoder_forward.1} parent=1 // pred_region
      _
    $region17: #{transformer_encoder_forward.1} parent=1 // pred_fallthru
      _
    // Predicated region
    $region18: #{transformer_encoder_forward.1} parent=1 // pred_check
      _
    $region19: #{transformer_encoder_forward.1} parent=1 // pred_check_branch
      %29 = sbr.rel (0) target = $region21
    $region20: #{transformer_encoder_forward.1} parent=1 // pred_region
      _
    $region21: #{transformer_encoder_forward.1} parent=1 // pred_fallthru
      _
    // Predicated region
    $region22: #{transformer_encoder_forward.1} parent=1 // pred_check
      _
    $region23: #{transformer_encoder_forward.1} parent=1 // pred_check_branch
      %31 = sbr.rel (0) target = $region25
    $region24: #{transformer_encoder_forward.1} parent=1 // pred_region
      _
    $region25: #{transformer_encoder_forward.1} parent=1 // pred_fallthru
      _
    // Predicated region
    $region26: #{transformer_encoder_forward.1} parent=1 // pred_check
      _
    $region27: #{transformer_encoder_forward.1} parent=1 // pred_check_branch
      %33 = sbr.rel (0) target = $region29
    $region28: #{transformer_encoder_forward.1} parent=1 // pred_region
      _
    $region29: #{transformer_encoder_forward.1} parent=1 // pred_fallthru
      _
    // Predicated region
    $region30: #{transformer_encoder_forward.1} parent=1 // pred_check
      _
    $region31: #{transformer_encoder_forward.1} parent=1 // pred_check_branch
      %35 = sbr.rel (0) target = $region33
    $region32: #{transformer_encoder_forward.1} parent=1 // pred_region
      _
    $region33: #{transformer_encoder_forward.1} parent=1 // pred_fallthru
      _
    // Predicated region
    $region34: #{transformer_encoder_forward.1} parent=1 // pred_check
      _
    $region35: #{transformer_encoder_forward.1} parent=1 // pred_check_branch
      %37 = sbr.rel (0) target = $region37
    $region36: #{transformer_encoder_forward.1} parent=1 // pred_region
      _
    $region37: #{transformer_encoder_forward.1} parent=1 // pred_fallthru
      _
    // Predicated region
    $region38: #{transformer_encoder_forward.1} parent=1 // pred_check
      _
    $region39: #{transformer_encoder_forward.1} parent=1 // pred_check_branch
      %39 = sbr.rel (0) target = $region41
    $region40: #{transformer_encoder_forward.1} parent=1 // pred_region
      _
    $region41: #{transformer_encoder_forward.1} parent=1 // pred_fallthru
      _
    // Predicated region
    $region42: #{transformer_encoder_forward.1} parent=1 // pred_check
      _
    $region43: #{transformer_encoder_forward.1} parent=1 // pred_check_branch
      %41 = sbr.rel (0) target = $region45
    $region44: #{transformer_encoder_forward.1} parent=1 // pred_region
      _
    $region45: #{transformer_encoder_forward.1} parent=1 // pred_fallthru
      _
    // Predicated region
    $region46: #{transformer_encoder_forward.1} parent=1 // pred_check
      _
    $region47: #{transformer_encoder_forward.1} parent=1 // pred_check_branch
      %43 = sbr.rel (0) target = $region49
    $region48: #{transformer_encoder_forward.1} parent=1 // pred_region
      _
    $region49: #{transformer_encoder_forward.1} parent=1 // pred_fallthru
      _
    // Predicated region
    $region50: #{transformer_encoder_forward.1} parent=1 // pred_check
      _
    $region51: #{transformer_encoder_forward.1} parent=1 // pred_check_branch
      %45 = sbr.rel (0) target = $region53
    $region52: #{transformer_encoder_forward.1} parent=1 // pred_region
      _
    $region53: #{transformer_encoder_forward.1} parent=1 // pred_fallthru
      _
    // Predicated region
    $region54: #{transformer_encoder_forward.1} parent=1 // pred_check
      _
    $region55: #{transformer_encoder_forward.1} parent=1 // pred_check_branch
      %47 = sbr.rel (0) target = $region57
    $region56: #{transformer_encoder_forward.1} parent=1 // pred_region
      _
    $region57: #{transformer_encoder_forward.1} parent=1 // pred_fallthru
      _
    %v49 = vld [vmem:[%s0] sm:$0xff]
    %v50 = vld [vmem:[%s0 + $0x8] sm:$0xff]
    %v51 = vld [vmem:[%s1] sm:$0xff]
    %v52 = vld [vmem:[%s1 + $0x8] sm:$0xff]
    %v53 = vpack.c.bf16 %v50, %v49
    %v54 = vld [vmem:[%s2] sm:$0xf]
    %v55 = vld [vmem:[%s2 + $0x4] sm:$0xf]
    %v56 = vld [vmem:[%s2 + $0x8] sm:$0xf]
    %v57 = vld [vmem:[%s2 + $0xc] sm:$0xf]
    %v58 = vld [vmem:[%s3] sm:$0x1]
    %v60 = vlaneseq
    %v61 = vshrl.u32 %v60, 7
    %v62 = vsub.s32 0, %v61
    %v63 = vrot.slane %v58, %v62
    %v69 = vunpack.c.l.b16 %v54
    %v70 = vunpack.c.l.b16 %v55
    %v71 = vunpack.c.l.b16 %v56
    %v72 = vunpack.c.l.b16 %v57
    %v73 = vpack.c.b16 %v70, %v69
    %v74 = vpack.c.b16 %v72, %v71
    %vm77 = vcmask 261120
    %v79 = vsel %vm77, %v53, 0
    %81 = vmatprep.subr.bf16.mxu0 0
    %82 = vmatpush1.bf16.msra.mxu0 %v73
    %83 = vmatprep.subr.bf16.mxu0 0
    %84 = vmatpush1.bf16.msra.mxu0 %v74
    %85 = vmatprep.subr.bf16.mxu0 0
    %86 = vmatpush1.bf16.msra.mxu0 0
    %87 = vmatprep.subr.bf16.mxu0 0
    %88 = vmatpush1.bf16.msra.mxu0 0
    %89 = vmatprep.subr.bf16.mxu0 0
    %90 = vmatpush1.bf16.msra.mxu0 0
    %91 = vmatprep.subr.bf16.mxu0 0
    %92 = vmatpush1.bf16.msra.mxu0 0
    %93 = vmatprep.subr.bf16.mxu0 0
    %94 = vmatpush1.bf16.msra.mxu0 0
    %95 = vmatprep.subr.bf16.mxu0 0
    %96 = vmatpush1.bf16.msra.mxu0 0
    %97 = vmatprep.subr.bf16.mxu0 0
    %98 = vmatpush1.bf16.msra.mxu0 0
    %99 = vmatprep.subr.bf16.mxu0 0
    %100 = vmatpush1.bf16.msra.mxu0 0
    %101 = vmatprep.subr.bf16.mxu0 0
    %102 = vmatpush1.bf16.msra.mxu0 0
    %103 = vmatprep.subr.bf16.mxu0 0
    %104 = vmatpush1.bf16.msra.mxu0 0
    %105 = vmatprep.subr.bf16.mxu0 0
    %106 = vmatpush1.bf16.msra.mxu0 0
    %107 = vmatprep.subr.bf16.mxu0 0
    %108 = vmatpush1.bf16.msra.mxu0 0
    %109 = vmatprep.subr.bf16.mxu0 0
    %110 = vmatpush1.bf16.msra.mxu0 0
    %111 = vmatprep.subr.bf16.mxu0 0
    %112 = vmatpush1.bf16.msra.mxu0 0
    %113 = vmatprep.mubr.bf16.mxu0 0
    %114 = vmatmul.mubr.bf16.gmra.mrb[0].mxu0 %v79
    %v115 = vpop.f32.mrb[0].mxu0
    %v116 = vadd.f32 %v63, %v115
    %v117 = vpop.f32.mrb[0].mxu0
    %v118 = vpop.f32.mrb[0].mxu0
    %v119 = vadd.f32 %v63, %v118
    %v120 = vpop.f32.mrb[0].mxu0
    %121 = vdwg.mxu0
    %v122 = vld [vmem:[%s4] sm:$0xff]
    %v123 = vld [vmem:[%s4 + $0x8] sm:$0xff]
    %v124 = vld [vmem:[%s4 + $0x10] sm:$0xff]
    %v125 = vld [vmem:[%s4 + $0x18] sm:$0xff]
    %128 = vrot.lane.b32.xlu0 %v116, 96
    %v129 = vpop.permute.xlu0 %128
    %130 = vrot.lane.b32.xlu0 %v119, 96
    %v131 = vpop.permute.xlu0 %130
    %vm132 = vcmask 64512
    %v133 = vsel %vm132, %v116, 0
    %v135 = vsel %vm132, %v119, 0
    %v137 = vsel %vm132, %v129, 0
    %v139 = vsel %vm132, %v131, 0
    %141 = vmatprep.subr.mxu0 0.0
    %142 = vmatpush1.xpose.msra.mxu0 %v137
    %143 = vmatprep.subr.mxu0 0.0
    %144 = vmatpush1.xpose.msra.mxu0 %v139
    %145 = vmatprep.subr.mxu0 0.0
    %146 = vmatpush1.xpose.msra.mxu0 0.0
    %147 = vmatprep.subr.mxu0 0.0
    %148 = vmatpush1.xpose.msra.mxu0 0.0
    %149 = vmatprep.subr.mxu0 0.0
    %150 = vmatpush1.xpose.msra.mxu0 0.0
    %151 = vmatprep.subr.mxu0 0.0
    %152 = vmatpush1.xpose.msra.mxu0 0.0
    %153 = vmatprep.subr.mxu0 0.0
    %154 = vmatpush1.xpose.msra.mxu0 0.0
    %155 = vmatprep.subr.mxu0 0.0
    %156 = vmatpush1.xpose.msra.mxu0 0.0
    %157 = vmatprep.subr.mxu0 0.0
    %158 = vmatpush1.xpose.msra.mxu0 0.0
    %159 = vmatprep.subr.mxu0 0.0
    %160 = vmatpush1.xpose.msra.mxu0 0.0
    %161 = vmatprep.subr.mxu0 0.0
    %162 = vmatpush1.xpose.msra.mxu0 0.0
    %163 = vmatprep.subr.mxu0 0.0
    %164 = vmatpush1.xpose.msra.mxu0 0.0
    %165 = vmatprep.subr.mxu0 0.0
    %166 = vmatpush1.xpose.msra.mxu0 0.0
    %167 = vmatprep.subr.mxu0 0.0
    %168 = vmatpush1.xpose.msra.mxu0 0.0
    %169 = vmatprep.subr.mxu0 0.0
    %170 = vmatpush1.xpose.msra.mxu0 0.0
    %171 = vmatprep.subr.mxu0 0.0
    %172 = vmatpush1.xpose.msra.mxu0 0.0
    %173 = vmatprep.subr.mxu0 0.0
    %174 = vmatpush1.xpose.msra.mxu0 0.0
    %175 = vmatprep.subr.mxu0 0.0
    %176 = vmatpush1.xpose.msra.mxu0 0.0
    %177 = vmatprep.subr.mxu0 0.0
    %178 = vmatpush1.xpose.msra.mxu0 0.0
    %179 = vmatprep.subr.mxu0 0.0
    %180 = vmatpush1.xpose.msra.mxu0 0.0
    %181 = vmatprep.subr.mxu0 0.0
    %182 = vmatpush1.xpose.msra.mxu0 0.0
    %183 = vmatprep.subr.mxu0 0.0
    %184 = vmatpush1.xpose.msra.mxu0 0.0
    %185 = vmatprep.subr.mxu0 0.0
    %186 = vmatpush1.xpose.msra.mxu0 0.0
    %187 = vmatprep.subr.mxu0 0.0
    %188 = vmatpush1.xpose.msra.mxu0 0.0
    %189 = vmatprep.subr.mxu0 0.0
    %190 = vmatpush1.xpose.msra.mxu0 0.0
    %191 = vmatprep.subr.mxu0 0.0
    %192 = vmatpush1.xpose.msra.mxu0 0.0
    %193 = vmatprep.subr.mxu0 0.0
    %194 = vmatpush1.xpose.msra.mxu0 0.0
    %195 = vmatprep.subr.mxu0 0.0
    %196 = vmatpush1.xpose.msra.mxu0 0.0
    %197 = vmatprep.subr.mxu0 0.0
    %198 = vmatpush1.xpose.msra.mxu0 0.0
    %199 = vmatprep.subr.mxu0 0.0
    %200 = vmatpush1.xpose.msra.mxu0 0.0
    %201 = vmatprep.subr.mxu0 0.0
    %202 = vmatpush1.xpose.msra.mxu0 0.0
    %203 = vmatprep.subr.mxu0 0.0
    %204 = vmatpush1.xpose.msra.mxu0 0.0
    %205 = vmatprep.mubr.f32.mxu0 0.0
    %206 = vmatmul.mubr.f32.gmra.mrb[0].mxu0 %v133
    %v207 = vpop.f32.mrb[0].mxu0
    %v208 = vadd.f32 %v51, %v207
    %v209 = vpop.f32.mrb[0].mxu0
    %210 = vmatprep.mubr.f32.mxu0 0.0
    %211 = vmatmul.mubr.f32.gmra.mrb[0].mxu0 %v135
    %v212 = vpop.f32.mrb[0].mxu0
    %v213 = vadd.f32 %v52, %v212
    %v214 = vpop.f32.mrb[0].mxu0
    %215 = vdwg.mxu0
    %vm216 = vcmask 130048
    %v217 = vsel %vm216, %v208, -inf
    %218 = vmax.xlane.f32.xlu0 %v217
    %v219 = vpop.xlane.xlu0 %218
    %v220 = vsel %vm216, %v213, -inf
    %221 = vmax.xlane.f32.xlu0 %v220
    %v222 = vpop.xlane.xlu0 %221
    %v223 = vsub.f32 %v208, %v219
    %v224 = vsub.f32 %v213, %v222
    %v225 = vmul.f32 %v223, 1.442695
    %v226 = vpow.pop %v225
    %v227 = vmul.f32 %v224, 1.442695
    %v228 = vpow.pop %v227
    %v229 = vsel %vm216, %v226, 0.0
    %230 = vadd.xlane.f32.xlu0 %v229
    %v231 = vpop.xlane.xlu0 %230
    %v232 = vsel %vm216, %v228, 0.0
    %233 = vadd.xlane.f32.xlu0 %v232
    %v234 = vpop.xlane.xlu0 %233
    %v235 = vrcp.pop %v231
    %v236 = vrcp.pop %v234
    %v237 = vmul.f32 %v226, %v235
    %v238 = vmul.f32 %v228, %v236
    %239 = vrot.lane.b32.xlu0 %v116, 64
    %v240 = vpop.permute.xlu0 %239
    %241 = vrot.lane.b32.xlu0 %v119, 64
    %v242 = vpop.permute.xlu0 %241
    %v246 = vsel %vm216, %v237, 0
    %v249 = vsel %vm216, %v238, 0
    %251 = vmatprep.subr.mxu0 0.0
    %252 = vmatpush1.msra.mxu0 %v240
    %253 = vmatprep.subr.mxu0 0.0
    %254 = vmatpush1.msra.mxu0 %v242
    %255 = vmatprep.subr.mxu0 0.0
    %256 = vmatpush1.msra.mxu0 0.0
    %257 = vmatprep.subr.mxu0 0.0
    %258 = vmatpush1.msra.mxu0 0.0
    %259 = vmatprep.subr.mxu0 0.0
    %260 = vmatpush1.msra.mxu0 0.0
    %261 = vmatprep.subr.mxu0 0.0
    %262 = vmatpush1.msra.mxu0 0.0
    %263 = vmatprep.subr.mxu0 0.0
    %264 = vmatpush1.msra.mxu0 0.0
    %265 = vmatprep.subr.mxu0 0.0
    %266 = vmatpush1.msra.mxu0 0.0
    %267 = vmatprep.subr.mxu0 0.0
    %268 = vmatpush1.msra.mxu0 0.0
    %269 = vmatprep.subr.mxu0 0.0
    %270 = vmatpush1.msra.mxu0 0.0
    %271 = vmatprep.subr.mxu0 0.0
    %272 = vmatpush1.msra.mxu0 0.0
    %273 = vmatprep.subr.mxu0 0.0
    %274 = vmatpush1.msra.mxu0 0.0
    %275 = vmatprep.subr.mxu0 0.0
    %276 = vmatpush1.msra.mxu0 0.0
    %277 = vmatprep.subr.mxu0 0.0
    %278 = vmatpush1.msra.mxu0 0.0
    %279 = vmatprep.subr.mxu0 0.0
    %280 = vmatpush1.msra.mxu0 0.0
    %281 = vmatprep.subr.mxu0 0.0
    %282 = vmatpush1.msra.mxu0 0.0
    %283 = vmatprep.subr.mxu0 0.0
    %284 = vmatpush1.msra.mxu0 0.0
    %285 = vmatprep.subr.mxu0 0.0
    %286 = vmatpush1.msra.mxu0 0.0
    %287 = vmatprep.subr.mxu0 0.0
    %288 = vmatpush1.msra.mxu0 0.0
    %289 = vmatprep.subr.mxu0 0.0
    %290 = vmatpush1.msra.mxu0 0.0
    %291 = vmatprep.subr.mxu0 0.0
    %292 = vmatpush1.msra.mxu0 0.0
    %293 = vmatprep.subr.mxu0 0.0
    %294 = vmatpush1.msra.mxu0 0.0
    %295 = vmatprep.subr.mxu0 0.0
    %296 = vmatpush1.msra.mxu0 0.0
    %297 = vmatprep.subr.mxu0 0.0
    %298 = vmatpush1.msra.mxu0 0.0
    %299 = vmatprep.subr.mxu0 0.0
    %300 = vmatpush1.msra.mxu0 0.0
    %301 = vmatprep.subr.mxu0 0.0
    %302 = vmatpush1.msra.mxu0 0.0
    %303 = vmatprep.subr.mxu0 0.0
    %304 = vmatpush1.msra.mxu0 0.0
    %305 = vmatprep.subr.mxu0 0.0
    %306 = vmatpush1.msra.mxu0 0.0
    %307 = vmatprep.subr.mxu0 0.0
    %308 = vmatpush1.msra.mxu0 0.0
    %309 = vmatprep.subr.mxu0 0.0
    %310 = vmatpush1.msra.mxu0 0.0
    %311 = vmatprep.subr.mxu0 0.0
    %312 = vmatpush1.msra.mxu0 0.0
    %313 = vmatprep.subr.mxu0 0.0
    %314 = vmatpush1.msra.mxu0 0.0
    %315 = vmatprep.mubr.f32.mxu0 0.0
    %316 = vmatmul.mubr.f32.gmra.mrb[0].mxu0 %v246
    %v317 = vpop.f32.mrb[0].mxu0
    %v318 = vadd.f32 0.0, %v317
    %v319 = vpop.f32.mrb[0].mxu0
    %320 = vmatprep.mubr.f32.mxu0 0.0
    %321 = vmatmul.mubr.f32.gmra.mrb[0].mxu0 %v249
    %v322 = vpop.f32.mrb[0].mxu0
    %v323 = vadd.f32 0.0, %v322
    %v324 = vpop.f32.mrb[0].mxu0
    %325 = vdwg.mxu0
    %326 = vrot.lane.b32.xlu0 %v116, 120
    %v327 = vpop.permute.xlu0 %326
    %328 = vrot.lane.b32.xlu0 %v119, 120
    %v329 = vpop.permute.xlu0 %328
    %330 = vrot.lane.b32.xlu0 %v116, 88
    %v331 = vpop.permute.xlu0 %330
    %332 = vrot.lane.b32.xlu0 %v119, 88
    %v333 = vpop.permute.xlu0 %332
    %v334 = vsel %vm132, %v327, 0
    %v336 = vsel %vm132, %v329, 0
    %v338 = vsel %vm132, %v331, 0
    %v340 = vsel %vm132, %v333, 0
    %342 = vmatprep.subr.mxu0 0.0
    %343 = vmatpush1.xpose.msra.mxu0 %v338
    %344 = vmatprep.subr.mxu0 0.0
    %345 = vmatpush1.xpose.msra.mxu0 %v340
    %346 = vmatprep.subr.mxu0 0.0
    %347 = vmatpush1.xpose.msra.mxu0 0.0
    %348 = vmatprep.subr.mxu0 0.0
    %349 = vmatpush1.xpose.msra.mxu0 0.0
    %350 = vmatprep.subr.mxu0 0.0
    %351 = vmatpush1.xpose.msra.mxu0 0.0
    %352 = vmatprep.subr.mxu0 0.0
    %353 = vmatpush1.xpose.msra.mxu0 0.0
    %354 = vmatprep.subr.mxu0 0.0
    %355 = vmatpush1.xpose.msra.mxu0 0.0
    %356 = vmatprep.subr.mxu0 0.0
    %357 = vmatpush1.xpose.msra.mxu0 0.0
    %358 = vmatprep.subr.mxu0 0.0
    %359 = vmatpush1.xpose.msra.mxu0 0.0
    %360 = vmatprep.subr.mxu0 0.0
    %361 = vmatpush1.xpose.msra.mxu0 0.0
    %362 = vmatprep.subr.mxu0 0.0
    %363 = vmatpush1.xpose.msra.mxu0 0.0
    %364 = vmatprep.subr.mxu0 0.0
    %365 = vmatpush1.xpose.msra.mxu0 0.0
    %366 = vmatprep.subr.mxu0 0.0
    %367 = vmatpush1.xpose.msra.mxu0 0.0
    %368 = vmatprep.subr.mxu0 0.0
    %369 = vmatpush1.xpose.msra.mxu0 0.0
    %370 = vmatprep.subr.mxu0 0.0
    %371 = vmatpush1.xpose.msra.mxu0 0.0
    %372 = vmatprep.subr.mxu0 0.0
    %373 = vmatpush1.xpose.msra.mxu0 0.0
    %374 = vmatprep.subr.mxu0 0.0
    %375 = vmatpush1.xpose.msra.mxu0 0.0
    %376 = vmatprep.subr.mxu0 0.0
    %377 = vmatpush1.xpose.msra.mxu0 0.0
    %378 = vmatprep.subr.mxu0 0.0
    %379 = vmatpush1.xpose.msra.mxu0 0.0
    %380 = vmatprep.subr.mxu0 0.0
    %381 = vmatpush1.xpose.msra.mxu0 0.0
    %382 = vmatprep.subr.mxu0 0.0
    %383 = vmatpush1.xpose.msra.mxu0 0.0
    %384 = vmatprep.subr.mxu0 0.0
    %385 = vmatpush1.xpose.msra.mxu0 0.0
    %386 = vmatprep.subr.mxu0 0.0
    %387 = vmatpush1.xpose.msra.mxu0 0.0
    %388 = vmatprep.subr.mxu0 0.0
    %389 = vmatpush1.xpose.msra.mxu0 0.0
    %390 = vmatprep.subr.mxu0 0.0
    %391 = vmatpush1.xpose.msra.mxu0 0.0
    %392 = vmatprep.subr.mxu0 0.0
    %393 = vmatpush1.xpose.msra.mxu0 0.0
    %394 = vmatprep.subr.mxu0 0.0
    %395 = vmatpush1.xpose.msra.mxu0 0.0
    %396 = vmatprep.subr.mxu0 0.0
    %397 = vmatpush1.xpose.msra.mxu0 0.0
    %398 = vmatprep.subr.mxu0 0.0
    %399 = vmatpush1.xpose.msra.mxu0 0.0
    %400 = vmatprep.subr.mxu0 0.0
    %401 = vmatpush1.xpose.msra.mxu0 0.0
    %402 = vmatprep.subr.mxu0 0.0
    %403 = vmatpush1.xpose.msra.mxu0 0.0
    %404 = vmatprep.subr.mxu0 0.0
    %405 = vmatpush1.xpose.msra.mxu0 0.0
    %406 = vmatprep.mubr.f32.mxu0 0.0
    %407 = vmatmul.mubr.f32.gmra.mrb[0].mxu0 %v334
    %v408 = vpop.f32.mrb[0].mxu0
    %v409 = vadd.f32 %v51, %v408
    %v410 = vpop.f32.mrb[0].mxu0
    %411 = vmatprep.mubr.f32.mxu0 0.0
    %412 = vmatmul.mubr.f32.gmra.mrb[0].mxu0 %v336
    %v413 = vpop.f32.mrb[0].mxu0
    %v414 = vadd.f32 %v52, %v413
    %v415 = vpop.f32.mrb[0].mxu0
    %416 = vdwg.mxu0
    %v417 = vsel %vm216, %v409, -inf
    %418 = vmax.xlane.f32.xlu0 %v417
    %v419 = vpop.xlane.xlu0 %418
    %v420 = vsel %vm216, %v414, -inf
    %421 = vmax.xlane.f32.xlu0 %v420
    %v422 = vpop.xlane.xlu0 %421
    %v423 = vsub.f32 %v409, %v419
    %v424 = vsub.f32 %v414, %v422
    %v425 = vmul.f32 %v423, 1.442695
    %v426 = vpow.pop %v425
    %v427 = vmul.f32 %v424, 1.442695
    %v428 = vpow.pop %v427
    %v429 = vsel %vm216, %v426, 0.0
    %430 = vadd.xlane.f32.xlu0 %v429
    %v431 = vpop.xlane.xlu0 %430
    %v432 = vsel %vm216, %v428, 0.0
    %433 = vadd.xlane.f32.xlu0 %v432
    %v434 = vpop.xlane.xlu0 %433
    %v435 = vrcp.pop %v431
    %v436 = vrcp.pop %v434
    %v437 = vmul.f32 %v426, %v435
    %v438 = vmul.f32 %v428, %v436
    %439 = vrot.lane.b32.xlu0 %v116, 56
    %v440 = vpop.permute.xlu0 %439
    %441 = vrot.lane.b32.xlu0 %v119, 56
    %v442 = vpop.permute.xlu0 %441
    %v446 = vsel %vm216, %v437, 0
    %v449 = vsel %vm216, %v438, 0
    %451 = vmatprep.subr.mxu0 0.0
    %452 = vmatpush1.msra.mxu0 %v440
    %453 = vmatprep.subr.mxu0 0.0
    %454 = vmatpush1.msra.mxu0 %v442
    %455 = vmatprep.subr.mxu0 0.0
    %456 = vmatpush1.msra.mxu0 0.0
    %457 = vmatprep.subr.mxu0 0.0
    %458 = vmatpush1.msra.mxu0 0.0
    %459 = vmatprep.subr.mxu0 0.0
    %460 = vmatpush1.msra.mxu0 0.0
    %461 = vmatprep.subr.mxu0 0.0
    %462 = vmatpush1.msra.mxu0 0.0
    %463 = vmatprep.subr.mxu0 0.0
    %464 = vmatpush1.msra.mxu0 0.0
    %465 = vmatprep.subr.mxu0 0.0
    %466 = vmatpush1.msra.mxu0 0.0
    %467 = vmatprep.subr.mxu0 0.0
    %468 = vmatpush1.msra.mxu0 0.0
    %469 = vmatprep.subr.mxu0 0.0
    %470 = vmatpush1.msra.mxu0 0.0
    %471 = vmatprep.subr.mxu0 0.0
    %472 = vmatpush1.msra.mxu0 0.0
    %473 = vmatprep.subr.mxu0 0.0
    %474 = vmatpush1.msra.mxu0 0.0
    %475 = vmatprep.subr.mxu0 0.0
    %476 = vmatpush1.msra.mxu0 0.0
    %477 = vmatprep.subr.mxu0 0.0
    %478 = vmatpush1.msra.mxu0 0.0
    %479 = vmatprep.subr.mxu0 0.0
    %480 = vmatpush1.msra.mxu0 0.0
    %481 = vmatprep.subr.mxu0 0.0
    %482 = vmatpush1.msra.mxu0 0.0
    %483 = vmatprep.subr.mxu0 0.0
    %484 = vmatpush1.msra.mxu0 0.0
    %485 = vmatprep.subr.mxu0 0.0
    %486 = vmatpush1.msra.mxu0 0.0
    %487 = vmatprep.subr.mxu0 0.0
    %488 = vmatpush1.msra.mxu0 0.0
    %489 = vmatprep.subr.mxu0 0.0
    %490 = vmatpush1.msra.mxu0 0.0
    %491 = vmatprep.subr.mxu0 0.0
    %492 = vmatpush1.msra.mxu0 0.0
    %493 = vmatprep.subr.mxu0 0.0
    %494 = vmatpush1.msra.mxu0 0.0
    %495 = vmatprep.subr.mxu0 0.0
    %496 = vmatpush1.msra.mxu0 0.0
    %497 = vmatprep.subr.mxu0 0.0
    %498 = vmatpush1.msra.mxu0 0.0
    %499 = vmatprep.subr.mxu0 0.0
    %500 = vmatpush1.msra.mxu0 0.0
    %501 = vmatprep.subr.mxu0 0.0
    %502 = vmatpush1.msra.mxu0 0.0
    %503 = vmatprep.subr.mxu0 0.0
    %504 = vmatpush1.msra.mxu0 0.0
    %505 = vmatprep.subr.mxu0 0.0
    %506 = vmatpush1.msra.mxu0 0.0
    %507 = vmatprep.subr.mxu0 0.0
    %508 = vmatpush1.msra.mxu0 0.0
    %509 = vmatprep.subr.mxu0 0.0
    %510 = vmatpush1.msra.mxu0 0.0
    %511 = vmatprep.subr.mxu0 0.0
    %512 = vmatpush1.msra.mxu0 0.0
    %513 = vmatprep.subr.mxu0 0.0
    %514 = vmatpush1.msra.mxu0 0.0
    %515 = vmatprep.mubr.f32.mxu0 0.0
    %516 = vmatmul.mubr.f32.gmra.mrb[0].mxu0 %v446
    %v517 = vpop.f32.mrb[0].mxu0
    %v518 = vadd.f32 0.0, %v517
    %v519 = vpop.f32.mrb[0].mxu0
    %520 = vmatprep.mubr.f32.mxu0 0.0
    %521 = vmatmul.mubr.f32.gmra.mrb[0].mxu0 %v449
    %v522 = vpop.f32.mrb[0].mxu0
    %v523 = vadd.f32 0.0, %v522
    %v524 = vpop.f32.mrb[0].mxu0
    %525 = vdwg.mxu0
    %v527 = vsel %vm132, %v518, 0
    %v530 = vsel %vm132, %v523, 0
    %532 = vmatprep.subr.mxu0 0.0
    %533 = vmatpush1.msra.mxu0 %v123
    %534 = vmatprep.subr.mxu0 0.0
    %535 = vmatpush1.msra.mxu0 0.0
    %536 = vmatprep.subr.mxu0 0.0
    %537 = vmatpush1.msra.mxu0 0.0
    %538 = vmatprep.subr.mxu0 0.0
    %539 = vmatpush1.msra.mxu0 0.0
    %540 = vmatprep.subr.mxu0 0.0
    %541 = vmatpush1.msra.mxu0 0.0
    %542 = vmatprep.subr.mxu0 0.0
    %543 = vmatpush1.msra.mxu0 0.0
    %544 = vmatprep.subr.mxu0 0.0
    %545 = vmatpush1.msra.mxu0 0.0
    %546 = vmatprep.subr.mxu0 0.0
    %547 = vmatpush1.msra.mxu0 0.0
    %548 = vmatprep.subr.mxu0 0.0
    %549 = vmatpush1.msra.mxu0 0.0
    %550 = vmatprep.subr.mxu0 0.0
    %551 = vmatpush1.msra.mxu0 0.0
    %552 = vmatprep.subr.mxu0 0.0
    %553 = vmatpush1.msra.mxu0 0.0
    %554 = vmatprep.subr.mxu0 0.0
    %555 = vmatpush1.msra.mxu0 0.0
    %556 = vmatprep.subr.mxu0 0.0
    %557 = vmatpush1.msra.mxu0 0.0
    %558 = vmatprep.subr.mxu0 0.0
    %559 = vmatpush1.msra.mxu0 0.0
    %560 = vmatprep.subr.mxu0 0.0
    %561 = vmatpush1.msra.mxu0 0.0
    %562 = vmatprep.subr.mxu0 0.0
    %563 = vmatpush1.msra.mxu0 0.0
    %564 = vmatprep.subr.mxu0 0.0
    %565 = vmatpush1.msra.mxu0 0.0
    %566 = vmatprep.subr.mxu0 0.0
    %567 = vmatpush1.msra.mxu0 0.0
    %568 = vmatprep.subr.mxu0 0.0
    %569 = vmatpush1.msra.mxu0 0.0
    %570 = vmatprep.subr.mxu0 0.0
    %571 = vmatpush1.msra.mxu0 0.0
    %572 = vmatprep.subr.mxu0 0.0
    %573 = vmatpush1.msra.mxu0 0.0
    %574 = vmatprep.subr.mxu0 0.0
    %575 = vmatpush1.msra.mxu0 0.0
    %576 = vmatprep.subr.mxu0 0.0
    %577 = vmatpush1.msra.mxu0 0.0
    %578 = vmatprep.subr.mxu0 0.0
    %579 = vmatpush1.msra.mxu0 0.0
    %580 = vmatprep.subr.mxu0 0.0
    %581 = vmatpush1.msra.mxu0 0.0
    %582 = vmatprep.subr.mxu0 0.0
    %583 = vmatpush1.msra.mxu0 0.0
    %584 = vmatprep.subr.mxu0 0.0
    %585 = vmatpush1.msra.mxu0 0.0
    %586 = vmatprep.subr.mxu0 0.0
    %587 = vmatpush1.msra.mxu0 0.0
    %588 = vmatprep.subr.mxu0 0.0
    %589 = vmatpush1.msra.mxu0 0.0
    %590 = vmatprep.subr.mxu0 0.0
    %591 = vmatpush1.msra.mxu0 0.0
    %592 = vmatprep.subr.mxu0 0.0
    %593 = vmatpush1.msra.mxu0 0.0
    %594 = vmatprep.subr.mxu0 0.0
    %595 = vmatpush1.msra.mxu0 0.0
    %596 = vmatprep.mubr.f32.mxu0 0.0
    %597 = vmatmul.mubr.f32.gmra.mrb[0].mxu0 %v527
    %v598 = vpop.f32.mrb[0].mxu0
    %v599 = vadd.f32 0.0, %v598
    %v600 = vpop.f32.mrb[0].mxu0
    %601 = vmatprep.mubr.f32.mxu0 0.0
    %602 = vmatmul.mubr.f32.gmra.mrb[0].mxu0 %v530
    %v603 = vpop.f32.mrb[0].mxu0
    %v604 = vadd.f32 0.0, %v603
    %v605 = vpop.f32.mrb[0].mxu0
    %606 = vdwg.mxu0
    %v608 = vsel %vm132, %v318, 0
    %v611 = vsel %vm132, %v323, 0
    %613 = vmatprep.subr.mxu0 0.0
    %614 = vmatpush1.msra.mxu0 %v122
    %615 = vmatprep.subr.mxu0 0.0
    %616 = vmatpush1.msra.mxu0 0.0
    %617 = vmatprep.subr.mxu0 0.0
    %618 = vmatpush1.msra.mxu0 0.0
    %619 = vmatprep.subr.mxu0 0.0
    %620 = vmatpush1.msra.mxu0 0.0
    %621 = vmatprep.subr.mxu0 0.0
    %622 = vmatpush1.msra.mxu0 0.0
    %623 = vmatprep.subr.mxu0 0.0
    %624 = vmatpush1.msra.mxu0 0.0
    %625 = vmatprep.subr.mxu0 0.0
    %626 = vmatpush1.msra.mxu0 0.0
    %627 = vmatprep.subr.mxu0 0.0
    %628 = vmatpush1.msra.mxu0 0.0
    %629 = vmatprep.subr.mxu0 0.0
    %630 = vmatpush1.msra.mxu0 0.0
    %631 = vmatprep.subr.mxu0 0.0
    %632 = vmatpush1.msra.mxu0 0.0
    %633 = vmatprep.subr.mxu0 0.0
    %634 = vmatpush1.msra.mxu0 0.0
    %635 = vmatprep.subr.mxu0 0.0
    %636 = vmatpush1.msra.mxu0 0.0
    %637 = vmatprep.subr.mxu0 0.0
    %638 = vmatpush1.msra.mxu0 0.0
    %639 = vmatprep.subr.mxu0 0.0
    %640 = vmatpush1.msra.mxu0 0.0
    %641 = vmatprep.subr.mxu0 0.0
    %642 = vmatpush1.msra.mxu0 0.0
    %643 = vmatprep.subr.mxu0 0.0
    %644 = vmatpush1.msra.mxu0 0.0
    %645 = vmatprep.subr.mxu0 0.0
    %646 = vmatpush1.msra.mxu0 0.0
    %647 = vmatprep.subr.mxu0 0.0
    %648 = vmatpush1.msra.mxu0 0.0
    %649 = vmatprep.subr.mxu0 0.0
    %650 = vmatpush1.msra.mxu0 0.0
    %651 = vmatprep.subr.mxu0 0.0
    %652 = vmatpush1.msra.mxu0 0.0
    %653 = vmatprep.subr.mxu0 0.0
    %654 = vmatpush1.msra.mxu0 0.0
    %655 = vmatprep.subr.mxu0 0.0
    %656 = vmatpush1.msra.mxu0 0.0
    %657 = vmatprep.subr.mxu0 0.0
    %658 = vmatpush1.msra.mxu0 0.0
    %659 = vmatprep.subr.mxu0 0.0
    %660 = vmatpush1.msra.mxu0 0.0
    %661 = vmatprep.subr.mxu0 0.0
    %662 = vmatpush1.msra.mxu0 0.0
    %663 = vmatprep.subr.mxu0 0.0
    %664 = vmatpush1.msra.mxu0 0.0
    %665 = vmatprep.subr.mxu0 0.0
    %666 = vmatpush1.msra.mxu0 0.0
    %667 = vmatprep.subr.mxu0 0.0
    %668 = vmatpush1.msra.mxu0 0.0
    %669 = vmatprep.subr.mxu0 0.0
    %670 = vmatpush1.msra.mxu0 0.0
    %671 = vmatprep.subr.mxu0 0.0
    %672 = vmatpush1.msra.mxu0 0.0
    %673 = vmatprep.subr.mxu0 0.0
    %674 = vmatpush1.msra.mxu0 0.0
    %675 = vmatprep.subr.mxu0 0.0
    %676 = vmatpush1.msra.mxu0 0.0
    %677 = vmatprep.mubr.f32.mxu0 0.0
    %678 = vmatmul.mubr.f32.gmra.mrb[0].mxu0 %v608
    %v679 = vpop.f32.mrb[0].mxu0
    %v680 = vadd.f32 %v599, %v679
    %v681 = vpop.f32.mrb[0].mxu0
    %682 = vmatprep.mubr.f32.mxu0 0.0
    %683 = vmatmul.mubr.f32.gmra.mrb[0].mxu0 %v611
    %v684 = vpop.f32.mrb[0].mxu0
    %v685 = vadd.f32 %v604, %v684
    %v686 = vpop.f32.mrb[0].mxu0
    %687 = vdwg.mxu0
    %688 = vrot.lane.b32.xlu0 %v116, 112
    %v689 = vpop.permute.xlu0 %688
    %690 = vrot.lane.b32.xlu0 %v119, 112
    %v691 = vpop.permute.xlu0 %690
    %692 = vrot.lane.b32.xlu0 %v116, 80
    %v693 = vpop.permute.xlu0 %692
    %694 = vrot.lane.b32.xlu0 %v119, 80
    %v695 = vpop.permute.xlu0 %694
    %v696 = vsel %vm132, %v689, 0
    %v698 = vsel %vm132, %v691, 0
    %v700 = vsel %vm132, %v693, 0
    %v702 = vsel %vm132, %v695, 0
    %704 = vmatprep.subr.mxu0 0.0
    %705 = vmatpush1.xpose.msra.mxu0 %v700
    %706 = vmatprep.subr.mxu0 0.0
    %707 = vmatpush1.xpose.msra.mxu0 %v702
    %708 = vmatprep.subr.mxu0 0.0
    %709 = vmatpush1.xpose.msra.mxu0 0.0
    %710 = vmatprep.subr.mxu0 0.0
    %711 = vmatpush1.xpose.msra.mxu0 0.0
    %712 = vmatprep.subr.mxu0 0.0
    %713 = vmatpush1.xpose.msra.mxu0 0.0
    %714 = vmatprep.subr.mxu0 0.0
    %715 = vmatpush1.xpose.msra.mxu0 0.0
    %716 = vmatprep.subr.mxu0 0.0
    %717 = vmatpush1.xpose.msra.mxu0 0.0
    %718 = vmatprep.subr.mxu0 0.0
    %719 = vmatpush1.xpose.msra.mxu0 0.0
    %720 = vmatprep.subr.mxu0 0.0
    %721 = vmatpush1.xpose.msra.mxu0 0.0
    %722 = vmatprep.subr.mxu0 0.0
    %723 = vmatpush1.xpose.msra.mxu0 0.0
    %724 = vmatprep.subr.mxu0 0.0
    %725 = vmatpush1.xpose.msra.mxu0 0.0
    %726 = vmatprep.subr.mxu0 0.0
    %727 = vmatpush1.xpose.msra.mxu0 0.0
    %728 = vmatprep.subr.mxu0 0.0
    %729 = vmatpush1.xpose.msra.mxu0 0.0
    %730 = vmatprep.subr.mxu0 0.0
    %731 = vmatpush1.xpose.msra.mxu0 0.0
    %732 = vmatprep.subr.mxu0 0.0
    %733 = vmatpush1.xpose.msra.mxu0 0.0
    %734 = vmatprep.subr.mxu0 0.0
    %735 = vmatpush1.xpose.msra.mxu0 0.0
    %736 = vmatprep.subr.mxu0 0.0
    %737 = vmatpush1.xpose.msra.mxu0 0.0
    %738 = vmatprep.subr.mxu0 0.0
    %739 = vmatpush1.xpose.msra.mxu0 0.0
    %740 = vmatprep.subr.mxu0 0.0
    %741 = vmatpush1.xpose.msra.mxu0 0.0
    %742 = vmatprep.subr.mxu0 0.0
    %743 = vmatpush1.xpose.msra.mxu0 0.0
    %744 = vmatprep.subr.mxu0 0.0
    %745 = vmatpush1.xpose.msra.mxu0 0.0
    %746 = vmatprep.subr.mxu0 0.0
    %747 = vmatpush1.xpose.msra.mxu0 0.0
    %748 = vmatprep.subr.mxu0 0.0
    %749 = vmatpush1.xpose.msra.mxu0 0.0
    %750 = vmatprep.subr.mxu0 0.0
    %751 = vmatpush1.xpose.msra.mxu0 0.0
    %752 = vmatprep.subr.mxu0 0.0
    %753 = vmatpush1.xpose.msra.mxu0 0.0
    %754 = vmatprep.subr.mxu0 0.0
    %755 = vmatpush1.xpose.msra.mxu0 0.0
    %756 = vmatprep.subr.mxu0 0.0
    %757 = vmatpush1.xpose.msra.mxu0 0.0
    %758 = vmatprep.subr.mxu0 0.0
    %759 = vmatpush1.xpose.msra.mxu0 0.0
    %760 = vmatprep.subr.mxu0 0.0
    %761 = vmatpush1.xpose.msra.mxu0 0.0
    %762 = vmatprep.subr.mxu0 0.0
    %763 = vmatpush1.xpose.msra.mxu0 0.0
    %764 = vmatprep.subr.mxu0 0.0
    %765 = vmatpush1.xpose.msra.mxu0 0.0
    %766 = vmatprep.subr.mxu0 0.0
    %767 = vmatpush1.xpose.msra.mxu0 0.0
    %768 = vmatprep.mubr.f32.mxu0 0.0
    %769 = vmatmul.mubr.f32.gmra.mrb[0].mxu0 %v696
    %v770 = vpop.f32.mrb[0].mxu0
    %v771 = vadd.f32 %v51, %v770
    %v772 = vpop.f32.mrb[0].mxu0
    %773 = vmatprep.mubr.f32.mxu0 0.0
    %774 = vmatmul.mubr.f32.gmra.mrb[0].mxu0 %v698
    %v775 = vpop.f32.mrb[0].mxu0
    %v776 = vadd.f32 %v52, %v775
    %v777 = vpop.f32.mrb[0].mxu0
    %778 = vdwg.mxu0
    %v779 = vsel %vm216, %v771, -inf
    %780 = vmax.xlane.f32.xlu0 %v779
    %v781 = vpop.xlane.xlu0 %780
    %v782 = vsel %vm216, %v776, -inf
    %783 = vmax.xlane.f32.xlu0 %v782
    %v784 = vpop.xlane.xlu0 %783
    %v785 = vsub.f32 %v771, %v781
    %v786 = vsub.f32 %v776, %v784
    %v787 = vmul.f32 %v785, 1.442695
    %v788 = vpow.pop %v787
    %v789 = vmul.f32 %v786, 1.442695
    %v790 = vpow.pop %v789
    %v791 = vsel %vm216, %v788, 0.0
    %792 = vadd.xlane.f32.xlu0 %v791
    %v793 = vpop.xlane.xlu0 %792
    %v794 = vsel %vm216, %v790, 0.0
    %795 = vadd.xlane.f32.xlu0 %v794
    %v796 = vpop.xlane.xlu0 %795
    %v797 = vrcp.pop %v793
    %v798 = vrcp.pop %v796
    %v799 = vmul.f32 %v788, %v797
    %v800 = vmul.f32 %v790, %v798
    %801 = vrot.lane.b32.xlu0 %v116, 48
    %v802 = vpop.permute.xlu0 %801
    %803 = vrot.lane.b32.xlu0 %v119, 48
    %v804 = vpop.permute.xlu0 %803
    %v808 = vsel %vm216, %v799, 0
    %v811 = vsel %vm216, %v800, 0
    %813 = vmatprep.subr.mxu0 0.0
    %814 = vmatpush1.msra.mxu0 %v802
    %815 = vmatprep.subr.mxu0 0.0
    %816 = vmatpush1.msra.mxu0 %v804
    %817 = vmatprep.subr.mxu0 0.0
    %818 = vmatpush1.msra.mxu0 0.0
    %819 = vmatprep.subr.mxu0 0.0
    %820 = vmatpush1.msra.mxu0 0.0
    %821 = vmatprep.subr.mxu0 0.0
    %822 = vmatpush1.msra.mxu0 0.0
    %823 = vmatprep.subr.mxu0 0.0
    %824 = vmatpush1.msra.mxu0 0.0
    %825 = vmatprep.subr.mxu0 0.0
    %826 = vmatpush1.msra.mxu0 0.0
    %827 = vmatprep.subr.mxu0 0.0
    %828 = vmatpush1.msra.mxu0 0.0
    %829 = vmatprep.subr.mxu0 0.0
    %830 = vmatpush1.msra.mxu0 0.0
    %831 = vmatprep.subr.mxu0 0.0
    %832 = vmatpush1.msra.mxu0 0.0
    %833 = vmatprep.subr.mxu0 0.0
    %834 = vmatpush1.msra.mxu0 0.0
    %835 = vmatprep.subr.mxu0 0.0
    %836 = vmatpush1.msra.mxu0 0.0
    %837 = vmatprep.subr.mxu0 0.0
    %838 = vmatpush1.msra.mxu0 0.0
    %839 = vmatprep.subr.mxu0 0.0
    %840 = vmatpush1.msra.mxu0 0.0
    %841 = vmatprep.subr.mxu0 0.0
    %842 = vmatpush1.msra.mxu0 0.0
    %843 = vmatprep.subr.mxu0 0.0
    %844 = vmatpush1.msra.mxu0 0.0
    %845 = vmatprep.subr.mxu0 0.0
    %846 = vmatpush1.msra.mxu0 0.0
    %847 = vmatprep.subr.mxu0 0.0
    %848 = vmatpush1.msra.mxu0 0.0
    %849 = vmatprep.subr.mxu0 0.0
    %850 = vmatpush1.msra.mxu0 0.0
    %851 = vmatprep.subr.mxu0 0.0
    %852 = vmatpush1.msra.mxu0 0.0
    %853 = vmatprep.subr.mxu0 0.0
    %854 = vmatpush1.msra.mxu0 0.0
    %855 = vmatprep.subr.mxu0 0.0
    %856 = vmatpush1.msra.mxu0 0.0
    %857 = vmatprep.subr.mxu0 0.0
    %858 = vmatpush1.msra.mxu0 0.0
    %859 = vmatprep.subr.mxu0 0.0
    %860 = vmatpush1.msra.mxu0 0.0
    %861 = vmatprep.subr.mxu0 0.0
    %862 = vmatpush1.msra.mxu0 0.0
    %863 = vmatprep.subr.mxu0 0.0
    %864 = vmatpush1.msra.mxu0 0.0
    %865 = vmatprep.subr.mxu0 0.0
    %866 = vmatpush1.msra.mxu0 0.0
    %867 = vmatprep.subr.mxu0 0.0
    %868 = vmatpush1.msra.mxu0 0.0
    %869 = vmatprep.subr.mxu0 0.0
    %870 = vmatpush1.msra.mxu0 0.0
    %871 = vmatprep.subr.mxu0 0.0
    %872 = vmatpush1.msra.mxu0 0.0
    %873 = vmatprep.subr.mxu0 0.0
    %874 = vmatpush1.msra.mxu0 0.0
    %875 = vmatprep.subr.mxu0 0.0
    %876 = vmatpush1.msra.mxu0 0.0
    %877 = vmatprep.mubr.f32.mxu0 0.0
    %878 = vmatmul.mubr.f32.gmra.mrb[0].mxu0 %v808
    %v879 = vpop.f32.mrb[0].mxu0
    %v880 = vadd.f32 0.0, %v879
    %v881 = vpop.f32.mrb[0].mxu0
    %882 = vmatprep.mubr.f32.mxu0 0.0
    %883 = vmatmul.mubr.f32.gmra.mrb[0].mxu0 %v811
    %v884 = vpop.f32.mrb[0].mxu0
    %v885 = vadd.f32 0.0, %v884
    %v886 = vpop.f32.mrb[0].mxu0
    %887 = vdwg.mxu0
    %v889 = vsel %vm132, %v880, 0
    %v892 = vsel %vm132, %v885, 0
    %894 = vmatprep.subr.mxu0 0.0
    %895 = vmatpush1.msra.mxu0 %v124
    %896 = vmatprep.subr.mxu0 0.0
    %897 = vmatpush1.msra.mxu0 0.0
    %898 = vmatprep.subr.mxu0 0.0
    %899 = vmatpush1.msra.mxu0 0.0
    %900 = vmatprep.subr.mxu0 0.0
    %901 = vmatpush1.msra.mxu0 0.0
    %902 = vmatprep.subr.mxu0 0.0
    %903 = vmatpush1.msra.mxu0 0.0
    %904 = vmatprep.subr.mxu0 0.0
    %905 = vmatpush1.msra.mxu0 0.0
    %906 = vmatprep.subr.mxu0 0.0
    %907 = vmatpush1.msra.mxu0 0.0
    %908 = vmatprep.subr.mxu0 0.0
    %909 = vmatpush1.msra.mxu0 0.0
    %910 = vmatprep.subr.mxu0 0.0
    %911 = vmatpush1.msra.mxu0 0.0
    %912 = vmatprep.subr.mxu0 0.0
    %913 = vmatpush1.msra.mxu0 0.0
    %914 = vmatprep.subr.mxu0 0.0
    %915 = vmatpush1.msra.mxu0 0.0
    %916 = vmatprep.subr.mxu0 0.0
    %917 = vmatpush1.msra.mxu0 0.0
    %918 = vmatprep.subr.mxu0 0.0
    %919 = vmatpush1.msra.mxu0 0.0
    %920 = vmatprep.subr.mxu0 0.0
    %921 = vmatpush1.msra.mxu0 0.0
    %922 = vmatprep.subr.mxu0 0.0
    %923 = vmatpush1.msra.mxu0 0.0
    %924 = vmatprep.subr.mxu0 0.0
    %925 = vmatpush1.msra.mxu0 0.0
    %926 = vmatprep.subr.mxu0 0.0
    %927 = vmatpush1.msra.mxu0 0.0
    %928 = vmatprep.subr.mxu0 0.0
    %929 = vmatpush1.msra.mxu0 0.0
    %930 = vmatprep.subr.mxu0 0.0
    %931 = vmatpush1.msra.mxu0 0.0
    %932 = vmatprep.subr.mxu0 0.0
    %933 = vmatpush1.msra.mxu0 0.0
    %934 = vmatprep.subr.mxu0 0.0
    %935 = vmatpush1.msra.mxu0 0.0
    %936 = vmatprep.subr.mxu0 0.0
    %937 = vmatpush1.msra.mxu0 0.0
    %938 = vmatprep.subr.mxu0 0.0
    %939 = vmatpush1.msra.mxu0 0.0
    %940 = vmatprep.subr.mxu0 0.0
    %941 = vmatpush1.msra.mxu0 0.0
    %942 = vmatprep.subr.mxu0 0.0
    %943 = vmatpush1.msra.mxu0 0.0
    %944 = vmatprep.subr.mxu0 0.0
    %945 = vmatpush1.msra.mxu0 0.0
    %946 = vmatprep.subr.mxu0 0.0
    %947 = vmatpush1.msra.mxu0 0.0
    %948 = vmatprep.subr.mxu0 0.0
    %949 = vmatpush1.msra.mxu0 0.0
    %950 = vmatprep.subr.mxu0 0.0
    %951 = vmatpush1.msra.mxu0 0.0
    %952 = vmatprep.subr.mxu0 0.0
    %953 = vmatpush1.msra.mxu0 0.0
    %954 = vmatprep.subr.mxu0 0.0
    %955 = vmatpush1.msra.mxu0 0.0
    %956 = vmatprep.subr.mxu0 0.0
    %957 = vmatpush1.msra.mxu0 0.0
    %958 = vmatprep.mubr.f32.mxu0 0.0
    %959 = vmatmul.mubr.f32.gmra.mrb[0].mxu0 %v889
    %v960 = vpop.f32.mrb[0].mxu0
    %v961 = vadd.f32 0.0, %v960
    %v962 = vpop.f32.mrb[0].mxu0
    %963 = vmatprep.mubr.f32.mxu0 0.0
    %964 = vmatmul.mubr.f32.gmra.mrb[0].mxu0 %v892
    %v965 = vpop.f32.mrb[0].mxu0
    %v966 = vadd.f32 0.0, %v965
    %v967 = vpop.f32.mrb[0].mxu0
    %968 = vdwg.mxu0
    %v969 = vadd.f32 %v680, %v961
    %v970 = vadd.f32 %v685, %v966
    %971 = vrot.lane.b32.xlu0 %v116, 104
    %v972 = vpop.permute.xlu0 %971
    %973 = vrot.lane.b32.xlu0 %v119, 104
    %v974 = vpop.permute.xlu0 %973
    %975 = vrot.lane.b32.xlu0 %v116, 72
    %v976 = vpop.permute.xlu0 %975
    %977 = vrot.lane.b32.xlu0 %v119, 72
    %v978 = vpop.permute.xlu0 %977
    %v979 = vsel %vm132, %v972, 0
    %v981 = vsel %vm132, %v974, 0
    %v983 = vsel %vm132, %v976, 0
    %v985 = vsel %vm132, %v978, 0
    %987 = vmatprep.subr.mxu0 0.0
    %988 = vmatpush1.xpose.msra.mxu0 %v983
    %989 = vmatprep.subr.mxu0 0.0
    %990 = vmatpush1.xpose.msra.mxu0 %v985
    %991 = vmatprep.subr.mxu0 0.0
    %992 = vmatpush1.xpose.msra.mxu0 0.0
    %993 = vmatprep.subr.mxu0 0.0
    %994 = vmatpush1.xpose.msra.mxu0 0.0
    %995 = vmatprep.subr.mxu0 0.0
    %996 = vmatpush1.xpose.msra.mxu0 0.0
    %997 = vmatprep.subr.mxu0 0.0
    %998 = vmatpush1.xpose.msra.mxu0 0.0
    %999 = vmatprep.subr.mxu0 0.0
    %1000 = vmatpush1.xpose.msra.mxu0 0.0
    %1001 = vmatprep.subr.mxu0 0.0
    %1002 = vmatpush1.xpose.msra.mxu0 0.0
    %1003 = vmatprep.subr.mxu0 0.0
    %1004 = vmatpush1.xpose.msra.mxu0 0.0
    %1005 = vmatprep.subr.mxu0 0.0
    %1006 = vmatpush1.xpose.msra.mxu0 0.0
    %1007 = vmatprep.subr.mxu0 0.0
    %1008 = vmatpush1.xpose.msra.mxu0 0.0
    %1009 = vmatprep.subr.mxu0 0.0
    %1010 = vmatpush1.xpose.msra.mxu0 0.0
    %1011 = vmatprep.subr.mxu0 0.0
    %1012 = vmatpush1.xpose.msra.mxu0 0.0
    %1013 = vmatprep.subr.mxu0 0.0
    %1014 = vmatpush1.xpose.msra.mxu0 0.0
    %1015 = vmatprep.subr.mxu0 0.0
    %1016 = vmatpush1.xpose.msra.mxu0 0.0
    %1017 = vmatprep.subr.mxu0 0.0
    %1018 = vmatpush1.xpose.msra.mxu0 0.0
    %1019 = vmatprep.subr.mxu0 0.0
    %1020 = vmatpush1.xpose.msra.mxu0 0.0
    %1021 = vmatprep.subr.mxu0 0.0
    %1022 = vmatpush1.xpose.msra.mxu0 0.0
    %1023 = vmatprep.subr.mxu0 0.0
    %1024 = vmatpush1.xpose.msra.mxu0 0.0
    %1025 = vmatprep.subr.mxu0 0.0
    %1026 = vmatpush1.xpose.msra.mxu0 0.0
    %1027 = vmatprep.subr.mxu0 0.0
    %1028 = vmatpush1.xpose.msra.mxu0 0.0
    %1029 = vmatprep.subr.mxu0 0.0
    %1030 = vmatpush1.xpose.msra.mxu0 0.0
    %1031 = vmatprep.subr.mxu0 0.0
    %1032 = vmatpush1.xpose.msra.mxu0 0.0
    %1033 = vmatprep.subr.mxu0 0.0
    %1034 = vmatpush1.xpose.msra.mxu0 0.0
    %1035 = vmatprep.subr.mxu0 0.0
    %1036 = vmatpush1.xpose.msra.mxu0 0.0
    %1037 = vmatprep.subr.mxu0 0.0
    %1038 = vmatpush1.xpose.msra.mxu0 0.0
    %1039 = vmatprep.subr.mxu0 0.0
    %1040 = vmatpush1.xpose.msra.mxu0 0.0
    %1041 = vmatprep.subr.mxu0 0.0
    %1042 = vmatpush1.xpose.msra.mxu0 0.0
    %1043 = vmatprep.subr.mxu0 0.0
    %1044 = vmatpush1.xpose.msra.mxu0 0.0
    %1045 = vmatprep.subr.mxu0 0.0
    %1046 = vmatpush1.xpose.msra.mxu0 0.0
    %1047 = vmatprep.subr.mxu0 0.0
    %1048 = vmatpush1.xpose.msra.mxu0 0.0
    %1049 = vmatprep.subr.mxu0 0.0
    %1050 = vmatpush1.xpose.msra.mxu0 0.0
    %1051 = vmatprep.mubr.f32.mxu0 0.0
    %1052 = vmatmul.mubr.f32.gmra.mrb[0].mxu0 %v979
    %v1053 = vpop.f32.mrb[0].mxu0
    %v1054 = vadd.f32 %v51, %v1053
    %v1055 = vpop.f32.mrb[0].mxu0
    %1056 = vmatprep.mubr.f32.mxu0 0.0
    %1057 = vmatmul.mubr.f32.gmra.mrb[0].mxu0 %v981
    %v1058 = vpop.f32.mrb[0].mxu0
    %v1059 = vadd.f32 %v52, %v1058
    %v1060 = vpop.f32.mrb[0].mxu0
    %1061 = vdwg.mxu0
    %v1062 = vsel %vm216, %v1054, -inf
    %1063 = vmax.xlane.f32.xlu0 %v1062
    %v1064 = vpop.xlane.xlu0 %1063
    %v1065 = vsel %vm216, %v1059, -inf
    %1066 = vmax.xlane.f32.xlu0 %v1065
    %v1067 = vpop.xlane.xlu0 %1066
    %v1068 = vsub.f32 %v1054, %v1064
    %v1069 = vsub.f32 %v1059, %v1067
    %v1070 = vmul.f32 %v1068, 1.442695
    %v1071 = vpow.pop %v1070
    %v1072 = vmul.f32 %v1069, 1.442695
    %v1073 = vpow.pop %v1072
    %v1074 = vsel %vm216, %v1071, 0.0
    %1075 = vadd.xlane.f32.xlu0 %v1074
    %v1076 = vpop.xlane.xlu0 %1075
    %v1077 = vsel %vm216, %v1073, 0.0
    %1078 = vadd.xlane.f32.xlu0 %v1077
    %v1079 = vpop.xlane.xlu0 %1078
    %v1080 = vrcp.pop %v1076
    %v1081 = vrcp.pop %v1079
    %v1082 = vmul.f32 %v1071, %v1080
    %v1083 = vmul.f32 %v1073, %v1081
    %1084 = vrot.lane.b32.xlu0 %v116, 40
    %v1085 = vpop.permute.xlu0 %1084
    %1086 = vrot.lane.b32.xlu0 %v119, 40
    %v1087 = vpop.permute.xlu0 %1086
    %v1091 = vsel %vm216, %v1082, 0
    %v1094 = vsel %vm216, %v1083, 0
    %1096 = vmatprep.subr.mxu0 0.0
    %1097 = vmatpush1.msra.mxu0 %v1085
    %1098 = vmatprep.subr.mxu0 0.0
    %1099 = vmatpush1.msra.mxu0 %v1087
    %1100 = vmatprep.subr.mxu0 0.0
    %1101 = vmatpush1.msra.mxu0 0.0
    %1102 = vmatprep.subr.mxu0 0.0
    %1103 = vmatpush1.msra.mxu0 0.0
    %1104 = vmatprep.subr.mxu0 0.0
    %1105 = vmatpush1.msra.mxu0 0.0
    %1106 = vmatprep.subr.mxu0 0.0
    %1107 = vmatpush1.msra.mxu0 0.0
    %1108 = vmatprep.subr.mxu0 0.0
    %1109 = vmatpush1.msra.mxu0 0.0
    %1110 = vmatprep.subr.mxu0 0.0
    %1111 = vmatpush1.msra.mxu0 0.0
    %1112 = vmatprep.subr.mxu0 0.0
    %1113 = vmatpush1.msra.mxu0 0.0
    %1114 = vmatprep.subr.mxu0 0.0
    %1115 = vmatpush1.msra.mxu0 0.0
    %1116 = vmatprep.subr.mxu0 0.0
    %1117 = vmatpush1.msra.mxu0 0.0
    %1118 = vmatprep.subr.mxu0 0.0
    %1119 = vmatpush1.msra.mxu0 0.0
    %1120 = vmatprep.subr.mxu0 0.0
    %1121 = vmatpush1.msra.mxu0 0.0
    %1122 = vmatprep.subr.mxu0 0.0
    %1123 = vmatpush1.msra.mxu0 0.0
    %1124 = vmatprep.subr.mxu0 0.0
    %1125 = vmatpush1.msra.mxu0 0.0
    %1126 = vmatprep.subr.mxu0 0.0
    %1127 = vmatpush1.msra.mxu0 0.0
    %1128 = vmatprep.subr.mxu0 0.0
    %1129 = vmatpush1.msra.mxu0 0.0
    %1130 = vmatprep.subr.mxu0 0.0
    %1131 = vmatpush1.msra.mxu0 0.0
    %1132 = vmatprep.subr.mxu0 0.0
    %1133 = vmatpush1.msra.mxu0 0.0
    %1134 = vmatprep.subr.mxu0 0.0
    %1135 = vmatpush1.msra.mxu0 0.0
    %1136 = vmatprep.subr.mxu0 0.0
    %1137 = vmatpush1.msra.mxu0 0.0
    %1138 = vmatprep.subr.mxu0 0.0
    %1139 = vmatpush1.msra.mxu0 0.0
    %1140 = vmatprep.subr.mxu0 0.0
    %1141 = vmatpush1.msra.mxu0 0.0
    %1142 = vmatprep.subr.mxu0 0.0
    %1143 = vmatpush1.msra.mxu0 0.0
    %1144 = vmatprep.subr.mxu0 0.0
    %1145 = vmatpush1.msra.mxu0 0.0
    %1146 = vmatprep.subr.mxu0 0.0
    %1147 = vmatpush1.msra.mxu0 0.0
    %1148 = vmatprep.subr.mxu0 0.0
    %1149 = vmatpush1.msra.mxu0 0.0
    %1150 = vmatprep.subr.mxu0 0.0
    %1151 = vmatpush1.msra.mxu0 0.0
    %1152 = vmatprep.subr.mxu0 0.0
    %1153 = vmatpush1.msra.mxu0 0.0
    %1154 = vmatprep.subr.mxu0 0.0
    %1155 = vmatpush1.msra.mxu0 0.0
    %1156 = vmatprep.subr.mxu0 0.0
    %1157 = vmatpush1.msra.mxu0 0.0
    %1158 = vmatprep.subr.mxu0 0.0
    %1159 = vmatpush1.msra.mxu0 0.0
    %1160 = vmatprep.mubr.f32.mxu0 0.0
    %1161 = vmatmul.mubr.f32.gmra.mrb[0].mxu0 %v1091
    %v1162 = vpop.f32.mrb[0].mxu0
    %v1163 = vadd.f32 0.0, %v1162
    %v1164 = vpop.f32.mrb[0].mxu0
    %1165 = vmatprep.mubr.f32.mxu0 0.0
    %1166 = vmatmul.mubr.f32.gmra.mrb[0].mxu0 %v1094
    %v1167 = vpop.f32.mrb[0].mxu0
    %v1168 = vadd.f32 0.0, %v1167
    %v1169 = vpop.f32.mrb[0].mxu0
    %1170 = vdwg.mxu0
    %v1172 = vsel %vm132, %v1163, 0
    %v1175 = vsel %vm132, %v1168, 0
    %1177 = vmatprep.subr.mxu0 0.0
    %1178 = vmatpush1.msra.mxu0 %v125
    %1179 = vmatprep.subr.mxu0 0.0
    %1180 = vmatpush1.msra.mxu0 0.0
    %1181 = vmatprep.subr.mxu0 0.0
    %1182 = vmatpush1.msra.mxu0 0.0
    %1183 = vmatprep.subr.mxu0 0.0
    %1184 = vmatpush1.msra.mxu0 0.0
    %1185 = vmatprep.subr.mxu0 0.0
    %1186 = vmatpush1.msra.mxu0 0.0
    %1187 = vmatprep.subr.mxu0 0.0
    %1188 = vmatpush1.msra.mxu0 0.0
    %1189 = vmatprep.subr.mxu0 0.0
    %1190 = vmatpush1.msra.mxu0 0.0
    %1191 = vmatprep.subr.mxu0 0.0
    %1192 = vmatpush1.msra.mxu0 0.0
    %1193 = vmatprep.subr.mxu0 0.0
    %1194 = vmatpush1.msra.mxu0 0.0
    %1195 = vmatprep.subr.mxu0 0.0
    %1196 = vmatpush1.msra.mxu0 0.0
    %1197 = vmatprep.subr.mxu0 0.0
    %1198 = vmatpush1.msra.mxu0 0.0
    %1199 = vmatprep.subr.mxu0 0.0
    %1200 = vmatpush1.msra.mxu0 0.0
    %1201 = vmatprep.subr.mxu0 0.0
    %1202 = vmatpush1.msra.mxu0 0.0
    %1203 = vmatprep.subr.mxu0 0.0
    %1204 = vmatpush1.msra.mxu0 0.0
    %1205 = vmatprep.subr.mxu0 0.0
    %1206 = vmatpush1.msra.mxu0 0.0
    %1207 = vmatprep.subr.mxu0 0.0
    %1208 = vmatpush1.msra.mxu0 0.0
    %1209 = vmatprep.subr.mxu0 0.0
    %1210 = vmatpush1.msra.mxu0 0.0
    %1211 = vmatprep.subr.mxu0 0.0
    %1212 = vmatpush1.msra.mxu0 0.0
    %1213 = vmatprep.subr.mxu0 0.0
    %1214 = vmatpush1.msra.mxu0 0.0
    %1215 = vmatprep.subr.mxu0 0.0
    %1216 = vmatpush1.msra.mxu0 0.0
    %1217 = vmatprep.subr.mxu0 0.0
    %1218 = vmatpush1.msra.mxu0 0.0
    %1219 = vmatprep.subr.mxu0 0.0
    %1220 = vmatpush1.msra.mxu0 0.0
    %1221 = vmatprep.subr.mxu0 0.0
    %1222 = vmatpush1.msra.mxu0 0.0
    %1223 = vmatprep.subr.mxu0 0.0
    %1224 = vmatpush1.msra.mxu0 0.0
    %1225 = vmatprep.subr.mxu0 0.0
    %1226 = vmatpush1.msra.mxu0 0.0
    %1227 = vmatprep.subr.mxu0 0.0
    %1228 = vmatpush1.msra.mxu0 0.0
    %1229 = vmatprep.subr.mxu0 0.0
    %1230 = vmatpush1.msra.mxu0 0.0
    %1231 = vmatprep.subr.mxu0 0.0
    %1232 = vmatpush1.msra.mxu0 0.0
    %1233 = vmatprep.subr.mxu0 0.0
    %1234 = vmatpush1.msra.mxu0 0.0
    %1235 = vmatprep.subr.mxu0 0.0
    %1236 = vmatpush1.msra.mxu0 0.0
    %1237 = vmatprep.subr.mxu0 0.0
    %1238 = vmatpush1.msra.mxu0 0.0
    %1239 = vmatprep.subr.mxu0 0.0
    %1240 = vmatpush1.msra.mxu0 0.0
    %1241 = vmatprep.mubr.f32.mxu0 0.0
    %1242 = vmatmul.mubr.f32.gmra.mrb[0].mxu0 %v1172
    %v1243 = vpop.f32.mrb[0].mxu0
    %v1244 = vadd.f32 0.0, %v1243
    %v1245 = vpop.f32.mrb[0].mxu0
    %1246 = vmatprep.mubr.f32.mxu0 0.0
    %1247 = vmatmul.mubr.f32.gmra.mrb[0].mxu0 %v1175
    %v1248 = vpop.f32.mrb[0].mxu0
    %v1249 = vadd.f32 0.0, %v1248
    %v1250 = vpop.f32.mrb[0].mxu0
    %1251 = vdwg.mxu0
    %v1252 = vadd.f32 %v969, %v1244
    %v1253 = vadd.f32 %v970, %v1249
    %v1254 = vld [vmem:[%s5] sm:$0x1]
    %v1256 = vlaneseq
    %v1257 = vshrl.u32 %v1256, 7
    %v1258 = vsub.s32 0, %v1257
    %v1259 = vrot.slane %v1254, %v1258
    %v1261 = vadd.f32 %v1252, %v1259
    %v1262 = vadd.f32 %v1253, %v1259
    %v1263 = vadd.f32 %v49, %v1261
    %v1264 = vadd.f32 %v50, %v1262
    %v1265 = vld [vmem:[%s6] sm:$0x1]
    %v1266 = vld [vmem:[%s7] sm:$0x1]
    %v1267 = vsel %vm77, %v1263, 0.0
    %1268 = vadd.xlane.f32.xlu0 %v1267
    %v1269 = vpop.xlane.xlu0 %1268
    %v1270 = vsel %vm77, %v1264, 0.0
    %1271 = vadd.xlane.f32.xlu0 %v1270
    %v1272 = vpop.xlane.xlu0 %1271
    %v1273 = vrcp.pop 32.0
    %v1274 = vmul.f32 %v1269, %v1273
    %v1275 = vmul.f32 %v1272, %v1273
    %v1276 = vsub.f32 %v1263, %v1274
    %v1277 = vsub.f32 %v1264, %v1275
    %v1278 = vmul.f32 %v1276, %v1276
    %v1279 = vmul.f32 %v1277, %v1277
    %v1280 = vsel %vm77, %v1278, 0.0
    %1281 = vadd.xlane.f32.xlu0 %v1280
    %v1282 = vpop.xlane.xlu0 %1281
    %v1283 = vsel %vm77, %v1279, 0.0
    %1284 = vadd.xlane.f32.xlu0 %v1283
    %v1285 = vpop.xlane.xlu0 %1284
    %v1286 = vmul.f32 %v1282, %v1273
    %v1287 = vmul.f32 %v1285, %v1273
    %v1288 = vadd.f32 %v1286, 1e-05
    %v1289 = vadd.f32 %v1287, 1e-05
    %v1290 = vrsqrt.pop %v1288
    %v1291 = vrsqrt.pop %v1289
    %v1292 = vmul.f32 %v1276, %v1290
    %v1293 = vmul.f32 %v1277, %v1291
    %v1295 = vlaneseq
    %v1296 = vshrl.u32 %v1295, 7
    %v1297 = vsub.s32 0, %v1296
    %v1298 = vrot.slane %v1265, %v1297
    %v1300 = vmul.f32 %v1292, %v1298
    %v1301 = vmul.f32 %v1293, %v1298
    %v1303 = vlaneseq
    %v1304 = vshrl.u32 %v1303, 7
    %v1305 = vsub.s32 0, %v1304
    %v1306 = vrot.slane %v1266, %v1305
    %v1308 = vadd.f32 %v1300, %v1306
    %v1309 = vadd.f32 %v1301, %v1306
    %v1310 = vpack.c.bf16 %v1309, %v1308
    %v1311 = vld [vmem:[%s8] sm:$0xf]
    %v1312 = vld [vmem:[%s8 + $0x4] sm:$0xf]
    %v1313 = vld [vmem:[%s8 + $0x8] sm:$0xf]
    %v1314 = vld [vmem:[%s8 + $0xc] sm:$0xf]
    %v1315 = vld [vmem:[%s9] sm:$0x1]
    %v1317 = vlaneseq
    %v1318 = vshrl.u32 %v1317, 7
    %v1319 = vsub.s32 0, %v1318
    %v1320 = vrot.slane %v1315, %v1319
    %v1326 = vunpack.c.l.b16 %v1311
    %v1327 = vunpack.c.l.b16 %v1312
    %v1328 = vunpack.c.l.b16 %v1313
    %v1329 = vunpack.c.l.b16 %v1314
    %v1330 = vpack.c.b16 %v1327, %v1326
    %v1331 = vpack.c.b16 %v1329, %v1328
    %v1335 = vsel %vm77, %v1310, 0
    %1337 = vmatprep.subr.bf16.mxu0 0
    %1338 = vmatpush1.bf16.msra.mxu0 %v1330
    %1339 = vmatprep.subr.bf16.mxu0 0
    %1340 = vmatpush1.bf16.msra.mxu0 %v1331
    %1341 = vmatprep.subr.bf16.mxu0 0
    %1342 = vmatpush1.bf16.msra.mxu0 0
    %1343 = vmatprep.subr.bf16.mxu0 0
    %1344 = vmatpush1.bf16.msra.mxu0 0
    %1345 = vmatprep.subr.bf16.mxu0 0
    %1346 = vmatpush1.bf16.msra.mxu0 0
    %1347 = vmatprep.subr.bf16.mxu0 0
    %1348 = vmatpush1.bf16.msra.mxu0 0
    %1349 = vmatprep.subr.bf16.mxu0 0
    %1350 = vmatpush1.bf16.msra.mxu0 0
    %1351 = vmatprep.subr.bf16.mxu0 0
    %1352 = vmatpush1.bf16.msra.mxu0 0
    %1353 = vmatprep.subr.bf16.mxu0 0
    %1354 = vmatpush1.bf16.msra.mxu0 0
    %1355 = vmatprep.subr.bf16.mxu0 0
    %1356 = vmatpush1.bf16.msra.mxu0 0
    %1357 = vmatprep.subr.bf16.mxu0 0
    %1358 = vmatpush1.bf16.msra.mxu0 0
    %1359 = vmatprep.subr.bf16.mxu0 0
    %1360 = vmatpush1.bf16.msra.mxu0 0
    %1361 = vmatprep.subr.bf16.mxu0 0
    %1362 = vmatpush1.bf16.msra.mxu0 0
    %1363 = vmatprep.subr.bf16.mxu0 0
    %1364 = vmatpush1.bf16.msra.mxu0 0
    %1365 = vmatprep.subr.bf16.mxu0 0
    %1366 = vmatpush1.bf16.msra.mxu0 0
    %1367 = vmatprep.subr.bf16.mxu0 0
    %1368 = vmatpush1.bf16.msra.mxu0 0
    %1369 = vmatprep.mubr.bf16.mxu0 0
    %1370 = vmatmul.mubr.bf16.gmra.mrb[0].mxu0 %v1335
    %v1371 = vpop.f32.mrb[0].mxu0
    %v1372 = vadd.f32 %v1320, %v1371
    %v1373 = vpop.f32.mrb[0].mxu0
    %v1374 = vpop.f32.mrb[0].mxu0
    %v1375 = vadd.f32 %v1320, %v1374
    %v1376 = vpop.f32.mrb[0].mxu0
    %1377 = vdwg.mxu0
    %v1378 = vmax.f32 %v1372, 0.0
    %v1379 = vmax.f32 %v1375, 0.0
    %v1380 = vpack.c.bf16 %v1379, %v1378
    %v1381 = vld [vmem:[%s10] sm:$0xf]
    %v1382 = vld [vmem:[%s10 + $0x4] sm:$0xf]
    %v1383 = vld [vmem:[%s10 + $0x8] sm:$0xf]
    %v1384 = vld [vmem:[%s10 + $0xc] sm:$0xf]
    %v1385 = vld [vmem:[%s10 + $0x10] sm:$0xf]
    %v1386 = vld [vmem:[%s10 + $0x14] sm:$0xf]
    %v1387 = vld [vmem:[%s10 + $0x18] sm:$0xf]
    %v1388 = vld [vmem:[%s10 + $0x1c] sm:$0xf]
    %v1389 = vld [vmem:[%s11] sm:$0x1]
    %v1391 = vlaneseq
    %v1392 = vshrl.u32 %v1391, 7
    %v1393 = vsub.s32 0, %v1392
    %v1394 = vrot.slane %v1389, %v1393
    %v1404 = vunpack.c.l.b16 %v1381
    %v1405 = vunpack.c.l.b16 %v1382
    %v1406 = vunpack.c.l.b16 %v1383
    %v1407 = vunpack.c.l.b16 %v1384
    %v1408 = vunpack.c.l.b16 %v1385
    %v1409 = vunpack.c.l.b16 %v1386
    %v1410 = vunpack.c.l.b16 %v1387
    %v1411 = vunpack.c.l.b16 %v1388
    %v1412 = vpack.c.b16 %v1405, %v1404
    %v1413 = vpack.c.b16 %v1407, %v1406
    %v1414 = vpack.c.b16 %v1409, %v1408
    %v1415 = vpack.c.b16 %v1411, %v1410
    %vm1420 = vcmask 523264
    %v1422 = vsel %vm1420, %v1380, 0
    %1424 = vmatprep.subr.bf16.mxu0 0
    %1425 = vmatpush1.bf16.msra.mxu0 %v1412
    %1426 = vmatprep.subr.bf16.mxu0 0
    %1427 = vmatpush1.bf16.msra.mxu0 %v1413
    %1428 = vmatprep.subr.bf16.mxu0 0
    %1429 = vmatpush1.bf16.msra.mxu0 %v1414
    %1430 = vmatprep.subr.bf16.mxu0 0
    %1431 = vmatpush1.bf16.msra.mxu0 %v1415
    %1432 = vmatprep.subr.bf16.mxu0 0
    %1433 = vmatpush1.bf16.msra.mxu0 0
    %1434 = vmatprep.subr.bf16.mxu0 0
    %1435 = vmatpush1.bf16.msra.mxu0 0
    %1436 = vmatprep.subr.bf16.mxu0 0
    %1437 = vmatpush1.bf16.msra.mxu0 0
    %1438 = vmatprep.subr.bf16.mxu0 0
    %1439 = vmatpush1.bf16.msra.mxu0 0
    %1440 = vmatprep.subr.bf16.mxu0 0
    %1441 = vmatpush1.bf16.msra.mxu0 0
    %1442 = vmatprep.subr.bf16.mxu0 0
    %1443 = vmatpush1.bf16.msra.mxu0 0
    %1444 = vmatprep.subr.bf16.mxu0 0
    %1445 = vmatpush1.bf16.msra.mxu0 0
    %1446 = vmatprep.subr.bf16.mxu0 0
    %1447 = vmatpush1.bf16.msra.mxu0 0
    %1448 = vmatprep.subr.bf16.mxu0 0
    %1449 = vmatpush1.bf16.msra.mxu0 0
    %1450 = vmatprep.subr.bf16.mxu0 0
    %1451 = vmatpush1.bf16.msra.mxu0 0
    %1452 = vmatprep.subr.bf16.mxu0 0
    %1453 = vmatpush1.bf16.msra.mxu0 0
    %1454 = vmatprep.subr.bf16.mxu0 0
    %1455 = vmatpush1.bf16.msra.mxu0 0
    %1456 = vmatprep.mubr.bf16.mxu0 0
    %1457 = vmatmul.mubr.bf16.gmra.mrb[0].mxu0 %v1422
    %v1458 = vpop.f32.mrb[0].mxu0
    %v1459 = vadd.f32 %v1394, %v1458
    %v1460 = vpop.f32.mrb[0].mxu0
    %v1461 = vpop.f32.mrb[0].mxu0
    %v1462 = vadd.f32 %v1394, %v1461
    %v1463 = vpop.f32.mrb[0].mxu0
    %1464 = vdwg.mxu0
    %v1465 = vadd.f32 %v1308, %v1459
    %v1466 = vadd.f32 %v1309, %v1462
    %v1467 = vld [vmem:[%s12] sm:$0x1]
    %v1468 = vld [vmem:[%s13] sm:$0x1]
    %v1469 = vsel %vm77, %v1465, 0.0
    %1470 = vadd.xlane.f32.xlu0 %v1469
    %v1471 = vpop.xlane.xlu0 %1470
    %v1472 = vsel %vm77, %v1466, 0.0
    %1473 = vadd.xlane.f32.xlu0 %v1472
    %v1474 = vpop.xlane.xlu0 %1473
    %v1475 = vmul.f32 %v1471, %v1273
    %v1476 = vmul.f32 %v1474, %v1273
    %v1477 = vsub.f32 %v1465, %v1475
    %v1478 = vsub.f32 %v1466, %v1476
    %v1479 = vmul.f32 %v1477, %v1477
    %v1480 = vmul.f32 %v1478, %v1478
    %v1481 = vsel %vm77, %v1479, 0.0
    %1482 = vadd.xlane.f32.xlu0 %v1481
    %v1483 = vpop.xlane.xlu0 %1482
    %v1484 = vsel %vm77, %v1480, 0.0
    %1485 = vadd.xlane.f32.xlu0 %v1484
    %v1486 = vpop.xlane.xlu0 %1485
    %v1487 = vmul.f32 %v1483, %v1273
    %v1488 = vmul.f32 %v1486, %v1273
    %v1489 = vadd.f32 %v1487, 1e-05
    %v1490 = vadd.f32 %v1488, 1e-05
    %v1491 = vrsqrt.pop %v1489
    %v1492 = vrsqrt.pop %v1490
    %v1493 = vmul.f32 %v1477, %v1491
    %v1494 = vmul.f32 %v1478, %v1492
    %v1496 = vlaneseq
    %v1497 = vshrl.u32 %v1496, 7
    %v1498 = vsub.s32 0, %v1497
    %v1499 = vrot.slane %v1467, %v1498
    %v1501 = vmul.f32 %v1493, %v1499
    %v1502 = vmul.f32 %v1494, %v1499
    %v1504 = vlaneseq
    %v1505 = vshrl.u32 %v1504, 7
    %v1506 = vsub.s32 0, %v1505
    %v1507 = vrot.slane %v1468, %v1506
    %v1509 = vadd.f32 %v1501, %v1507
    %v1510 = vadd.f32 %v1502, %v1507
    %v1511 = vpack.c.bf16 %v1510, %v1509
    %s1512 = scalar_lea.vmem %s2, 16
    %v1513 = vld [vmem:[%s1512] sm:$0xf]
    %v1514 = vld [vmem:[%s1512 + $0x4] sm:$0xf]
    %v1515 = vld [vmem:[%s1512 + $0x8] sm:$0xf]
    %v1516 = vld [vmem:[%s1512 + $0xc] sm:$0xf]
    %s1517 = scalar_lea.vmem %s3, 1
    %v1518 = vld [vmem:[%s1517] sm:$0x1]
    %v1520 = vlaneseq
    %v1521 = vshrl.u32 %v1520, 7
    %v1522 = vsub.s32 0, %v1521
    %v1523 = vrot.slane %v1518, %v1522
    %v1529 = vunpack.c.l.b16 %v1513
    %v1530 = vunpack.c.l.b16 %v1514
    %v1531 = vunpack.c.l.b16 %v1515
    %v1532 = vunpack.c.l.b16 %v1516
    %v1533 = vpack.c.b16 %v1530, %v1529
    %v1534 = vpack.c.b16 %v1532, %v1531
    %v1538 = vsel %vm77, %v1511, 0
    %1540 = vmatprep.subr.bf16.mxu0 0
    %1541 = vmatpush1.bf16.msra.mxu0 %v1533
    %1542 = vmatprep.subr.bf16.mxu0 0
    %1543 = vmatpush1.bf16.msra.mxu0 %v1534
    %1544 = vmatprep.subr.bf16.mxu0 0
    %1545 = vmatpush1.bf16.msra.mxu0 0
    %1546 = vmatprep.subr.bf16.mxu0 0
    %1547 = vmatpush1.bf16.msra.mxu0 0
    %1548 = vmatprep.subr.bf16.mxu0 0
    %1549 = vmatpush1.bf16.msra.mxu0 0
    %1550 = vmatprep.subr.bf16.mxu0 0
    %1551 = vmatpush1.bf16.msra.mxu0 0
    %1552 = vmatprep.subr.bf16.mxu0 0
    %1553 = vmatpush1.bf16.msra.mxu0 0
    %1554 = vmatprep.subr.bf16.mxu0 0
    %1555 = vmatpush1.bf16.msra.mxu0 0
    %1556 = vmatprep.subr.bf16.mxu0 0
    %1557 = vmatpush1.bf16.msra.mxu0 0
    %1558 = vmatprep.subr.bf16.mxu0 0
    %1559 = vmatpush1.bf16.msra.mxu0 0
    %1560 = vmatprep.subr.bf16.mxu0 0
    %1561 = vmatpush1.bf16.msra.mxu0 0
    %1562 = vmatprep.subr.bf16.mxu0 0
    %1563 = vmatpush1.bf16.msra.mxu0 0
    %1564 = vmatprep.subr.bf16.mxu0 0
    %1565 = vmatpush1.bf16.msra.mxu0 0
    %1566 = vmatprep.subr.bf16.mxu0 0
    %1567 = vmatpush1.bf16.msra.mxu0 0
    %1568 = vmatprep.subr.bf16.mxu0 0
    %1569 = vmatpush1.bf16.msra.mxu0 0
    %1570 = vmatprep.subr.bf16.mxu0 0
    %1571 = vmatpush1.bf16.msra.mxu0 0
    %1572 = vmatprep.mubr.bf16.mxu0 0
    %1573 = vmatmul.mubr.bf16.gmra.mrb[0].mxu0 %v1538
    %v1574 = vpop.f32.mrb[0].mxu0
    %v1575 = vadd.f32 %v1523, %v1574
    %v1576 = vpop.f32.mrb[0].mxu0
    %v1577 = vpop.f32.mrb[0].mxu0
    %v1578 = vadd.f32 %v1523, %v1577
    %v1579 = vpop.f32.mrb[0].mxu0
    %1580 = vdwg.mxu0
    %s1581 = scalar_lea.vmem %s4, 32
    %v1582 = vld [vmem:[%s1581] sm:$0xff]
    %v1583 = vld [vmem:[%s1581 + $0x8] sm:$0xff]
    %v1584 = vld [vmem:[%s1581 + $0x10] sm:$0xff]
    %v1585 = vld [vmem:[%s1581 + $0x18] sm:$0xff]
    %1588 = vrot.lane.b32.xlu0 %v1575, 96
    %v1589 = vpop.permute.xlu0 %1588
    %1590 = vrot.lane.b32.xlu0 %v1578, 96
    %v1591 = vpop.permute.xlu0 %1590
    %v1592 = vsel %vm132, %v1575, 0
    %v1594 = vsel %vm132, %v1578, 0
    %v1596 = vsel %vm132, %v1589, 0
    %v1598 = vsel %vm132, %v1591, 0
    %1600 = vmatprep.subr.mxu0 0.0
    %1601 = vmatpush1.xpose.msra.mxu0 %v1596
    %1602 = vmatprep.subr.mxu0 0.0
    %1603 = vmatpush1.xpose.msra.mxu0 %v1598
    %1604 = vmatprep.subr.mxu0 0.0
    %1605 = vmatpush1.xpose.msra.mxu0 0.0
    %1606 = vmatprep.subr.mxu0 0.0
    %1607 = vmatpush1.xpose.msra.mxu0 0.0
    %1608 = vmatprep.subr.mxu0 0.0
    %1609 = vmatpush1.xpose.msra.mxu0 0.0
    %1610 = vmatprep.subr.mxu0 0.0
    %1611 = vmatpush1.xpose.msra.mxu0 0.0
    %1612 = vmatprep.subr.mxu0 0.0
    %1613 = vmatpush1.xpose.msra.mxu0 0.0
    %1614 = vmatprep.subr.mxu0 0.0
    %1615 = vmatpush1.xpose.msra.mxu0 0.0
    %1616 = vmatprep.subr.mxu0 0.0
    %1617 = vmatpush1.xpose.msra.mxu0 0.0
    %1618 = vmatprep.subr.mxu0 0.0
    %1619 = vmatpush1.xpose.msra.mxu0 0.0
    %1620 = vmatprep.subr.mxu0 0.0
    %1621 = vmatpush1.xpose.msra.mxu0 0.0
    %1622 = vmatprep.subr.mxu0 0.0
    %1623 = vmatpush1.xpose.msra.mxu0 0.0
    %1624 = vmatprep.subr.mxu0 0.0
    %1625 = vmatpush1.xpose.msra.mxu0 0.0
    %1626 = vmatprep.subr.mxu0 0.0
    %1627 = vmatpush1.xpose.msra.mxu0 0.0
    %1628 = vmatprep.subr.mxu0 0.0
    %1629 = vmatpush1.xpose.msra.mxu0 0.0
    %1630 = vmatprep.subr.mxu0 0.0
    %1631 = vmatpush1.xpose.msra.mxu0 0.0
    %1632 = vmatprep.subr.mxu0 0.0
    %1633 = vmatpush1.xpose.msra.mxu0 0.0
    %1634 = vmatprep.subr.mxu0 0.0
    %1635 = vmatpush1.xpose.msra.mxu0 0.0
    %1636 = vmatprep.subr.mxu0 0.0
    %1637 = vmatpush1.xpose.msra.mxu0 0.0
    %1638 = vmatprep.subr.mxu0 0.0
    %1639 = vmatpush1.xpose.msra.mxu0 0.0
    %1640 = vmatprep.subr.mxu0 0.0
    %1641 = vmatpush1.xpose.msra.mxu0 0.0
    %1642 = vmatprep.subr.mxu0 0.0
    %1643 = vmatpush1.xpose.msra.mxu0 0.0
    %1644 = vmatprep.subr.mxu0 0.0
    %1645 = vmatpush1.xpose.msra.mxu0 0.0
    %1646 = vmatprep.subr.mxu0 0.0
    %1647 = vmatpush1.xpose.msra.mxu0 0.0
    %1648 = vmatprep.subr.mxu0 0.0
    %1649 = vmatpush1.xpose.msra.mxu0 0.0
    %1650 = vmatprep.subr.mxu0 0.0
    %1651 = vmatpush1.xpose.msra.mxu0 0.0
    %1652 = vmatprep.subr.mxu0 0.0
    %1653 = vmatpush1.xpose.msra.mxu0 0.0
    %1654 = vmatprep.subr.mxu0 0.0
    %1655 = vmatpush1.xpose.msra.mxu0 0.0
    %1656 = vmatprep.subr.mxu0 0.0
    %1657 = vmatpush1.xpose.msra.mxu0 0.0
    %1658 = vmatprep.subr.mxu0 0.0
    %1659 = vmatpush1.xpose.msra.mxu0 0.0
    %1660 = vmatprep.subr.mxu0 0.0
    %1661 = vmatpush1.xpose.msra.mxu0 0.0
    %1662 = vmatprep.subr.mxu0 0.0
    %1663 = vmatpush1.xpose.msra.mxu0 0.0
    %1664 = vmatprep.mubr.f32.mxu0 0.0
    %1665 = vmatmul.mubr.f32.gmra.mrb[0].mxu0 %v1592
    %v1666 = vpop.f32.mrb[0].mxu0
    %v1667 = vadd.f32 %v51, %v1666
    %v1668 = vpop.f32.mrb[0].mxu0
    %1669 = vmatprep.mubr.f32.mxu0 0.0
    %1670 = vmatmul.mubr.f32.gmra.mrb[0].mxu0 %v1594
    %v1671 = vpop.f32.mrb[0].mxu0
    %v1672 = vadd.f32 %v52, %v1671
    %v1673 = vpop.f32.mrb[0].mxu0
    %1674 = vdwg.mxu0
    %v1675 = vsel %vm216, %v1667, -inf
    %1676 = vmax.xlane.f32.xlu0 %v1675
    %v1677 = vpop.xlane.xlu0 %1676
    %v1678 = vsel %vm216, %v1672, -inf
    %1679 = vmax.xlane.f32.xlu0 %v1678
    %v1680 = vpop.xlane.xlu0 %1679
    %v1681 = vsub.f32 %v1667, %v1677
    %v1682 = vsub.f32 %v1672, %v1680
    %v1683 = vmul.f32 %v1681, 1.442695
    %v1684 = vpow.pop %v1683
    %v1685 = vmul.f32 %v1682, 1.442695
    %v1686 = vpow.pop %v1685
    %v1687 = vsel %vm216, %v1684, 0.0
    %1688 = vadd.xlane.f32.xlu0 %v1687
    %v1689 = vpop.xlane.xlu0 %1688
    %v1690 = vsel %vm216, %v1686, 0.0
    %1691 = vadd.xlane.f32.xlu0 %v1690
    %v1692 = vpop.xlane.xlu0 %1691
    %v1693 = vrcp.pop %v1689
    %v1694 = vrcp.pop %v1692
    %v1695 = vmul.f32 %v1684, %v1693
    %v1696 = vmul.f32 %v1686, %v1694
    %1697 = vrot.lane.b32.xlu0 %v1575, 64
    %v1698 = vpop.permute.xlu0 %1697
    %1699 = vrot.lane.b32.xlu0 %v1578, 64
    %v1700 = vpop.permute.xlu0 %1699
    %v1704 = vsel %vm216, %v1695, 0
    %v1707 = vsel %vm216, %v1696, 0
    %1709 = vmatprep.subr.mxu0 0.0
    %1710 = vmatpush1.msra.mxu0 %v1698
    %1711 = vmatprep.subr.mxu0 0.0
    %1712 = vmatpush1.msra.mxu0 %v1700
    %1713 = vmatprep.subr.mxu0 0.0
    %1714 = vmatpush1.msra.mxu0 0.0
    %1715 = vmatprep.subr.mxu0 0.0
    %1716 = vmatpush1.msra.mxu0 0.0
    %1717 = vmatprep.subr.mxu0 0.0
    %1718 = vmatpush1.msra.mxu0 0.0
    %1719 = vmatprep.subr.mxu0 0.0
    %1720 = vmatpush1.msra.mxu0 0.0
    %1721 = vmatprep.subr.mxu0 0.0
    %1722 = vmatpush1.msra.mxu0 0.0
    %1723 = vmatprep.subr.mxu0 0.0
    %1724 = vmatpush1.msra.mxu0 0.0
    %1725 = vmatprep.subr.mxu0 0.0
    %1726 = vmatpush1.msra.mxu0 0.0
    %1727 = vmatprep.subr.mxu0 0.0
    %1728 = vmatpush1.msra.mxu0 0.0
    %1729 = vmatprep.subr.mxu0 0.0
    %1730 = vmatpush1.msra.mxu0 0.0
    %1731 = vmatprep.subr.mxu0 0.0
    %1732 = vmatpush1.msra.mxu0 0.0
    %1733 = vmatprep.subr.mxu0 0.0
    %1734 = vmatpush1.msra.mxu0 0.0
    %1735 = vmatprep.subr.mxu0 0.0
    %1736 = vmatpush1.msra.mxu0 0.0
    %1737 = vmatprep.subr.mxu0 0.0
    %1738 = vmatpush1.msra.mxu0 0.0
    %1739 = vmatprep.subr.mxu0 0.0
    %1740 = vmatpush1.msra.mxu0 0.0
    %1741 = vmatprep.subr.mxu0 0.0
    %1742 = vmatpush1.msra.mxu0 0.0
    %1743 = vmatprep.subr.mxu0 0.0
    %1744 = vmatpush1.msra.mxu0 0.0
    %1745 = vmatprep.subr.mxu0 0.0
    %1746 = vmatpush1.msra.mxu0 0.0
    %1747 = vmatprep.subr.mxu0 0.0
    %1748 = vmatpush1.msra.mxu0 0.0
    %1749 = vmatprep.subr.mxu0 0.0
    %1750 = vmatpush1.msra.mxu0 0.0
    %1751 = vmatprep.subr.mxu0 0.0
    %1752 = vmatpush1.msra.mxu0 0.0
    %1753 = vmatprep.subr.mxu0 0.0
    %1754 = vmatpush1.msra.mxu0 0.0
    %1755 = vmatprep.subr.mxu0 0.0
    %1756 = vmatpush1.msra.mxu0 0.0
    %1757 = vmatprep.subr.mxu0 0.0
    %1758 = vmatpush1.msra.mxu0 0.0
    %1759 = vmatprep.subr.mxu0 0.0
    %1760 = vmatpush1.msra.mxu0 0.0
    %1761 = vmatprep.subr.mxu0 0.0
    %1762 = vmatpush1.msra.mxu0 0.0
    %1763 = vmatprep.subr.mxu0 0.0
    %1764 = vmatpush1.msra.mxu0 0.0
    %1765 = vmatprep.subr.mxu0 0.0
    %1766 = vmatpush1.msra.mxu0 0.0
    %1767 = vmatprep.subr.mxu0 0.0
    %1768 = vmatpush1.msra.mxu0 0.0
    %1769 = vmatprep.subr.mxu0 0.0
    %1770 = vmatpush1.msra.mxu0 0.0
    %1771 = vmatprep.subr.mxu0 0.0
    %1772 = vmatpush1.msra.mxu0 0.0
    %1773 = vmatprep.mubr.f32.mxu0 0.0
    %1774 = vmatmul.mubr.f32.gmra.mrb[0].mxu0 %v1704
    %v1775 = vpop.f32.mrb[0].mxu0
    %v1776 = vadd.f32 0.0, %v1775
    %v1777 = vpop.f32.mrb[0].mxu0
    %1778 = vmatprep.mubr.f32.mxu0 0.0
    %1779 = vmatmul.mubr.f32.gmra.mrb[0].mxu0 %v1707
    %v1780 = vpop.f32.mrb[0].mxu0
    %v1781 = vadd.f32 0.0, %v1780
    %v1782 = vpop.f32.mrb[0].mxu0
    %1783 = vdwg.mxu0
    %1784 = vrot.lane.b32.xlu0 %v1575, 120
    %v1785 = vpop.permute.xlu0 %1784
    %1786 = vrot.lane.b32.xlu0 %v1578, 120
    %v1787 = vpop.permute.xlu0 %1786
    %1788 = vrot.lane.b32.xlu0 %v1575, 88
    %v1789 = vpop.permute.xlu0 %1788
    %1790 = vrot.lane.b32.xlu0 %v1578, 88
    %v1791 = vpop.permute.xlu0 %1790
    %v1792 = vsel %vm132, %v1785, 0
    %v1794 = vsel %vm132, %v1787, 0
    %v1796 = vsel %vm132, %v1789, 0
    %v1798 = vsel %vm132, %v1791, 0
    %1800 = vmatprep.subr.mxu0 0.0
    %1801 = vmatpush1.xpose.msra.mxu0 %v1796
    %1802 = vmatprep.subr.mxu0 0.0
    %1803 = vmatpush1.xpose.msra.mxu0 %v1798
    %1804 = vmatprep.subr.mxu0 0.0
    %1805 = vmatpush1.xpose.msra.mxu0 0.0
    %1806 = vmatprep.subr.mxu0 0.0
    %1807 = vmatpush1.xpose.msra.mxu0 0.0
    %1808 = vmatprep.subr.mxu0 0.0
    %1809 = vmatpush1.xpose.msra.mxu0 0.0
    %1810 = vmatprep.subr.mxu0 0.0
    %1811 = vmatpush1.xpose.msra.mxu0 0.0
    %1812 = vmatprep.subr.mxu0 0.0
    %1813 = vmatpush1.xpose.msra.mxu0 0.0
    %1814 = vmatprep.subr.mxu0 0.0
    %1815 = vmatpush1.xpose.msra.mxu0 0.0
    %1816 = vmatprep.subr.mxu0 0.0
    %1817 = vmatpush1.xpose.msra.mxu0 0.0
    %1818 = vmatprep.subr.mxu0 0.0
    %1819 = vmatpush1.xpose.msra.mxu0 0.0
    %1820 = vmatprep.subr.mxu0 0.0
    %1821 = vmatpush1.xpose.msra.mxu0 0.0
    %1822 = vmatprep.subr.mxu0 0.0
    %1823 = vmatpush1.xpose.msra.mxu0 0.0
    %1824 = vmatprep.subr.mxu0 0.0
    %1825 = vmatpush1.xpose.msra.mxu0 0.0
    %1826 = vmatprep.subr.mxu0 0.0
    %1827 = vmatpush1.xpose.msra.mxu0 0.0
    %1828 = vmatprep.subr.mxu0 0.0
    %1829 = vmatpush1.xpose.msra.mxu0 0.0
    %1830 = vmatprep.subr.mxu0 0.0
    %1831 = vmatpush1.xpose.msra.mxu0 0.0
    %1832 = vmatprep.subr.mxu0 0.0
    %1833 = vmatpush1.xpose.msra.mxu0 0.0
    %1834 = vmatprep.subr.mxu0 0.0
    %1835 = vmatpush1.xpose.msra.mxu0 0.0
    %1836 = vmatprep.subr.mxu0 0.0
    %1837 = vmatpush1.xpose.msra.mxu0 0.0
    %1838 = vmatprep.subr.mxu0 0.0
    %1839 = vmatpush1.xpose.msra.mxu0 0.0
    %1840 = vmatprep.subr.mxu0 0.0
    %1841 = vmatpush1.xpose.msra.mxu0 0.0
    %1842 = vmatprep.subr.mxu0 0.0
    %1843 = vmatpush1.xpose.msra.mxu0 0.0
    %1844 = vmatprep.subr.mxu0 0.0
    %1845 = vmatpush1.xpose.msra.mxu0 0.0
    %1846 = vmatprep.subr.mxu0 0.0
    %1847 = vmatpush1.xpose.msra.mxu0 0.0
    %1848 = vmatprep.subr.mxu0 0.0
    %1849 = vmatpush1.xpose.msra.mxu0 0.0
    %1850 = vmatprep.subr.mxu0 0.0
    %1851 = vmatpush1.xpose.msra.mxu0 0.0
    %1852 = vmatprep.subr.mxu0 0.0
    %1853 = vmatpush1.xpose.msra.mxu0 0.0
    %1854 = vmatprep.subr.mxu0 0.0
    %1855 = vmatpush1.xpose.msra.mxu0 0.0
    %1856 = vmatprep.subr.mxu0 0.0
    %1857 = vmatpush1.xpose.msra.mxu0 0.0
    %1858 = vmatprep.subr.mxu0 0.0
    %1859 = vmatpush1.xpose.msra.mxu0 0.0
    %1860 = vmatprep.subr.mxu0 0.0
    %1861 = vmatpush1.xpose.msra.mxu0 0.0
    %1862 = vmatprep.subr.mxu0 0.0
    %1863 = vmatpush1.xpose.msra.mxu0 0.0
    %1864 = vmatprep.mubr.f32.mxu0 0.0
    %1865 = vmatmul.mubr.f32.gmra.mrb[0].mxu0 %v1792
    %v1866 = vpop.f32.mrb[0].mxu0
    %v1867 = vadd.f32 %v51, %v1866
    %v1868 = vpop.f32.mrb[0].mxu0
    %1869 = vmatprep.mubr.f32.mxu0 0.0
    %1870 = vmatmul.mubr.f32.gmra.mrb[0].mxu0 %v1794
    %v1871 = vpop.f32.mrb[0].mxu0
    %v1872 = vadd.f32 %v52, %v1871
    %v1873 = vpop.f32.mrb[0].mxu0
    %1874 = vdwg.mxu0
    %v1875 = vsel %vm216, %v1867, -inf
    %1876 = vmax.xlane.f32.xlu0 %v1875
    %v1877 = vpop.xlane.xlu0 %1876
    %v1878 = vsel %vm216, %v1872, -inf
    %1879 = vmax.xlane.f32.xlu0 %v1878
    %v1880 = vpop.xlane.xlu0 %1879
    %v1881 = vsub.f32 %v1867, %v1877
    %v1882 = vsub.f32 %v1872, %v1880
    %v1883 = vmul.f32 %v1881, 1.442695
    %v1884 = vpow.pop %v1883
    %v1885 = vmul.f32 %v1882, 1.442695
    %v1886 = vpow.pop %v1885
    %v1887 = vsel %vm216, %v1884, 0.0
    %1888 = vadd.xlane.f32.xlu0 %v1887
    %v1889 = vpop.xlane.xlu0 %1888
    %v1890 = vsel %vm216, %v1886, 0.0
    %1891 = vadd.xlane.f32.xlu0 %v1890
    %v1892 = vpop.xlane.xlu0 %1891
    %v1893 = vrcp.pop %v1889
    %v1894 = vrcp.pop %v1892
    %v1895 = vmul.f32 %v1884, %v1893
    %v1896 = vmul.f32 %v1886, %v1894
    %1897 = vrot.lane.b32.xlu0 %v1575, 56
    %v1898 = vpop.permute.xlu0 %1897
    %1899 = vrot.lane.b32.xlu0 %v1578, 56
    %v1900 = vpop.permute.xlu0 %1899
    %v1904 = vsel %vm216, %v1895, 0
    %v1907 = vsel %vm216, %v1896, 0
    %1909 = vmatprep.subr.mxu0 0.0
    %1910 = vmatpush1.msra.mxu0 %v1898
    %1911 = vmatprep.subr.mxu0 0.0
    %1912 = vmatpush1.msra.mxu0 %v1900
    %1913 = vmatprep.subr.mxu0 0.0
    %1914 = vmatpush1.msra.mxu0 0.0
    %1915 = vmatprep.subr.mxu0 0.0
    %1916 = vmatpush1.msra.mxu0 0.0
    %1917 = vmatprep.subr.mxu0 0.0
    %1918 = vmatpush1.msra.mxu0 0.0
    %1919 = vmatprep.subr.mxu0 0.0
    %1920 = vmatpush1.msra.mxu0 0.0
    %1921 = vmatprep.subr.mxu0 0.0
    %1922 = vmatpush1.msra.mxu0 0.0
    %1923 = vmatprep.subr.mxu0 0.0
    %1924 = vmatpush1.msra.mxu0 0.0
    %1925 = vmatprep.subr.mxu0 0.0
    %1926 = vmatpush1.msra.mxu0 0.0
    %1927 = vmatprep.subr.mxu0 0.0
    %1928 = vmatpush1.msra.mxu0 0.0
    %1929 = vmatprep.subr.mxu0 0.0
    %1930 = vmatpush1.msra.mxu0 0.0
    %1931 = vmatprep.subr.mxu0 0.0
    %1932 = vmatpush1.msra.mxu0 0.0
    %1933 = vmatprep.subr.mxu0 0.0
    %1934 = vmatpush1.msra.mxu0 0.0
    %1935 = vmatprep.subr.mxu0 0.0
    %1936 = vmatpush1.msra.mxu0 0.0
    %1937 = vmatprep.subr.mxu0 0.0
    %1938 = vmatpush1.msra.mxu0 0.0
    %1939 = vmatprep.subr.mxu0 0.0
    %1940 = vmatpush1.msra.mxu0 0.0
    %1941 = vmatprep.subr.mxu0 0.0
    %1942 = vmatpush1.msra.mxu0 0.0
    %1943 = vmatprep.subr.mxu0 0.0
    %1944 = vmatpush1.msra.mxu0 0.0
    %1945 = vmatprep.subr.mxu0 0.0
    %1946 = vmatpush1.msra.mxu0 0.0
    %1947 = vmatprep.subr.mxu0 0.0
    %1948 = vmatpush1.msra.mxu0 0.0
    %1949 = vmatprep.subr.mxu0 0.0
    %1950 = vmatpush1.msra.mxu0 0.0
    %1951 = vmatprep.subr.mxu0 0.0
    %1952 = vmatpush1.msra.mxu0 0.0
    %1953 = vmatprep.subr.mxu0 0.0
    %1954 = vmatpush1.msra.mxu0 0.0
    %1955 = vmatprep.subr.mxu0 0.0
    %1956 = vmatpush1.msra.mxu0 0.0
    %1957 = vmatprep.subr.mxu0 0.0
    %1958 = vmatpush1.msra.mxu0 0.0
    %1959 = vmatprep.subr.mxu0 0.0
    %1960 = vmatpush1.msra.mxu0 0.0
    %1961 = vmatprep.subr.mxu0 0.0
    %1962 = vmatpush1.msra.mxu0 0.0
    %1963 = vmatprep.subr.mxu0 0.0
    %1964 = vmatpush1.msra.mxu0 0.0
    %1965 = vmatprep.subr.mxu0 0.0
    %1966 = vmatpush1.msra.mxu0 0.0
    %1967 = vmatprep.subr.mxu0 0.0
    %1968 = vmatpush1.msra.mxu0 0.0
    %1969 = vmatprep.subr.mxu0 0.0
    %1970 = vmatpush1.msra.mxu0 0.0
    %1971 = vmatprep.subr.mxu0 0.0
    %1972 = vmatpush1.msra.mxu0 0.0
    %1973 = vmatprep.mubr.f32.mxu0 0.0
    %1974 = vmatmul.mubr.f32.gmra.mrb[0].mxu0 %v1904
    %v1975 = vpop.f32.mrb[0].mxu0
    %v1976 = vadd.f32 0.0, %v1975
    %v1977 = vpop.f32.mrb[0].mxu0
    %1978 = vmatprep.mubr.f32.mxu0 0.0
    %1979 = vmatmul.mubr.f32.gmra.mrb[0].mxu0 %v1907
    %v1980 = vpop.f32.mrb[0].mxu0
    %v1981 = vadd.f32 0.0, %v1980
    %v1982 = vpop.f32.mrb[0].mxu0
    %1983 = vdwg.mxu0
    %v1985 = vsel %vm132, %v1976, 0
    %v1988 = vsel %vm132, %v1981, 0
    %1990 = vmatprep.subr.mxu0 0.0
    %1991 = vmatpush1.msra.mxu0 %v1583
    %1992 = vmatprep.subr.mxu0 0.0
    %1993 = vmatpush1.msra.mxu0 0.0
    %1994 = vmatprep.subr.mxu0 0.0
    %1995 = vmatpush1.msra.mxu0 0.0
    %1996 = vmatprep.subr.mxu0 0.0
    %1997 = vmatpush1.msra.mxu0 0.0
    %1998 = vmatprep.subr.mxu0 0.0
    %1999 = vmatpush1.msra.mxu0 0.0
    %2000 = vmatprep.subr.mxu0 0.0
    %2001 = vmatpush1.msra.mxu0 0.0
    %2002 = vmatprep.subr.mxu0 0.0
    %2003 = vmatpush1.msra.mxu0 0.0
    %2004 = vmatprep.subr.mxu0 0.0
    %2005 = vmatpush1.msra.mxu0 0.0
    %2006 = vmatprep.subr.mxu0 0.0
    %2007 = vmatpush1.msra.mxu0 0.0
    %2008 = vmatprep.subr.mxu0 0.0
    %2009 = vmatpush1.msra.mxu0 0.0
    %2010 = vmatprep.subr.mxu0 0.0
    %2011 = vmatpush1.msra.mxu0 0.0
    %2012 = vmatprep.subr.mxu0 0.0
    %2013 = vmatpush1.msra.mxu0 0.0
    %2014 = vmatprep.subr.mxu0 0.0
    %2015 = vmatpush1.msra.mxu0 0.0
    %2016 = vmatprep.subr.mxu0 0.0
    %2017 = vmatpush1.msra.mxu0 0.0
    %2018 = vmatprep.subr.mxu0 0.0
    %2019 = vmatpush1.msra.mxu0 0.0
    %2020 = vmatprep.subr.mxu0 0.0
    %2021 = vmatpush1.msra.mxu0 0.0
    %2022 = vmatprep.subr.mxu0 0.0
    %2023 = vmatpush1.msra.mxu0 0.0
    %2024 = vmatprep.subr.mxu0 0.0
    %2025 = vmatpush1.msra.mxu0 0.0
    %2026 = vmatprep.subr.mxu0 0.0
    %2027 = vmatpush1.msra.mxu0 0.0
    %2028 = vmatprep.subr.mxu0 0.0
    %2029 = vmatpush1.msra.mxu0 0.0
    %2030 = vmatprep.subr.mxu0 0.0
    %2031 = vmatpush1.msra.mxu0 0.0
    %2032 = vmatprep.subr.mxu0 0.0
    %2033 = vmatpush1.msra.mxu0 0.0
    %2034 = vmatprep.subr.mxu0 0.0
    %2035 = vmatpush1.msra.mxu0 0.0
    %2036 = vmatprep.subr.mxu0 0.0
    %2037 = vmatpush1.msra.mxu0 0.0
    %2038 = vmatprep.subr.mxu0 0.0
    %2039 = vmatpush1.msra.mxu0 0.0
    %2040 = vmatprep.subr.mxu0 0.0
    %2041 = vmatpush1.msra.mxu0 0.0
    %2042 = vmatprep.subr.mxu0 0.0
    %2043 = vmatpush1.msra.mxu0 0.0
    %2044 = vmatprep.subr.mxu0 0.0
    %2045 = vmatpush1.msra.mxu0 0.0
    %2046 = vmatprep.subr.mxu0 0.0
    %2047 = vmatpush1.msra.mxu0 0.0
    %2048 = vmatprep.subr.mxu0 0.0
    %2049 = vmatpush1.msra.mxu0 0.0
    %2050 = vmatprep.subr.mxu0 0.0
    %2051 = vmatpush1.msra.mxu0 0.0
    %2052 = vmatprep.subr.mxu0 0.0
    %2053 = vmatpush1.msra.mxu0 0.0
    %2054 = vmatprep.mubr.f32.mxu0 0.0
    %2055 = vmatmul.mubr.f32.gmra.mrb[0].mxu0 %v1985
    %v2056 = vpop.f32.mrb[0].mxu0
    %v2057 = vadd.f32 0.0, %v2056
    %v2058 = vpop.f32.mrb[0].mxu0
    %2059 = vmatprep.mubr.f32.mxu0 0.0
    %2060 = vmatmul.mubr.f32.gmra.mrb[0].mxu0 %v1988
    %v2061 = vpop.f32.mrb[0].mxu0
    %v2062 = vadd.f32 0.0, %v2061
    %v2063 = vpop.f32.mrb[0].mxu0
    %2064 = vdwg.mxu0
    %v2066 = vsel %vm132, %v1776, 0
    %v2069 = vsel %vm132, %v1781, 0
    %2071 = vmatprep.subr.mxu0 0.0
    %2072 = vmatpush1.msra.mxu0 %v1582
    %2073 = vmatprep.subr.mxu0 0.0
    %2074 = vmatpush1.msra.mxu0 0.0
    %2075 = vmatprep.subr.mxu0 0.0
    %2076 = vmatpush1.msra.mxu0 0.0
    %2077 = vmatprep.subr.mxu0 0.0
    %2078 = vmatpush1.msra.mxu0 0.0
    %2079 = vmatprep.subr.mxu0 0.0
    %2080 = vmatpush1.msra.mxu0 0.0
    %2081 = vmatprep.subr.mxu0 0.0
    %2082 = vmatpush1.msra.mxu0 0.0
    %2083 = vmatprep.subr.mxu0 0.0
    %2084 = vmatpush1.msra.mxu0 0.0
    %2085 = vmatprep.subr.mxu0 0.0
    %2086 = vmatpush1.msra.mxu0 0.0
    %2087 = vmatprep.subr.mxu0 0.0
    %2088 = vmatpush1.msra.mxu0 0.0
    %2089 = vmatprep.subr.mxu0 0.0
    %2090 = vmatpush1.msra.mxu0 0.0
    %2091 = vmatprep.subr.mxu0 0.0
    %2092 = vmatpush1.msra.mxu0 0.0
    %2093 = vmatprep.subr.mxu0 0.0
    %2094 = vmatpush1.msra.mxu0 0.0
    %2095 = vmatprep.subr.mxu0 0.0
    %2096 = vmatpush1.msra.mxu0 0.0
    %2097 = vmatprep.subr.mxu0 0.0
    %2098 = vmatpush1.msra.mxu0 0.0
    %2099 = vmatprep.subr.mxu0 0.0
    %2100 = vmatpush1.msra.mxu0 0.0
    %2101 = vmatprep.subr.mxu0 0.0
    %2102 = vmatpush1.msra.mxu0 0.0
    %2103 = vmatprep.subr.mxu0 0.0
    %2104 = vmatpush1.msra.mxu0 0.0
    %2105 = vmatprep.subr.mxu0 0.0
    %2106 = vmatpush1.msra.mxu0 0.0
    %2107 = vmatprep.subr.mxu0 0.0
    %2108 = vmatpush1.msra.mxu0 0.0
    %2109 = vmatprep.subr.mxu0 0.0
    %2110 = vmatpush1.msra.mxu0 0.0
    %2111 = vmatprep.subr.mxu0 0.0
    %2112 = vmatpush1.msra.mxu0 0.0
    %2113 = vmatprep.subr.mxu0 0.0
    %2114 = vmatpush1.msra.mxu0 0.0
    %2115 = vmatprep.subr.mxu0 0.0
    %2116 = vmatpush1.msra.mxu0 0.0
    %2117 = vmatprep.subr.mxu0 0.0
    %2118 = vmatpush1.msra.mxu0 0.0
    %2119 = vmatprep.subr.mxu0 0.0
    %2120 = vmatpush1.msra.mxu0 0.0
    %2121 = vmatprep.subr.mxu0 0.0
    %2122 = vmatpush1.msra.mxu0 0.0
    %2123 = vmatprep.subr.mxu0 0.0
    %2124 = vmatpush1.msra.mxu0 0.0
    %2125 = vmatprep.subr.mxu0 0.0
    %2126 = vmatpush1.msra.mxu0 0.0
    %2127 = vmatprep.subr.mxu0 0.0
    %2128 = vmatpush1.msra.mxu0 0.0
    %2129 = vmatprep.subr.mxu0 0.0
    %2130 = vmatpush1.msra.mxu0 0.0
    %2131 = vmatprep.subr.mxu0 0.0
    %2132 = vmatpush1.msra.mxu0 0.0
    %2133 = vmatprep.subr.mxu0 0.0
    %2134 = vmatpush1.msra.mxu0 0.0
    %2135 = vmatprep.mubr.f32.mxu0 0.0
    %2136 = vmatmul.mubr.f32.gmra.mrb[0].mxu0 %v2066
    %v2137 = vpop.f32.mrb[0].mxu0
    %v2138 = vadd.f32 %v2057, %v2137
    %v2139 = vpop.f32.mrb[0].mxu0
    %2140 = vmatprep.mubr.f32.mxu0 0.0
    %2141 = vmatmul.mubr.f32.gmra.mrb[0].mxu0 %v2069
    %v2142 = vpop.f32.mrb[0].mxu0
    %v2143 = vadd.f32 %v2062, %v2142
    %v2144 = vpop.f32.mrb[0].mxu0
    %2145 = vdwg.mxu0
    %2146 = vrot.lane.b32.xlu0 %v1575, 112
    %v2147 = vpop.permute.xlu0 %2146
    %2148 = vrot.lane.b32.xlu0 %v1578, 112
    %v2149 = vpop.permute.xlu0 %2148
    %2150 = vrot.lane.b32.xlu0 %v1575, 80
    %v2151 = vpop.permute.xlu0 %2150
    %2152 = vrot.lane.b32.xlu0 %v1578, 80
    %v2153 = vpop.permute.xlu0 %2152
    %v2154 = vsel %vm132, %v2147, 0
    %v2156 = vsel %vm132, %v2149, 0
    %v2158 = vsel %vm132, %v2151, 0
    %v2160 = vsel %vm132, %v2153, 0
    %2162 = vmatprep.subr.mxu0 0.0
    %2163 = vmatpush1.xpose.msra.mxu0 %v2158
    %2164 = vmatprep.subr.mxu0 0.0
    %2165 = vmatpush1.xpose.msra.mxu0 %v2160
    %2166 = vmatprep.subr.mxu0 0.0
    %2167 = vmatpush1.xpose.msra.mxu0 0.0
    %2168 = vmatprep.subr.mxu0 0.0
    %2169 = vmatpush1.xpose.msra.mxu0 0.0
    %2170 = vmatprep.subr.mxu0 0.0
    %2171 = vmatpush1.xpose.msra.mxu0 0.0
    %2172 = vmatprep.subr.mxu0 0.0
    %2173 = vmatpush1.xpose.msra.mxu0 0.0
    %2174 = vmatprep.subr.mxu0 0.0
    %2175 = vmatpush1.xpose.msra.mxu0 0.0
    %2176 = vmatprep.subr.mxu0 0.0
    %2177 = vmatpush1.xpose.msra.mxu0 0.0
    %2178 = vmatprep.subr.mxu0 0.0
    %2179 = vmatpush1.xpose.msra.mxu0 0.0
    %2180 = vmatprep.subr.mxu0 0.0
    %2181 = vmatpush1.xpose.msra.mxu0 0.0
    %2182 = vmatprep.subr.mxu0 0.0
    %2183 = vmatpush1.xpose.msra.mxu0 0.0
    %2184 = vmatprep.subr.mxu0 0.0
    %2185 = vmatpush1.xpose.msra.mxu0 0.0
    %2186 = vmatprep.subr.mxu0 0.0
    %2187 = vmatpush1.xpose.msra.mxu0 0.0
    %2188 = vmatprep.subr.mxu0 0.0
    %2189 = vmatpush1.xpose.msra.mxu0 0.0
    %2190 = vmatprep.subr.mxu0 0.0
    %2191 = vmatpush1.xpose.msra.mxu0 0.0
    %2192 = vmatprep.subr.mxu0 0.0
    %2193 = vmatpush1.xpose.msra.mxu0 0.0
    %2194 = vmatprep.subr.mxu0 0.0
    %2195 = vmatpush1.xpose.msra.mxu0 0.0
    %2196 = vmatprep.subr.mxu0 0.0
    %2197 = vmatpush1.xpose.msra.mxu0 0.0
    %2198 = vmatprep.subr.mxu0 0.0
    %2199 = vmatpush1.xpose.msra.mxu0 0.0
    %2200 = vmatprep.subr.mxu0 0.0
    %2201 = vmatpush1.xpose.msra.mxu0 0.0
    %2202 = vmatprep.subr.mxu0 0.0
    %2203 = vmatpush1.xpose.msra.mxu0 0.0
    %2204 = vmatprep.subr.mxu0 0.0
    %2205 = vmatpush1.xpose.msra.mxu0 0.0
    %2206 = vmatprep.subr.mxu0 0.0
    %2207 = vmatpush1.xpose.msra.mxu0 0.0
    %2208 = vmatprep.subr.mxu0 0.0
    %2209 = vmatpush1.xpose.msra.mxu0 0.0
    %2210 = vmatprep.subr.mxu0 0.0
    %2211 = vmatpush1.xpose.msra.mxu0 0.0
    %2212 = vmatprep.subr.mxu0 0.0
    %2213 = vmatpush1.xpose.msra.mxu0 0.0
    %2214 = vmatprep.subr.mxu0 0.0
    %2215 = vmatpush1.xpose.msra.mxu0 0.0
    %2216 = vmatprep.subr.mxu0 0.0
    %2217 = vmatpush1.xpose.msra.mxu0 0.0
    %2218 = vmatprep.subr.mxu0 0.0
    %2219 = vmatpush1.xpose.msra.mxu0 0.0
    %2220 = vmatprep.subr.mxu0 0.0
    %2221 = vmatpush1.xpose.msra.mxu0 0.0
    %2222 = vmatprep.subr.mxu0 0.0
    %2223 = vmatpush1.xpose.msra.mxu0 0.0
    %2224 = vmatprep.subr.mxu0 0.0
    %2225 = vmatpush1.xpose.msra.mxu0 0.0
    %2226 = vmatprep.mubr.f32.mxu0 0.0
    %2227 = vmatmul.mubr.f32.gmra.mrb[0].mxu0 %v2154
    %v2228 = vpop.f32.mrb[0].mxu0
    %v2229 = vadd.f32 %v51, %v2228
    %v2230 = vpop.f32.mrb[0].mxu0
    %2231 = vmatprep.mubr.f32.mxu0 0.0
    %2232 = vmatmul.mubr.f32.gmra.mrb[0].mxu0 %v2156
    %v2233 = vpop.f32.mrb[0].mxu0
    %v2234 = vadd.f32 %v52, %v2233
    %v2235 = vpop.f32.mrb[0].mxu0
    %2236 = vdwg.mxu0
    %v2237 = vsel %vm216, %v2229, -inf
    %2238 = vmax.xlane.f32.xlu0 %v2237
    %v2239 = vpop.xlane.xlu0 %2238
    %v2240 = vsel %vm216, %v2234, -inf
    %2241 = vmax.xlane.f32.xlu0 %v2240
    %v2242 = vpop.xlane.xlu0 %2241
    %v2243 = vsub.f32 %v2229, %v2239
    %v2244 = vsub.f32 %v2234, %v2242
    %v2245 = vmul.f32 %v2243, 1.442695
    %v2246 = vpow.pop %v2245
    %v2247 = vmul.f32 %v2244, 1.442695
    %v2248 = vpow.pop %v2247
    %v2249 = vsel %vm216, %v2246, 0.0
    %2250 = vadd.xlane.f32.xlu0 %v2249
    %v2251 = vpop.xlane.xlu0 %2250
    %v2252 = vsel %vm216, %v2248, 0.0
    %2253 = vadd.xlane.f32.xlu0 %v2252
    %v2254 = vpop.xlane.xlu0 %2253
    %v2255 = vrcp.pop %v2251
    %v2256 = vrcp.pop %v2254
    %v2257 = vmul.f32 %v2246, %v2255
    %v2258 = vmul.f32 %v2248, %v2256
    %2259 = vrot.lane.b32.xlu0 %v1575, 48
    %v2260 = vpop.permute.xlu0 %2259
    %2261 = vrot.lane.b32.xlu0 %v1578, 48
    %v2262 = vpop.permute.xlu0 %2261
    %v2266 = vsel %vm216, %v2257, 0
    %v2269 = vsel %vm216, %v2258, 0
    %2271 = vmatprep.subr.mxu0 0.0
    %2272 = vmatpush1.msra.mxu0 %v2260
    %2273 = vmatprep.subr.mxu0 0.0
    %2274 = vmatpush1.msra.mxu0 %v2262
    %2275 = vmatprep.subr.mxu0 0.0
    %2276 = vmatpush1.msra.mxu0 0.0
    %2277 = vmatprep.subr.mxu0 0.0
    %2278 = vmatpush1.msra.mxu0 0.0
    %2279 = vmatprep.subr.mxu0 0.0
    %2280 = vmatpush1.msra.mxu0 0.0
    %2281 = vmatprep.subr.mxu0 0.0
    %2282 = vmatpush1.msra.mxu0 0.0
    %2283 = vmatprep.subr.mxu0 0.0
    %2284 = vmatpush1.msra.mxu0 0.0
    %2285 = vmatprep.subr.mxu0 0.0
    %2286 = vmatpush1.msra.mxu0 0.0
    %2287 = vmatprep.subr.mxu0 0.0
    %2288 = vmatpush1.msra.mxu0 0.0
    %2289 = vmatprep.subr.mxu0 0.0
    %2290 = vmatpush1.msra.mxu0 0.0
    %2291 = vmatprep.subr.mxu0 0.0
    %2292 = vmatpush1.msra.mxu0 0.0
    %2293 = vmatprep.subr.mxu0 0.0
    %2294 = vmatpush1.msra.mxu0 0.0
    %2295 = vmatprep.subr.mxu0 0.0
    %2296 = vmatpush1.msra.mxu0 0.0
    %2297 = vmatprep.subr.mxu0 0.0
    %2298 = vmatpush1.msra.mxu0 0.0
    %2299 = vmatprep.subr.mxu0 0.0
    %2300 = vmatpush1.msra.mxu0 0.0
    %2301 = vmatprep.subr.mxu0 0.0
    %2302 = vmatpush1.msra.mxu0 0.0
    %2303 = vmatprep.subr.mxu0 0.0
    %2304 = vmatpush1.msra.mxu0 0.0
    %2305 = vmatprep.subr.mxu0 0.0
    %2306 = vmatpush1.msra.mxu0 0.0
    %2307 = vmatprep.subr.mxu0 0.0
    %2308 = vmatpush1.msra.mxu0 0.0
    %2309 = vmatprep.subr.mxu0 0.0
    %2310 = vmatpush1.msra.mxu0 0.0
    %2311 = vmatprep.subr.mxu0 0.0
    %2312 = vmatpush1.msra.mxu0 0.0
    %2313 = vmatprep.subr.mxu0 0.0
    %2314 = vmatpush1.msra.mxu0 0.0
    %2315 = vmatprep.subr.mxu0 0.0
    %2316 = vmatpush1.msra.mxu0 0.0
    %2317 = vmatprep.subr.mxu0 0.0
    %2318 = vmatpush1.msra.mxu0 0.0
    %2319 = vmatprep.subr.mxu0 0.0
    %2320 = vmatpush1.msra.mxu0 0.0
    %2321 = vmatprep.subr.mxu0 0.0
    %2322 = vmatpush1.msra.mxu0 0.0
    %2323 = vmatprep.subr.mxu0 0.0
    %2324 = vmatpush1.msra.mxu0 0.0
    %2325 = vmatprep.subr.mxu0 0.0
    %2326 = vmatpush1.msra.mxu0 0.0
    %2327 = vmatprep.subr.mxu0 0.0
    %2328 = vmatpush1.msra.mxu0 0.0
    %2329 = vmatprep.subr.mxu0 0.0
    %2330 = vmatpush1.msra.mxu0 0.0
    %2331 = vmatprep.subr.mxu0 0.0
    %2332 = vmatpush1.msra.mxu0 0.0
    %2333 = vmatprep.subr.mxu0 0.0
    %2334 = vmatpush1.msra.mxu0 0.0
    %2335 = vmatprep.mubr.f32.mxu0 0.0
    %2336 = vmatmul.mubr.f32.gmra.mrb[0].mxu0 %v2266
    %v2337 = vpop.f32.mrb[0].mxu0
    %v2338 = vadd.f32 0.0, %v2337
    %v2339 = vpop.f32.mrb[0].mxu0
    %2340 = vmatprep.mubr.f32.mxu0 0.0
    %2341 = vmatmul.mubr.f32.gmra.mrb[0].mxu0 %v2269
    %v2342 = vpop.f32.mrb[0].mxu0
    %v2343 = vadd.f32 0.0, %v2342
    %v2344 = vpop.f32.mrb[0].mxu0
    %2345 = vdwg.mxu0
    %v2347 = vsel %vm132, %v2338, 0
    %v2350 = vsel %vm132, %v2343, 0
    %2352 = vmatprep.subr.mxu0 0.0
    %2353 = vmatpush1.msra.mxu0 %v1584
    %2354 = vmatprep.subr.mxu0 0.0
    %2355 = vmatpush1.msra.mxu0 0.0
    %2356 = vmatprep.subr.mxu0 0.0
    %2357 = vmatpush1.msra.mxu0 0.0
    %2358 = vmatprep.subr.mxu0 0.0
    %2359 = vmatpush1.msra.mxu0 0.0
    %2360 = vmatprep.subr.mxu0 0.0
    %2361 = vmatpush1.msra.mxu0 0.0
    %2362 = vmatprep.subr.mxu0 0.0
    %2363 = vmatpush1.msra.mxu0 0.0
    %2364 = vmatprep.subr.mxu0 0.0
    %2365 = vmatpush1.msra.mxu0 0.0
    %2366 = vmatprep.subr.mxu0 0.0
    %2367 = vmatpush1.msra.mxu0 0.0
    %2368 = vmatprep.subr.mxu0 0.0
    %2369 = vmatpush1.msra.mxu0 0.0
    %2370 = vmatprep.subr.mxu0 0.0
    %2371 = vmatpush1.msra.mxu0 0.0
    %2372 = vmatprep.subr.mxu0 0.0
    %2373 = vmatpush1.msra.mxu0 0.0
    %2374 = vmatprep.subr.mxu0 0.0
    %2375 = vmatpush1.msra.mxu0 0.0
    %2376 = vmatprep.subr.mxu0 0.0
    %2377 = vmatpush1.msra.mxu0 0.0
    %2378 = vmatprep.subr.mxu0 0.0
    %2379 = vmatpush1.msra.mxu0 0.0
    %2380 = vmatprep.subr.mxu0 0.0
    %2381 = vmatpush1.msra.mxu0 0.0
    %2382 = vmatprep.subr.mxu0 0.0
    %2383 = vmatpush1.msra.mxu0 0.0
    %2384 = vmatprep.subr.mxu0 0.0
    %2385 = vmatpush1.msra.mxu0 0.0
    %2386 = vmatprep.subr.mxu0 0.0
    %2387 = vmatpush1.msra.mxu0 0.0
    %2388 = vmatprep.subr.mxu0 0.0
    %2389 = vmatpush1.msra.mxu0 0.0
    %2390 = vmatprep.subr.mxu0 0.0
    %2391 = vmatpush1.msra.mxu0 0.0
    %2392 = vmatprep.subr.mxu0 0.0
    %2393 = vmatpush1.msra.mxu0 0.0
    %2394 = vmatprep.subr.mxu0 0.0
    %2395 = vmatpush1.msra.mxu0 0.0
    %2396 = vmatprep.subr.mxu0 0.0
    %2397 = vmatpush1.msra.mxu0 0.0
    %2398 = vmatprep.subr.mxu0 0.0
    %2399 = vmatpush1.msra.mxu0 0.0
    %2400 = vmatprep.subr.mxu0 0.0
    %2401 = vmatpush1.msra.mxu0 0.0
    %2402 = vmatprep.subr.mxu0 0.0
    %2403 = vmatpush1.msra.mxu0 0.0
    %2404 = vmatprep.subr.mxu0 0.0
    %2405 = vmatpush1.msra.mxu0 0.0
    %2406 = vmatprep.subr.mxu0 0.0
    %2407 = vmatpush1.msra.mxu0 0.0
    %2408 = vmatprep.subr.mxu0 0.0
    %2409 = vmatpush1.msra.mxu0 0.0
    %2410 = vmatprep.subr.mxu0 0.0
    %2411 = vmatpush1.msra.mxu0 0.0
    %2412 = vmatprep.subr.mxu0 0.0
    %2413 = vmatpush1.msra.mxu0 0.0
    %2414 = vmatprep.subr.mxu0 0.0
    %2415 = vmatpush1.msra.mxu0 0.0
    %2416 = vmatprep.mubr.f32.mxu0 0.0
    %2417 = vmatmul.mubr.f32.gmra.mrb[0].mxu0 %v2347
    %v2418 = vpop.f32.mrb[0].mxu0
    %v2419 = vadd.f32 0.0, %v2418
    %v2420 = vpop.f32.mrb[0].mxu0
    %2421 = vmatprep.mubr.f32.mxu0 0.0
    %2422 = vmatmul.mubr.f32.gmra.mrb[0].mxu0 %v2350
    %v2423 = vpop.f32.mrb[0].mxu0
    %v2424 = vadd.f32 0.0, %v2423
    %v2425 = vpop.f32.mrb[0].mxu0
    %2426 = vdwg.mxu0
    %v2427 = vadd.f32 %v2138, %v2419
    %v2428 = vadd.f32 %v2143, %v2424
    %2429 = vrot.lane.b32.xlu0 %v1575, 104
    %v2430 = vpop.permute.xlu0 %2429
    %2431 = vrot.lane.b32.xlu0 %v1578, 104
    %v2432 = vpop.permute.xlu0 %2431
    %2433 = vrot.lane.b32.xlu0 %v1575, 72
    %v2434 = vpop.permute.xlu0 %2433
    %2435 = vrot.lane.b32.xlu0 %v1578, 72
    %v2436 = vpop.permute.xlu0 %2435
    %v2437 = vsel %vm132, %v2430, 0
    %v2439 = vsel %vm132, %v2432, 0
    %v2441 = vsel %vm132, %v2434, 0
    %v2443 = vsel %vm132, %v2436, 0
    %2445 = vmatprep.subr.mxu0 0.0
    %2446 = vmatpush1.xpose.msra.mxu0 %v2441
    %2447 = vmatprep.subr.mxu0 0.0
    %2448 = vmatpush1.xpose.msra.mxu0 %v2443
    %2449 = vmatprep.subr.mxu0 0.0
    %2450 = vmatpush1.xpose.msra.mxu0 0.0
    %2451 = vmatprep.subr.mxu0 0.0
    %2452 = vmatpush1.xpose.msra.mxu0 0.0
    %2453 = vmatprep.subr.mxu0 0.0
    %2454 = vmatpush1.xpose.msra.mxu0 0.0
    %2455 = vmatprep.subr.mxu0 0.0
    %2456 = vmatpush1.xpose.msra.mxu0 0.0
    %2457 = vmatprep.subr.mxu0 0.0
    %2458 = vmatpush1.xpose.msra.mxu0 0.0
    %2459 = vmatprep.subr.mxu0 0.0
    %2460 = vmatpush1.xpose.msra.mxu0 0.0
    %2461 = vmatprep.subr.mxu0 0.0
    %2462 = vmatpush1.xpose.msra.mxu0 0.0
    %2463 = vmatprep.subr.mxu0 0.0
    %2464 = vmatpush1.xpose.msra.mxu0 0.0
    %2465 = vmatprep.subr.mxu0 0.0
    %2466 = vmatpush1.xpose.msra.mxu0 0.0
    %2467 = vmatprep.subr.mxu0 0.0
    %2468 = vmatpush1.xpose.msra.mxu0 0.0
    %2469 = vmatprep.subr.mxu0 0.0
    %2470 = vmatpush1.xpose.msra.mxu0 0.0
    %2471 = vmatprep.subr.mxu0 0.0
    %2472 = vmatpush1.xpose.msra.mxu0 0.0
    %2473 = vmatprep.subr.mxu0 0.0
    %2474 = vmatpush1.xpose.msra.mxu0 0.0
    %2475 = vmatprep.subr.mxu0 0.0
    %2476 = vmatpush1.xpose.msra.mxu0 0.0
    %2477 = vmatprep.subr.mxu0 0.0
    %2478 = vmatpush1.xpose.msra.mxu0 0.0
    %2479 = vmatprep.subr.mxu0 0.0
    %2480 = vmatpush1.xpose.msra.mxu0 0.0
    %2481 = vmatprep.subr.mxu0 0.0
    %2482 = vmatpush1.xpose.msra.mxu0 0.0
    %2483 = vmatprep.subr.mxu0 0.0
    %2484 = vmatpush1.xpose.msra.mxu0 0.0
    %2485 = vmatprep.subr.mxu0 0.0
    %2486 = vmatpush1.xpose.msra.mxu0 0.0
    %2487 = vmatprep.subr.mxu0 0.0
    %2488 = vmatpush1.xpose.msra.mxu0 0.0
    %2489 = vmatprep.subr.mxu0 0.0
    %2490 = vmatpush1.xpose.msra.mxu0 0.0
    %2491 = vmatprep.subr.mxu0 0.0
    %2492 = vmatpush1.xpose.msra.mxu0 0.0
    %2493 = vmatprep.subr.mxu0 0.0
    %2494 = vmatpush1.xpose.msra.mxu0 0.0
    %2495 = vmatprep.subr.mxu0 0.0
    %2496 = vmatpush1.xpose.msra.mxu0 0.0
    %2497 = vmatprep.subr.mxu0 0.0
    %2498 = vmatpush1.xpose.msra.mxu0 0.0
    %2499 = vmatprep.subr.mxu0 0.0
    %2500 = vmatpush1.xpose.msra.mxu0 0.0
    %2501 = vmatprep.subr.mxu0 0.0
    %2502 = vmatpush1.xpose.msra.mxu0 0.0
    %2503 = vmatprep.subr.mxu0 0.0
    %2504 = vmatpush1.xpose.msra.mxu0 0.0
    %2505 = vmatprep.subr.mxu0 0.0
    %2506 = vmatpush1.xpose.msra.mxu0 0.0
    %2507 = vmatprep.subr.mxu0 0.0
    %2508 = vmatpush1.xpose.msra.mxu0 0.0
    %2509 = vmatprep.mubr.f32.mxu0 0.0
    %2510 = vmatmul.mubr.f32.gmra.mrb[0].mxu0 %v2437
    %v2511 = vpop.f32.mrb[0].mxu0
    %v2512 = vadd.f32 %v51, %v2511
    %v2513 = vpop.f32.mrb[0].mxu0
    %2514 = vmatprep.mubr.f32.mxu0 0.0
    %2515 = vmatmul.mubr.f32.gmra.mrb[0].mxu0 %v2439
    %v2516 = vpop.f32.mrb[0].mxu0
    %v2517 = vadd.f32 %v52, %v2516
    %v2518 = vpop.f32.mrb[0].mxu0
    %2519 = vdwg.mxu0
    %v2520 = vsel %vm216, %v2512, -inf
    %2521 = vmax.xlane.f32.xlu0 %v2520
    %v2522 = vpop.xlane.xlu0 %2521
    %v2523 = vsel %vm216, %v2517, -inf
    %2524 = vmax.xlane.f32.xlu0 %v2523
    %v2525 = vpop.xlane.xlu0 %2524
    %v2526 = vsub.f32 %v2512, %v2522
    %v2527 = vsub.f32 %v2517, %v2525
    %v2528 = vmul.f32 %v2526, 1.442695
    %v2529 = vpow.pop %v2528
    %v2530 = vmul.f32 %v2527, 1.442695
    %v2531 = vpow.pop %v2530
    %v2532 = vsel %vm216, %v2529, 0.0
    %2533 = vadd.xlane.f32.xlu0 %v2532
    %v2534 = vpop.xlane.xlu0 %2533
    %v2535 = vsel %vm216, %v2531, 0.0
    %2536 = vadd.xlane.f32.xlu0 %v2535
    %v2537 = vpop.xlane.xlu0 %2536
    %v2538 = vrcp.pop %v2534
    %v2539 = vrcp.pop %v2537
    %v2540 = vmul.f32 %v2529, %v2538
    %v2541 = vmul.f32 %v2531, %v2539
    %2542 = vrot.lane.b32.xlu0 %v1575, 40
    %v2543 = vpop.permute.xlu0 %2542
    %2544 = vrot.lane.b32.xlu0 %v1578, 40
    %v2545 = vpop.permute.xlu0 %2544
    %v2549 = vsel %vm216, %v2540, 0
    %v2552 = vsel %vm216, %v2541, 0
    %2554 = vmatprep.subr.mxu0 0.0
    %2555 = vmatpush1.msra.mxu0 %v2543
    %2556 = vmatprep.subr.mxu0 0.0
    %2557 = vmatpush1.msra.mxu0 %v2545
    %2558 = vmatprep.subr.mxu0 0.0
    %2559 = vmatpush1.msra.mxu0 0.0
    %2560 = vmatprep.subr.mxu0 0.0
    %2561 = vmatpush1.msra.mxu0 0.0
    %2562 = vmatprep.subr.mxu0 0.0
    %2563 = vmatpush1.msra.mxu0 0.0
    %2564 = vmatprep.subr.mxu0 0.0
    %2565 = vmatpush1.msra.mxu0 0.0
    %2566 = vmatprep.subr.mxu0 0.0
    %2567 = vmatpush1.msra.mxu0 0.0
    %2568 = vmatprep.subr.mxu0 0.0
    %2569 = vmatpush1.msra.mxu0 0.0
    %2570 = vmatprep.subr.mxu0 0.0
    %2571 = vmatpush1.msra.mxu0 0.0
    %2572 = vmatprep.subr.mxu0 0.0
    %2573 = vmatpush1.msra.mxu0 0.0
    %2574 = vmatprep.subr.mxu0 0.0
    %2575 = vmatpush1.msra.mxu0 0.0
    %2576 = vmatprep.subr.mxu0 0.0
    %2577 = vmatpush1.msra.mxu0 0.0
    %2578 = vmatprep.subr.mxu0 0.0
    %2579 = vmatpush1.msra.mxu0 0.0
    %2580 = vmatprep.subr.mxu0 0.0
    %2581 = vmatpush1.msra.mxu0 0.0
    %2582 = vmatprep.subr.mxu0 0.0
    %2583 = vmatpush1.msra.mxu0 0.0
    %2584 = vmatprep.subr.mxu0 0.0
    %2585 = vmatpush1.msra.mxu0 0.0
    %2586 = vmatprep.subr.mxu0 0.0
    %2587 = vmatpush1.msra.mxu0 0.0
    %2588 = vmatprep.subr.mxu0 0.0
    %2589 = vmatpush1.msra.mxu0 0.0
    %2590 = vmatprep.subr.mxu0 0.0
    %2591 = vmatpush1.msra.mxu0 0.0
    %2592 = vmatprep.subr.mxu0 0.0
    %2593 = vmatpush1.msra.mxu0 0.0
    %2594 = vmatprep.subr.mxu0 0.0
    %2595 = vmatpush1.msra.mxu0 0.0
    %2596 = vmatprep.subr.mxu0 0.0
    %2597 = vmatpush1.msra.mxu0 0.0
    %2598 = vmatprep.subr.mxu0 0.0
    %2599 = vmatpush1.msra.mxu0 0.0
    %2600 = vmatprep.subr.mxu0 0.0
    %2601 = vmatpush1.msra.mxu0 0.0
    %2602 = vmatprep.subr.mxu0 0.0
    %2603 = vmatpush1.msra.mxu0 0.0
    %2604 = vmatprep.subr.mxu0 0.0
    %2605 = vmatpush1.msra.mxu0 0.0
    %2606 = vmatprep.subr.mxu0 0.0
    %2607 = vmatpush1.msra.mxu0 0.0
    %2608 = vmatprep.subr.mxu0 0.0
    %2609 = vmatpush1.msra.mxu0 0.0
    %2610 = vmatprep.subr.mxu0 0.0
    %2611 = vmatpush1.msra.mxu0 0.0
    %2612 = vmatprep.subr.mxu0 0.0
    %2613 = vmatpush1.msra.mxu0 0.0
    %2614 = vmatprep.subr.mxu0 0.0
    %2615 = vmatpush1.msra.mxu0 0.0
    %2616 = vmatprep.subr.mxu0 0.0
    %2617 = vmatpush1.msra.mxu0 0.0
    %2618 = vmatprep.mubr.f32.mxu0 0.0
    %2619 = vmatmul.mubr.f32.gmra.mrb[0].mxu0 %v2549
    %v2620 = vpop.f32.mrb[0].mxu0
    %v2621 = vadd.f32 0.0, %v2620
    %v2622 = vpop.f32.mrb[0].mxu0
    %2623 = vmatprep.mubr.f32.mxu0 0.0
    %2624 = vmatmul.mubr.f32.gmra.mrb[0].mxu0 %v2552
    %v2625 = vpop.f32.mrb[0].mxu0
    %v2626 = vadd.f32 0.0, %v2625
    %v2627 = vpop.f32.mrb[0].mxu0
    %2628 = vdwg.mxu0
    %v2630 = vsel %vm132, %v2621, 0
    %v2633 = vsel %vm132, %v2626, 0
    %2635 = vmatprep.subr.mxu0 0.0
    %2636 = vmatpush1.msra.mxu0 %v1585
    %2637 = vmatprep.subr.mxu0 0.0
    %2638 = vmatpush1.msra.mxu0 0.0
    %2639 = vmatprep.subr.mxu0 0.0
    %2640 = vmatpush1.msra.mxu0 0.0
    %2641 = vmatprep.subr.mxu0 0.0
    %2642 = vmatpush1.msra.mxu0 0.0
    %2643 = vmatprep.subr.mxu0 0.0
    %2644 = vmatpush1.msra.mxu0 0.0
    %2645 = vmatprep.subr.mxu0 0.0
    %2646 = vmatpush1.msra.mxu0 0.0
    %2647 = vmatprep.subr.mxu0 0.0
    %2648 = vmatpush1.msra.mxu0 0.0
    %2649 = vmatprep.subr.mxu0 0.0
    %2650 = vmatpush1.msra.mxu0 0.0
    %2651 = vmatprep.subr.mxu0 0.0
    %2652 = vmatpush1.msra.mxu0 0.0
    %2653 = vmatprep.subr.mxu0 0.0
    %2654 = vmatpush1.msra.mxu0 0.0
    %2655 = vmatprep.subr.mxu0 0.0
    %2656 = vmatpush1.msra.mxu0 0.0
    %2657 = vmatprep.subr.mxu0 0.0
    %2658 = vmatpush1.msra.mxu0 0.0
    %2659 = vmatprep.subr.mxu0 0.0
    %2660 = vmatpush1.msra.mxu0 0.0
    %2661 = vmatprep.subr.mxu0 0.0
    %2662 = vmatpush1.msra.mxu0 0.0
    %2663 = vmatprep.subr.mxu0 0.0
    %2664 = vmatpush1.msra.mxu0 0.0
    %2665 = vmatprep.subr.mxu0 0.0
    %2666 = vmatpush1.msra.mxu0 0.0
    %2667 = vmatprep.subr.mxu0 0.0
    %2668 = vmatpush1.msra.mxu0 0.0
    %2669 = vmatprep.subr.mxu0 0.0
    %2670 = vmatpush1.msra.mxu0 0.0
    %2671 = vmatprep.subr.mxu0 0.0
    %2672 = vmatpush1.msra.mxu0 0.0
    %2673 = vmatprep.subr.mxu0 0.0
    %2674 = vmatpush1.msra.mxu0 0.0
    %2675 = vmatprep.subr.mxu0 0.0
    %2676 = vmatpush1.msra.mxu0 0.0
    %2677 = vmatprep.subr.mxu0 0.0
    %2678 = vmatpush1.msra.mxu0 0.0
    %2679 = vmatprep.subr.mxu0 0.0
    %2680 = vmatpush1.msra.mxu0 0.0
    %2681 = vmatprep.subr.mxu0 0.0
    %2682 = vmatpush1.msra.mxu0 0.0
    %2683 = vmatprep.subr.mxu0 0.0
    %2684 = vmatpush1.msra.mxu0 0.0
    %2685 = vmatprep.subr.mxu0 0.0
    %2686 = vmatpush1.msra.mxu0 0.0
    %2687 = vmatprep.subr.mxu0 0.0
    %2688 = vmatpush1.msra.mxu0 0.0
    %2689 = vmatprep.subr.mxu0 0.0
    %2690 = vmatpush1.msra.mxu0 0.0
    %2691 = vmatprep.subr.mxu0 0.0
    %2692 = vmatpush1.msra.mxu0 0.0
    %2693 = vmatprep.subr.mxu0 0.0
    %2694 = vmatpush1.msra.mxu0 0.0
    %2695 = vmatprep.subr.mxu0 0.0
    %2696 = vmatpush1.msra.mxu0 0.0
    %2697 = vmatprep.subr.mxu0 0.0
    %2698 = vmatpush1.msra.mxu0 0.0
    %2699 = vmatprep.mubr.f32.mxu0 0.0
    %2700 = vmatmul.mubr.f32.gmra.mrb[0].mxu0 %v2630
    %v2701 = vpop.f32.mrb[0].mxu0
    %v2702 = vadd.f32 0.0, %v2701
    %v2703 = vpop.f32.mrb[0].mxu0
    %2704 = vmatprep.mubr.f32.mxu0 0.0
    %2705 = vmatmul.mubr.f32.gmra.mrb[0].mxu0 %v2633
    %v2706 = vpop.f32.mrb[0].mxu0
    %v2707 = vadd.f32 0.0, %v2706
    %v2708 = vpop.f32.mrb[0].mxu0
    %2709 = vdwg.mxu0
    %v2710 = vadd.f32 %v2427, %v2702
    %v2711 = vadd.f32 %v2428, %v2707
    %s2712 = scalar_lea.vmem %s5, 1
    %v2713 = vld [vmem:[%s2712] sm:$0x1]
    %v2715 = vlaneseq
    %v2716 = vshrl.u32 %v2715, 7
    %v2717 = vsub.s32 0, %v2716
    %v2718 = vrot.slane %v2713, %v2717
    %v2720 = vadd.f32 %v2710, %v2718
    %v2721 = vadd.f32 %v2711, %v2718
    %v2722 = vadd.f32 %v1509, %v2720
    %v2723 = vadd.f32 %v1510, %v2721
    %s2724 = scalar_lea.vmem %s6, 1
    %v2725 = vld [vmem:[%s2724] sm:$0x1]
    %s2726 = scalar_lea.vmem %s7, 1
    %v2727 = vld [vmem:[%s2726] sm:$0x1]
    %v2728 = vsel %vm77, %v2722, 0.0
    %2729 = vadd.xlane.f32.xlu0 %v2728
    %v2730 = vpop.xlane.xlu0 %2729
    %v2731 = vsel %vm77, %v2723, 0.0
    %2732 = vadd.xlane.f32.xlu0 %v2731
    %v2733 = vpop.xlane.xlu0 %2732
    %v2734 = vmul.f32 %v2730, %v1273
    %v2735 = vmul.f32 %v2733, %v1273
    %v2736 = vsub.f32 %v2722, %v2734
    %v2737 = vsub.f32 %v2723, %v2735
    %v2738 = vmul.f32 %v2736, %v2736
    %v2739 = vmul.f32 %v2737, %v2737
    %v2740 = vsel %vm77, %v2738, 0.0
    %2741 = vadd.xlane.f32.xlu0 %v2740
    %v2742 = vpop.xlane.xlu0 %2741
    %v2743 = vsel %vm77, %v2739, 0.0
    %2744 = vadd.xlane.f32.xlu0 %v2743
    %v2745 = vpop.xlane.xlu0 %2744
    %v2746 = vmul.f32 %v2742, %v1273
    %v2747 = vmul.f32 %v2745, %v1273
    %v2748 = vadd.f32 %v2746, 1e-05
    %v2749 = vadd.f32 %v2747, 1e-05
    %v2750 = vrsqrt.pop %v2748
    %v2751 = vrsqrt.pop %v2749
    %v2752 = vmul.f32 %v2736, %v2750
    %v2753 = vmul.f32 %v2737, %v2751
    %v2755 = vlaneseq
    %v2756 = vshrl.u32 %v2755, 7
    %v2757 = vsub.s32 0, %v2756
    %v2758 = vrot.slane %v2725, %v2757
    %v2760 = vmul.f32 %v2752, %v2758
    %v2761 = vmul.f32 %v2753, %v2758
    %v2763 = vlaneseq
    %v2764 = vshrl.u32 %v2763, 7
    %v2765 = vsub.s32 0, %v2764
    %v2766 = vrot.slane %v2727, %v2765
    %v2768 = vadd.f32 %v2760, %v2766
    %v2769 = vadd.f32 %v2761, %v2766
    %v2770 = vpack.c.bf16 %v2769, %v2768
    %s2771 = scalar_lea.vmem %s8, 16
    %v2772 = vld [vmem:[%s2771] sm:$0xf]
    %v2773 = vld [vmem:[%s2771 + $0x4] sm:$0xf]
    %v2774 = vld [vmem:[%s2771 + $0x8] sm:$0xf]
    %v2775 = vld [vmem:[%s2771 + $0xc] sm:$0xf]
    %s2776 = scalar_lea.vmem %s9, 1
    %v2777 = vld [vmem:[%s2776] sm:$0x1]
    %v2779 = vlaneseq
    %v2780 = vshrl.u32 %v2779, 7
    %v2781 = vsub.s32 0, %v2780
    %v2782 = vrot.slane %v2777, %v2781
    %v2788 = vunpack.c.l.b16 %v2772
    %v2789 = vunpack.c.l.b16 %v2773
    %v2790 = vunpack.c.l.b16 %v2774
    %v2791 = vunpack.c.l.b16 %v2775
    %v2792 = vpack.c.b16 %v2789, %v2788
    %v2793 = vpack.c.b16 %v2791, %v2790
    %v2797 = vsel %vm77, %v2770, 0
    %2799 = vmatprep.subr.bf16.mxu0 0
    %2800 = vmatpush1.bf16.msra.mxu0 %v2792
    %2801 = vmatprep.subr.bf16.mxu0 0
    %2802 = vmatpush1.bf16.msra.mxu0 %v2793
    %2803 = vmatprep.subr.bf16.mxu0 0
    %2804 = vmatpush1.bf16.msra.mxu0 0
    %2805 = vmatprep.subr.bf16.mxu0 0
    %2806 = vmatpush1.bf16.msra.mxu0 0
    %2807 = vmatprep.subr.bf16.mxu0 0
    %2808 = vmatpush1.bf16.msra.mxu0 0
    %2809 = vmatprep.subr.bf16.mxu0 0
    %2810 = vmatpush1.bf16.msra.mxu0 0
    %2811 = vmatprep.subr.bf16.mxu0 0
    %2812 = vmatpush1.bf16.msra.mxu0 0
    %2813 = vmatprep.subr.bf16.mxu0 0
    %2814 = vmatpush1.bf16.msra.mxu0 0
    %2815 = vmatprep.subr.bf16.mxu0 0
    %2816 = vmatpush1.bf16.msra.mxu0 0
    %2817 = vmatprep.subr.bf16.mxu0 0
    %2818 = vmatpush1.bf16.msra.mxu0 0
    %2819 = vmatprep.subr.bf16.mxu0 0
    %2820 = vmatpush1.bf16.msra.mxu0 0
    %2821 = vmatprep.subr.bf16.mxu0 0
    %2822 = vmatpush1.bf16.msra.mxu0 0
    %2823 = vmatprep.subr.bf16.mxu0 0
    %2824 = vmatpush1.bf16.msra.mxu0 0
    %2825 = vmatprep.subr.bf16.mxu0 0
    %2826 = vmatpush1.bf16.msra.mxu0 0
    %2827 = vmatprep.subr.bf16.mxu0 0
    %2828 = vmatpush1.bf16.msra.mxu0 0
    %2829 = vmatprep.subr.bf16.mxu0 0
    %2830 = vmatpush1.bf16.msra.mxu0 0
    %2831 = vmatprep.mubr.bf16.mxu0 0
    %2832 = vmatmul.mubr.bf16.gmra.mrb[0].mxu0 %v2797
    %v2833 = vpop.f32.mrb[0].mxu0
    %v2834 = vadd.f32 %v2782, %v2833
    %v2835 = vpop.f32.mrb[0].mxu0
    %v2836 = vpop.f32.mrb[0].mxu0
    %v2837 = vadd.f32 %v2782, %v2836
    %v2838 = vpop.f32.mrb[0].mxu0
    %2839 = vdwg.mxu0
    %v2840 = vmax.f32 %v2834, 0.0
    %v2841 = vmax.f32 %v2837, 0.0
    %v2842 = vpack.c.bf16 %v2841, %v2840
    %s2843 = scalar_lea.vmem %s10, 32
    %v2844 = vld [vmem:[%s2843] sm:$0xf]
    %v2845 = vld [vmem:[%s2843 + $0x4] sm:$0xf]
    %v2846 = vld [vmem:[%s2843 + $0x8] sm:$0xf]
    %v2847 = vld [vmem:[%s2843 + $0xc] sm:$0xf]
    %v2848 = vld [vmem:[%s2843 + $0x10] sm:$0xf]
    %v2849 = vld [vmem:[%s2843 + $0x14] sm:$0xf]
    %v2850 = vld [vmem:[%s2843 + $0x18] sm:$0xf]
    %v2851 = vld [vmem:[%s2843 + $0x1c] sm:$0xf]
    %s2852 = scalar_lea.vmem %s11, 1
    %v2853 = vld [vmem:[%s2852] sm:$0x1]
    %v2855 = vlaneseq
    %v2856 = vshrl.u32 %v2855, 7
    %v2857 = vsub.s32 0, %v2856
    %v2858 = vrot.slane %v2853, %v2857
    %v2868 = vunpack.c.l.b16 %v2844
    %v2869 = vunpack.c.l.b16 %v2845
    %v2870 = vunpack.c.l.b16 %v2846
    %v2871 = vunpack.c.l.b16 %v2847
    %v2872 = vunpack.c.l.b16 %v2848
    %v2873 = vunpack.c.l.b16 %v2849
    %v2874 = vunpack.c.l.b16 %v2850
    %v2875 = vunpack.c.l.b16 %v2851
    %v2876 = vpack.c.b16 %v2869, %v2868
    %v2877 = vpack.c.b16 %v2871, %v2870
    %v2878 = vpack.c.b16 %v2873, %v2872
    %v2879 = vpack.c.b16 %v2875, %v2874
    %v2885 = vsel %vm1420, %v2842, 0
    %2887 = vmatprep.subr.bf16.mxu0 0
    %2888 = vmatpush1.bf16.msra.mxu0 %v2876
    %2889 = vmatprep.subr.bf16.mxu0 0
    %2890 = vmatpush1.bf16.msra.mxu0 %v2877
    %2891 = vmatprep.subr.bf16.mxu0 0
    %2892 = vmatpush1.bf16.msra.mxu0 %v2878
    %2893 = vmatprep.subr.bf16.mxu0 0
    %2894 = vmatpush1.bf16.msra.mxu0 %v2879
    %2895 = vmatprep.subr.bf16.mxu0 0
    %2896 = vmatpush1.bf16.msra.mxu0 0
    %2897 = vmatprep.subr.bf16.mxu0 0
    %2898 = vmatpush1.bf16.msra.mxu0 0
    %2899 = vmatprep.subr.bf16.mxu0 0
    %2900 = vmatpush1.bf16.msra.mxu0 0
    %2901 = vmatprep.subr.bf16.mxu0 0
    %2902 = vmatpush1.bf16.msra.mxu0 0
    %2903 = vmatprep.subr.bf16.mxu0 0
    %2904 = vmatpush1.bf16.msra.mxu0 0
    %2905 = vmatprep.subr.bf16.mxu0 0
    %2906 = vmatpush1.bf16.msra.mxu0 0
    %2907 = vmatprep.subr.bf16.mxu0 0
    %2908 = vmatpush1.bf16.msra.mxu0 0
    %2909 = vmatprep.subr.bf16.mxu0 0
    %2910 = vmatpush1.bf16.msra.mxu0 0
    %2911 = vmatprep.subr.bf16.mxu0 0
    %2912 = vmatpush1.bf16.msra.mxu0 0
    %2913 = vmatprep.subr.bf16.mxu0 0
    %2914 = vmatpush1.bf16.msra.mxu0 0
    %2915 = vmatprep.subr.bf16.mxu0 0
    %2916 = vmatpush1.bf16.msra.mxu0 0
    %2917 = vmatprep.subr.bf16.mxu0 0
    %2918 = vmatpush1.bf16.msra.mxu0 0
    %2919 = vmatprep.mubr.bf16.mxu0 0
    %2920 = vmatmul.mubr.bf16.gmra.mrb[0].mxu0 %v2885
    %v2921 = vpop.f32.mrb[0].mxu0
    %v2922 = vadd.f32 %v2858, %v2921
    %v2923 = vpop.f32.mrb[0].mxu0
    %v2924 = vpop.f32.mrb[0].mxu0
    %v2925 = vadd.f32 %v2858, %v2924
    %v2926 = vpop.f32.mrb[0].mxu0
    %2927 = vdwg.mxu0
    %v2928 = vadd.f32 %v2768, %v2922
    %v2929 = vadd.f32 %v2769, %v2925
    %s2930 = scalar_lea.vmem %s12, 1
    %v2931 = vld [vmem:[%s2930] sm:$0x1]
    %s2932 = scalar_lea.vmem %s13, 1
    %v2933 = vld [vmem:[%s2932] sm:$0x1]
    %v2934 = vsel %vm77, %v2928, 0.0
    %2935 = vadd.xlane.f32.xlu0 %v2934
    %v2936 = vpop.xlane.xlu0 %2935
    %v2937 = vsel %vm77, %v2929, 0.0
    %2938 = vadd.xlane.f32.xlu0 %v2937
    %v2939 = vpop.xlane.xlu0 %2938
    %v2940 = vmul.f32 %v2936, %v1273
    %v2941 = vmul.f32 %v2939, %v1273
    %v2942 = vsub.f32 %v2928, %v2940
    %v2943 = vsub.f32 %v2929, %v2941
    %v2944 = vmul.f32 %v2942, %v2942
    %v2945 = vmul.f32 %v2943, %v2943
    %v2946 = vsel %vm77, %v2944, 0.0
    %2947 = vadd.xlane.f32.xlu0 %v2946
    %v2948 = vpop.xlane.xlu0 %2947
    %v2949 = vsel %vm77, %v2945, 0.0
    %2950 = vadd.xlane.f32.xlu0 %v2949
    %v2951 = vpop.xlane.xlu0 %2950
    %v2952 = vmul.f32 %v2948, %v1273
    %v2953 = vmul.f32 %v2951, %v1273
    %v2954 = vadd.f32 %v2952, 1e-05
    %v2955 = vadd.f32 %v2953, 1e-05
    %v2956 = vrsqrt.pop %v2954
    %v2957 = vrsqrt.pop %v2955
    %v2958 = vmul.f32 %v2942, %v2956
    %v2959 = vmul.f32 %v2943, %v2957
    %v2961 = vlaneseq
    %v2962 = vshrl.u32 %v2961, 7
    %v2963 = vsub.s32 0, %v2962
    %v2964 = vrot.slane %v2931, %v2963
    %v2966 = vmul.f32 %v2958, %v2964
    %v2967 = vmul.f32 %v2959, %v2964
    %v2969 = vlaneseq
    %v2970 = vshrl.u32 %v2969, 7
    %v2971 = vsub.s32 0, %v2970
    %v2972 = vrot.slane %v2933, %v2971
    %v2974 = vadd.f32 %v2966, %v2972
    %v2975 = vadd.f32 %v2967, %v2972
    %2976 = vst.msk [vmem:[#allocation2] sm:$0xff] %vm77, %v2974
    %2977 = vst.msk [vmem:[#allocation2 + $0x8] sm:$0xff] %vm77, %v2975
    // Predicated region
    $region58: #{transformer_encoder_forward.1} parent=1 // pred_check
      _
    $region59: #{transformer_encoder_forward.1} parent=1 // pred_check_branch
      %2979 = sbr.rel (0) target = $region61
    $region60: #{transformer_encoder_forward.1} parent=1 // pred_region
      %s2981 = ssub.s32 256, 256
      %2982 = vsyncadd [#allocation3], %s2981
      %s2983 = sshll.u32 [#allocation2], 4
      %s2984 = int_to_ptr.vmem [resolvable:$true] %s2983
      %2989 = dma.vmem_to_hbm [thread:$0]  %s2984, 256, %s14, [#allocation3], 128, 128, 8
    $region61: #{transformer_encoder_forward.1} parent=1 // pred_fallthru
      _
    // Predicated region
    $region62: #{transformer_encoder_forward.1} parent=1 // pred_check
      _
    $region63: #{transformer_encoder_forward.1} parent=1 // pred_check_branch
      %2991 = sbr.rel (0) target = $region65
    $region64: #{transformer_encoder_forward.1} parent=1 // pred_region
      %2992 = dma.done [#allocation3], 256
    $region65: #{transformer_encoder_forward.1} parent=1 // pred_fallthru
      _
    %2993 = vsyncpa [#allocation3], 1

</llo_original>
